<compile_context>
chip_gen: v5e
topology: v5e:2x2
jax: 0.10.0
libtpu: 0.0.40
codegen_flags: <defaults>
</compile_context>

<pallas_src>
import functools

import jax
import jax.numpy as jnp
from jax import lax
from jax.experimental import pallas as pl
from jax.experimental.pallas import tpu as pltpu

BN_EPS = 1e-5


# --------------------------------------------------------------------------- #
# Hardware-dependent tiling / VMEM configuration.
# --------------------------------------------------------------------------- #
def _hw_config():
    try:
        kind = jax.devices()[0].device_kind.lower()
    except Exception:
        kind = ""
    if "v7" in kind:
        # 64 MiB physical VMEM per TC -> 48 MiB scoped limit; tp=1024 keeps the
        # MXU M dimension fed while the (tp,1024) f32 intermediates stay ~4 MiB.
        return {"tile_target": 1024, "vmem_limit": 48 << 20}
    if "v5" in kind or "v6" in kind:
        # 128 MiB physical VMEM: big tiles amortize the ~0.35 us per-step cost.
        return {"tile_target": 2048, "vmem_limit": 100 << 20}
    return {"tile_target": 1024, "vmem_limit": None}


def _choose_tile(P, target):
    """Pick a point-tile and a padded point count (multiple of the tile).

    Padding + masking guarantees the target tile for divisor-poor P instead of
    degrading to tiny divisors or a whole-P fallback that can blow VMEM.
    """
    if P <= target:
        tp = ((P + 7) // 8) * 8          # sublane-aligned single tile per batch
        return tp, tp
    tp = target
    p_pad = ((P + tp - 1) // tp) * tp
    return tp, p_pad


def _compiler_params(cfg, dim_sem=None):
    kwargs = {}
    if dim_sem is not None:
        kwargs["dimension_semantics"] = dim_sem
    if cfg["vmem_limit"] is not None:
        kwargs["vmem_limit_bytes"] = cfg["vmem_limit"]
    return pltpu.CompilerParams(**kwargs)


# --------------------------------------------------------------------------- #
# Fused streaming pass kernel.
#   depth=1: conv1                         -> bn1 stats
#   depth=2: conv1+bn1+relu, conv2         -> bn2 stats
#   depth=3: conv1+bn1+relu, conv2+bn2+relu, conv3 -> bn3 stats + max/min
# Nothing per-point is written back to HBM; only per-batch accumulators.
# --------------------------------------------------------------------------- #
def _fused_pass_kernel(*refs, depth, tp, p_valid, needs_mask):
    n_in = 2 + 3 * (depth - 1)
    in_refs, out_refs = refs[:n_in], refs[n_in:]
    x_ref, w1_ref = in_refs[0], in_refs[1]
    t = pl.program_id(1)

    # conv1: tiny contraction (Cin ~ 3) -> Cin broadcast-FMAs on the VPU
    # instead of a lane-padded f32 MXU matmul.
    a = x_ref[...].astype(jnp.float32)                     # (tp, Cin)
    w1 = w1_ref[...]                                       # (Cin, 64)
    h = a[:, 0:1] * w1[0:1, :]
    for k in range(1, w1.shape[0]):
        h = h + a[:, k:k + 1] * w1[k:k + 1, :]

    if depth >= 2:
        sc1_ref, sh1_ref, w2_ref = in_refs[2:5]
        h = jnp.maximum(h * sc1_ref[...] + sh1_ref[...], 0.0)          # bn1+relu
        h = jnp.dot(h.astype(w2_ref.dtype), w2_ref[...],
                    preferred_element_type=jnp.float32)                # conv2
    if depth >= 3:
        sc2_ref, sh2_ref, w3_ref = in_refs[5:8]
        h = jnp.maximum(h * sc2_ref[...] + sh2_ref[...], 0.0)          # bn2+relu
        h = jnp.dot(h.astype(w3_ref.dtype), w3_ref[...],
                    preferred_element_type=jnp.float32)                # conv3

    sum_ref, ssq_ref = out_refs[0], out_refs[1]

    if needs_mask:
        row = lax.broadcasted_iota(jnp.int32, (tp, 1), 0) + t * tp
        valid = row < p_valid
        h_stats = jnp.where(valid, h, 0.0)
    else:
        h_stats = h

    @pl.when(t == 0)                                       # per-batch resident accumulators
    def _():
        sum_ref[...] = jnp.zeros_like(sum_ref)
        ssq_ref[...] = jnp.zeros_like(ssq_ref)

    # TODO(synk): one-pass variance (sum / sum-of-squares) in f32 can lose
    # precision when |mean| >> std over very large B*P; a centered/Welford
    # combine would be more robust.
    sum_ref[...] += jnp.sum(h_stats, axis=0, keepdims=True)
    ssq_ref[...] += jnp.sum(h_stats * h_stats, axis=0, keepdims=True)

    if depth == 3:
        # Fused max-pool: track channelwise max AND min of pre-BN conv3 output
        # (min needed because the BN affine can have negative scale).
        max_ref, min_ref = out_refs[2], out_refs[3]
        if needs_mask:
            h_max = jnp.where(valid, h, -jnp.inf)
            h_min = jnp.where(valid, h, jnp.inf)
        else:
            h_max, h_min = h, h

        @pl.when(t == 0)
        def _():
            max_ref[...] = jnp.full(max_ref.shape, -jnp.inf, max_ref.dtype)
            min_ref[...] = jnp.full(min_ref.shape, jnp.inf, min_ref.dtype)

        max_ref[...] = jnp.maximum(max_ref[...],
                                   jnp.max(h_max, axis=0, keepdims=True))
        min_ref[...] = jnp.minimum(min_ref[...],
                                   jnp.min(h_min, axis=0, keepdims=True))


def _fused_pass(x3p, weights, affines, depth, tp, cfg, *, p_valid, needs_mask):
    """weights: (w1[,w2[,w3]]) with w2/w3 pre-cast to bf16; affines: matching
    ((sc1,sh1)[, (sc2,sh2)]) BN scale/shift pairs applied before each matmul."""
    B, p_pad, cin = x3p.shape
    nt = p_pad // tp
    c_out = weights[-1].shape[1]

    inputs = [x3p, weights[0]]
    in_specs = [
        pl.BlockSpec((None, tp, cin), lambda b, t: (b, t, 0)),
        pl.BlockSpec(weights[0].shape, lambda b, t: (0, 0)),
    ]
    for (sc, sh), w in zip(affines, weights[1:]):
        inputs += [sc, sh, w]
        in_specs += [
            pl.BlockSpec(sc.shape, lambda b, t: (0, 0)),
            pl.BlockSpec(sh.shape, lambda b, t: (0, 0)),
            pl.BlockSpec(w.shape, lambda b, t: (0, 0)),
        ]

    n_out = 4 if depth == 3 else 2
    out_shape = tuple(jax.ShapeDtypeStruct((B, 1, c_out), jnp.float32)
                      for _ in range(n_out))
    out_specs = tuple(pl.BlockSpec((None, 1, c_out), lambda b, t: (b, 0, 0))
                      for _ in range(n_out))

    kernel = functools.partial(_fused_pass_kernel, depth=depth, tp=tp,
                               p_valid=p_valid, needs_mask=needs_mask)
    return pl.pallas_call(
        kernel,
        grid=(B, nt),
        out_shape=out_shape,
        in_specs=in_specs,
        out_specs=out_specs,
        compiler_params=_compiler_params(cfg, ("parallel", "arbitrary")),
    )(*inputs)


# --------------------------------------------------------------------------- #
# BN helpers (tiny XLA glue between passes) and the post-pool FC head kernel.
# --------------------------------------------------------------------------- #
def _bn_affine(sum_b, ssq_b, n, gamma, beta):
    """Fold per-batch partial sums into the next pass's BN affine (scale, shift)."""
    s = jnp.sum(sum_b, axis=0)                  # (1, C)
    ss = jnp.sum(ssq_b, axis=0)                 # (1, C)
    mu = s / n
    var = jnp.maximum(ss / n - mu * mu, 0.0)
    scale = gamma * lax.rsqrt(var + BN_EPS)
    shift = beta - mu * scale
    return scale, shift


def _bn_train(h, gamma, beta):
    """Training-mode batch norm over axis 0 (biased variance, like PyTorch)."""
    n = h.shape[0]
    mu = jnp.sum(h, axis=0, keepdims=True) / n
    var = jnp.maximum(jnp.sum(h * h, axis=0, keepdims=True) / n - mu * mu, 0.0)
    return (h - mu) * lax.rsqrt(var + BN_EPS) * gamma + beta


def _fc_head_kernel(pooled_ref, wf1_ref, g4_ref, be4_ref,
                    wf2_ref, g5_ref, be5_ref, wf3_ref, bf3_ref, out_ref):
    """Post-pool FC stack: fc1+bn4+relu, fc2+bn5+relu, fc3+identity bias."""
    p = pooled_ref[...]
    f = jnp.dot(p.astype(wf1_ref.dtype), wf1_ref[...], preferred_element_type=jnp.float32)
    f = jnp.maximum(_bn_train(f, g4_ref[...], be4_ref[...]), 0.0)       # (B, 512)
    f = jnp.dot(f.astype(wf2_ref.dtype), wf2_ref[...], preferred_element_type=jnp.float32)
    f = jnp.maximum(_bn_train(f, g5_ref[...], be5_ref[...]), 0.0)       # (B, 256)
    out_ref[...] = jnp.dot(f.astype(wf3_ref.dtype), wf3_ref[...],
                           preferred_element_type=jnp.float32) + bf3_ref[...]


def _fc_head(pooled, wf1, g4, be4, wf2, g5, be5, wf3, bf3, K, cfg):
    B = pooled.shape[0]
    kk = K * K
    kk_pad = ((kk + 127) // 128) * 128          # lane-dense output stores
    wf3p = jnp.zeros((wf3.shape[0], kk_pad), jnp.bfloat16).at[:, :kk].set(
        wf3.astype(jnp.bfloat16))
    bf3p = jnp.zeros((1, kk_pad), jnp.float32).at[:, :kk].set(bf3)

    inputs = [pooled, wf1.astype(jnp.bfloat16), g4, be4,
              wf2.astype(jnp.bfloat16), g5, be5, wf3p, bf3p]
    out = pl.pallas_call(
        _fc_head_kernel,
        out_shape=jax.ShapeDtypeStruct((B, kk_pad), jnp.float32),
        in_specs=[pl.BlockSpec(memory_space=pltpu.MemorySpace.VMEM)] * len(inputs),
        out_specs=pl.BlockSpec(memory_space=pltpu.MemorySpace.VMEM),
        compiler_params=_compiler_params(cfg),
    )(*inputs)
    return out[:, :kk]


# --------------------------------------------------------------------------- #
# Full forward pass.
# --------------------------------------------------------------------------- #
def feature_transform_net(x, params, *, K, point_num):
    """x: NCHW float32 (B, Cin, point_num, 1).  Returns (B, K, K) — matches the
    PyTorch module's training-mode forward (batch-statistics BatchNorm)."""
    (w1, g1, be1, w2, g2, be2, w3, g3, be3,
     wf1, g4, be4, wf2, g5, be5, wf3, bf3) = params
    B, cin, P, W = x.shape
    assert P == point_num and W == 1

    cfg = _hw_config()
    tp, p_pad = _choose_tile(P, cfg["tile_target"])
    needs_mask = (p_pad != P)
    n_pts = B * P

    # NCHW (W=1) -> (B, P, Cin): each point is an independent 1x1-conv "pixel",
    # channels on the lane axis.  Pad the point axis to a tile multiple.
    x3 = jnp.transpose(x[..., 0], (0, 2, 1))
    if needs_mask:
        x3 = jnp.pad(x3, ((0, 0), (0, p_pad - P), (0, 0)))

    w2b = w2.astype(jnp.bfloat16)
    w3b = w3.astype(jnp.bfloat16)

    # Pass 1: conv1 -> bn1 statistics (no activation materialization).
    s1, q1 = _fused_pass(x3, (w1,), (), 1, tp, cfg,
                         p_valid=P, needs_mask=needs_mask)
    sc1, sh1 = _bn_affine(s1, q1, n_pts, g1, be1)

    # Pass 2: recompute conv1+bn1+relu in-register, conv2 -> bn2 statistics.
    s2, q2 = _fused_pass(x3, (w1, w2b), ((sc1, sh1),), 2, tp, cfg,
                         p_valid=P, needs_mask=needs_mask)
    sc2, sh2 = _bn_affine(s2, q2, n_pts, g2, be2)

    # Pass 3: recompute conv1/conv2 chain, conv3 -> bn3 statistics plus fused
    # per-batch channelwise running max/min of the pre-BN conv3 output.
    s3, q3, mx, mn = _fused_pass(x3, (w1, w2b, w3b), ((sc1, sh1), (sc2, sh2)),
                                 3, tp, cfg, p_valid=P, needs_mask=needs_mask)
    sc3, sh3 = _bn_affine(s3, q3, n_pts, g3, be3)

    # MaxPool2d((P,1)) via the monotone per-channel BN affine:
    #   max_p relu(scale*h + shift) = relu(scale*(max if scale>=0 else min) + shift).
    h_sel = jnp.where(sc3 >= 0.0, mx[:, 0, :], mn[:, 0, :])       # (B, 1024)
    pooled = jnp.maximum(h_sel * sc3 + sh3, 0.0)

    # Tiny post-pool FC head.
    out = _fc_head(pooled, wf1, g4, be4, wf2, g5, be5, wf3, bf3, K, cfg)
    return out.reshape(B, K, K)


# --------------------------------------------------------------------------- #
# Parameter init (matches the PyTorch module's initialization).
# --------------------------------------------------------------------------- #
def _xavier_normal(key, fan_in, fan_out):
    std = (2.0 / (fan_in + fan_out)) ** 0.5
    return jax.random.normal(key, (fan_in, fan_out), jnp.float32) * std


def init_params(key, input_channel_num, K):
    """Parameters in kernel order.  Conv/FC biases that feed a training-mode BN
    (b1, b2, b3, bf1, bf2) are omitted: mean subtraction cancels them exactly."""
    dims = [
        (input_channel_num, 64),   # conv1 (1x1)
        (64, 128),                 # conv2 (1x1)
        (128, 1024),               # conv3 (1x1)
        (1024, 512),               # fc1
        (512, 256),                # fc2
        (256, K * K),              # fc3
    ]
    keys = jax.random.split(key, len(dims))
    params = []
    for idx, (fi, fo) in enumerate(dims):
        params.append(_xavier_normal(keys[idx], fi, fo))
        if idx < 5:                # bn1..bn5 gamma/beta (PyTorch defaults: 1, 0)
            params.append(jnp.ones((1, fo), jnp.float32))
            params.append(jnp.zeros((1, fo), jnp.float32))
    # fc3 bias = flattened identity (as in the PyTorch module)
    params.append(jnp.eye(K, dtype=jnp.float32).reshape(1, K * K))
    return params


if __name__ == "__main__":
    B, Cin, P, K = 2, 4, 16, 8
    key = jax.random.PRNGKey(0)
    kx, kp = jax.random.split(key)
    x = jax.random.normal(kx, (B, Cin, P, 1), jnp.float32)   # NCHW, W=1
    params = init_params(kp, Cin, K)

    fwd = jax.jit(functools.partial(feature_transform_net, K=K, point_num=P))
    out = jax.block_until_ready(fwd(x, params))
    assert out.shape == (B, K, K) and out.dtype == jnp.float32
    print("KERNEL_OK")
</pallas_src>

<mosaic_0001>
module attributes {stable_mosaic.version = 11 : i64} {
  func.func @_fused_pass_kernel(%arg0: i32, %arg1: i32, %arg2: memref<1x16x4xf32, #tpu.memory_space<vmem>>, %arg3: memref<4x64xf32, #tpu.memory_space<vmem>>, %arg4: memref<1x64xf32, #tpu.memory_space<vmem>>, %arg5: memref<1x64xf32, #tpu.memory_space<vmem>>, %arg6: memref<64x128xbf16, #tpu.memory_space<vmem>>, %arg7: memref<1x1x128xf32, #tpu.memory_space<vmem>>, %arg8: memref<1x1x128xf32, #tpu.memory_space<vmem>>) attributes {dimension_semantics = [#tpu.dimension_semantics<parallel>, #tpu.dimension_semantics<arbitrary>], iteration_bounds = array<i64: 2, 1>, scalar_prefetch = 0 : i64, scratch_operands = 0 : i64, tpu.core_type = #tpu.core_type<tc>, window_params = [{transform_indices = @transform_0, window_bounds = array<i64: 1, 16, 4>}, {pipeline_mode = #tpu.pipeline_mode<synchronous>, transform_indices = @transform_1, window_bounds = array<i64: 4, 64>}, {pipeline_mode = #tpu.pipeline_mode<synchronous>, transform_indices = @transform_2, window_bounds = array<i64: 1, 64>}, {pipeline_mode = #tpu.pipeline_mode<synchronous>, transform_indices = @transform_3, window_bounds = array<i64: 1, 64>}, {pipeline_mode = #tpu.pipeline_mode<synchronous>, transform_indices = @transform_4, window_bounds = array<i64: 64, 128>}, {transform_indices = @transform_5, window_bounds = array<i64: 1, 1, 128>}, {transform_indices = @transform_6, window_bounds = array<i64: 1, 1, 128>}]} {
    %c0 = arith.constant 0 : index
    %c0_0 = arith.constant 0 : index
    %c0_1 = arith.constant 0 : index
    %0 = vector.load %arg2[%c0, %c0_0, %c0_1] : memref<1x16x4xf32, #tpu.memory_space<vmem>>, vector<1x16x4xf32>
    %1 = vector.shape_cast %0 : vector<1x16x4xf32> to vector<16x4xf32>
    %c0_2 = arith.constant 0 : index
    %c0_3 = arith.constant 0 : index
    %2 = vector.load %arg3[%c0_2, %c0_3] : memref<4x64xf32, #tpu.memory_space<vmem>>, vector<4x64xf32>
    %3 = vector.extract_strided_slice %1 {offsets = [0, 0], sizes = [16, 1], strides = [1, 1]} : vector<16x4xf32> to vector<16x1xf32>
    %4 = vector.extract_strided_slice %2 {offsets = [0, 0], sizes = [1, 64], strides = [1, 1]} : vector<4x64xf32> to vector<1x64xf32>
    %5 = vector.broadcast %3 : vector<16x1xf32> to vector<16x64xf32>
    %6 = vector.broadcast %4 : vector<1x64xf32> to vector<16x64xf32>
    %7 = arith.mulf %5, %6 : vector<16x64xf32>
    %8 = vector.extract_strided_slice %1 {offsets = [0, 1], sizes = [16, 1], strides = [1, 1]} : vector<16x4xf32> to vector<16x1xf32>
    %9 = vector.extract_strided_slice %2 {offsets = [1, 0], sizes = [1, 64], strides = [1, 1]} : vector<4x64xf32> to vector<1x64xf32>
    %10 = vector.broadcast %8 : vector<16x1xf32> to vector<16x64xf32>
    %11 = vector.broadcast %9 : vector<1x64xf32> to vector<16x64xf32>
    %12 = arith.mulf %10, %11 : vector<16x64xf32>
    %13 = arith.addf %7, %12 : vector<16x64xf32>
    %14 = vector.extract_strided_slice %1 {offsets = [0, 2], sizes = [16, 1], strides = [1, 1]} : vector<16x4xf32> to vector<16x1xf32>
    %15 = vector.extract_strided_slice %2 {offsets = [2, 0], sizes = [1, 64], strides = [1, 1]} : vector<4x64xf32> to vector<1x64xf32>
    %16 = vector.broadcast %14 : vector<16x1xf32> to vector<16x64xf32>
    %17 = vector.broadcast %15 : vector<1x64xf32> to vector<16x64xf32>
    %18 = arith.mulf %16, %17 : vector<16x64xf32>
    %19 = arith.addf %13, %18 : vector<16x64xf32>
    %20 = vector.extract_strided_slice %1 {offsets = [0, 3], sizes = [16, 1], strides = [1, 1]} : vector<16x4xf32> to vector<16x1xf32>
    %21 = vector.extract_strided_slice %2 {offsets = [3, 0], sizes = [1, 64], strides = [1, 1]} : vector<4x64xf32> to vector<1x64xf32>
    %22 = vector.broadcast %20 : vector<16x1xf32> to vector<16x64xf32>
    %23 = vector.broadcast %21 : vector<1x64xf32> to vector<16x64xf32>
    %24 = arith.mulf %22, %23 : vector<16x64xf32>
    %25 = arith.addf %19, %24 : vector<16x64xf32>
    %c0_4 = arith.constant 0 : index
    %c0_5 = arith.constant 0 : index
    %26 = vector.load %arg4[%c0_4, %c0_5] : memref<1x64xf32, #tpu.memory_space<vmem>>, vector<1x64xf32>
    %27 = vector.broadcast %26 : vector<1x64xf32> to vector<16x64xf32>
    %28 = arith.mulf %25, %27 : vector<16x64xf32>
    %c0_6 = arith.constant 0 : index
    %c0_7 = arith.constant 0 : index
    %29 = vector.load %arg5[%c0_6, %c0_7] : memref<1x64xf32, #tpu.memory_space<vmem>>, vector<1x64xf32>
    %30 = vector.broadcast %29 : vector<1x64xf32> to vector<16x64xf32>
    %31 = arith.addf %28, %30 : vector<16x64xf32>
    %cst = arith.constant 0.000000e+00 : f32
    %32 = vector.broadcast %cst : f32 to vector<16x64xf32>
    %33 = arith.maximumf %31, %32 : vector<16x64xf32>
    %34 = arith.truncf %33 : vector<16x64xf32> to vector<16x64xbf16>
    %c0_8 = arith.constant 0 : index
    %c0_9 = arith.constant 0 : index
    %35 = vector.load %arg6[%c0_8, %c0_9] : memref<64x128xbf16, #tpu.memory_space<vmem>>, vector<64x128xbf16>
    %cst_10 = arith.constant dense<0.000000e+00> : vector<16x128xf32>
    %36 = tpu.matmul %34, %35, %cst_10 {dimension_numbers = #tpu.dot_dimension_numbers<[1], [0], [0], [1], [0, 0, 1, 1], [], []>} : vector<16x64xbf16>, vector<64x128xbf16>, vector<16x128xf32> -> vector<16x128xf32>
    %c0_i32 = arith.constant 0 : i32
    %37 = arith.cmpi eq, %arg1, %c0_i32 : i32
    %38 = arith.extui %37 : i1 to i32
    %c0_i32_11 = arith.constant 0 : i32
    %39 = arith.cmpi ne, %38, %c0_i32_11 : i32
    scf.if %39 {
      %cst_26 = arith.constant 0.000000e+00 : f32
      %57 = vector.broadcast %cst_26 : f32 to vector<1x128xf32>
      %c0_27 = arith.constant 0 : index
      %c0_28 = arith.constant 0 : index
      %c0_29 = arith.constant 0 : index
      %58 = vector.load %arg7[%c0_27, %c0_28, %c0_29] : memref<1x1x128xf32, #tpu.memory_space<vmem>>, vector<1x1x128xf32>
      %59 = vector.shape_cast %58 : vector<1x1x128xf32> to vector<1x128xf32>
      %60 = vector.shape_cast %57 : vector<1x128xf32> to vector<1x1x128xf32>
      tpu.vector_store %arg7[%c0_27, %c0_28, %c0_29], %60 {strides = array<i32>} : memref<1x1x128xf32, #tpu.memory_space<vmem>>, vector<1x1x128xf32>,
      %cst_30 = arith.constant 0.000000e+00 : f32
      %61 = vector.broadcast %cst_30 : f32 to vector<1x128xf32>
      %c0_31 = arith.constant 0 : index
      %c0_32 = arith.constant 0 : index
      %c0_33 = arith.constant 0 : index
      %62 = vector.load %arg8[%c0_31, %c0_32, %c0_33] : memref<1x1x128xf32, #tpu.memory_space<vmem>>, vector<1x1x128xf32>
      %63 = vector.shape_cast %62 : vector<1x1x128xf32> to vector<1x128xf32>
      %64 = vector.shape_cast %61 : vector<1x128xf32> to vector<1x1x128xf32>
      tpu.vector_store %arg8[%c0_31, %c0_32, %c0_33], %64 {strides = array<i32>} : memref<1x1x128xf32, #tpu.memory_space<vmem>>, vector<1x1x128xf32>,
    } else {
    }
    %c0_12 = arith.constant 0 : index
    %c0_13 = arith.constant 0 : index
    %c0_14 = arith.constant 0 : index
    %40 = vector.load %arg7[%c0_12, %c0_13, %c0_14] : memref<1x1x128xf32, #tpu.memory_space<vmem>>, vector<1x1x128xf32>
    %41 = vector.shape_cast %40 : vector<1x1x128xf32> to vector<1x128xf32>
    %cst_15 = arith.constant dense<0.000000e+00> : vector<128xf32>
    %42 = vector.multi_reduction <add>, %36, %cst_15 [0] : vector<16x128xf32> to vector<128xf32>
    %43 = vector.shape_cast %42 : vector<128xf32> to vector<1x128xf32>
    %44 = arith.addf %41, %43 : vector<1x128xf32>
    %c0_16 = arith.constant 0 : index
    %c0_17 = arith.constant 0 : index
    %c0_18 = arith.constant 0 : index
    %45 = vector.load %arg7[%c0_16, %c0_17, %c0_18] : memref<1x1x128xf32, #tpu.memory_space<vmem>>, vector<1x1x128xf32>
    %46 = vector.shape_cast %45 : vector<1x1x128xf32> to vector<1x128xf32>
    %47 = vector.shape_cast %44 : vector<1x128xf32> to vector<1x1x128xf32>
    tpu.vector_store %arg7[%c0_16, %c0_17, %c0_18], %47 {strides = array<i32>} : memref<1x1x128xf32, #tpu.memory_space<vmem>>, vector<1x1x128xf32>,
    %c0_19 = arith.constant 0 : index
    %c0_20 = arith.constant 0 : index
    %c0_21 = arith.constant 0 : index
    %48 = vector.load %arg8[%c0_19, %c0_20, %c0_21] : memref<1x1x128xf32, #tpu.memory_space<vmem>>, vector<1x1x128xf32>
    %49 = vector.shape_cast %48 : vector<1x1x128xf32> to vector<1x128xf32>
    %50 = arith.mulf %36, %36 : vector<16x128xf32>
    %cst_22 = arith.constant dense<0.000000e+00> : vector<128xf32>
    %51 = vector.multi_reduction <add>, %50, %cst_22 [0] : vector<16x128xf32> to vector<128xf32>
    %52 = vector.shape_cast %51 : vector<128xf32> to vector<1x128xf32>
    %53 = arith.addf %49, %52 : vector<1x128xf32>
    %c0_23 = arith.constant 0 : index
    %c0_24 = arith.constant 0 : index
    %c0_25 = arith.constant 0 : index
    %54 = vector.load %arg8[%c0_23, %c0_24, %c0_25] : memref<1x1x128xf32, #tpu.memory_space<vmem>>, vector<1x1x128xf32>
    %55 = vector.shape_cast %54 : vector<1x1x128xf32> to vector<1x128xf32>
    %56 = vector.shape_cast %53 : vector<1x128xf32> to vector<1x1x128xf32>
    tpu.vector_store %arg8[%c0_23, %c0_24, %c0_25], %56 {strides = array<i32>} : memref<1x1x128xf32, #tpu.memory_space<vmem>>, vector<1x1x128xf32>,
    return
  }
  func.func @transform_0(%arg0: i32, %arg1: i32) -> (i32, i32, i32) {
    %c0_i32 = arith.constant 0 : i32
    %c0_i32_0 = arith.constant 0 : i32
    return %arg0, %arg1, %c0_i32 : i32, i32, i32
  }
  func.func @transform_1(%arg0: i32, %arg1: i32) -> (i32, i32) {
    %c0_i32 = arith.constant 0 : i32
    %c0_i32_0 = arith.constant 0 : i32
    %c0_i32_1 = arith.constant 0 : i32
    return %c0_i32, %c0_i32_0 : i32, i32
  }
  func.func @transform_2(%arg0: i32, %arg1: i32) -> (i32, i32) {
    %c0_i32 = arith.constant 0 : i32
    %c0_i32_0 = arith.constant 0 : i32
    %c0_i32_1 = arith.constant 0 : i32
    return %c0_i32, %c0_i32_0 : i32, i32
  }
  func.func @transform_3(%arg0: i32, %arg1: i32) -> (i32, i32) {
    %c0_i32 = arith.constant 0 : i32
    %c0_i32_0 = arith.constant 0 : i32
    %c0_i32_1 = arith.constant 0 : i32
    return %c0_i32, %c0_i32_0 : i32, i32
  }
  func.func @transform_4(%arg0: i32, %arg1: i32) -> (i32, i32) {
    %c0_i32 = arith.constant 0 : i32
    %c0_i32_0 = arith.constant 0 : i32
    %c0_i32_1 = arith.constant 0 : i32
    return %c0_i32, %c0_i32_0 : i32, i32
  }
  func.func @transform_5(%arg0: i32, %arg1: i32) -> (i32, i32, i32) {
    %c0_i32 = arith.constant 0 : i32
    %c0_i32_0 = arith.constant 0 : i32
    %c0_i32_1 = arith.constant 0 : i32
    return %arg0, %c0_i32, %c0_i32_0 : i32, i32, i32
  }
  func.func @transform_6(%arg0: i32, %arg1: i32) -> (i32, i32, i32) {
    %c0_i32 = arith.constant 0 : i32
    %c0_i32_0 = arith.constant 0 : i32
    %c0_i32_1 = arith.constant 0 : i32
    return %arg0, %c0_i32, %c0_i32_0 : i32, i32, i32
  }
}

module attributes {stable_mosaic.version = 11 : i64} {
  func.func @_fused_pass_kernel(%arg0: i32, %arg1: i32, %arg2: memref<1x16x4xf32, #tpu.memory_space<vmem>>, %arg3: memref<4x64xf32, #tpu.memory_space<vmem>>, %arg4: memref<1x1x64xf32, #tpu.memory_space<vmem>>, %arg5: memref<1x1x64xf32, #tpu.memory_space<vmem>>) attributes {dimension_semantics = [#tpu.dimension_semantics<parallel>, #tpu.dimension_semantics<arbitrary>], iteration_bounds = array<i64: 2, 1>, scalar_prefetch = 0 : i64, scratch_operands = 0 : i64, tpu.core_type = #tpu.core_type<tc>, window_params = [{transform_indices = @transform_0, window_bounds = array<i64: 1, 16, 4>}, {pipeline_mode = #tpu.pipeline_mode<synchronous>, transform_indices = @transform_1, window_bounds = array<i64: 4, 64>}, {transform_indices = @transform_2, window_bounds = array<i64: 1, 1, 64>}, {transform_indices = @transform_3, window_bounds = array<i64: 1, 1, 64>}]} {
    %c0 = arith.constant 0 : index
    %c0_0 = arith.constant 0 : index
    %c0_1 = arith.constant 0 : index
    %0 = vector.load %arg2[%c0, %c0_0, %c0_1] : memref<1x16x4xf32, #tpu.memory_space<vmem>>, vector<1x16x4xf32>
    %1 = vector.shape_cast %0 : vector<1x16x4xf32> to vector<16x4xf32>
    %c0_2 = arith.constant 0 : index
    %c0_3 = arith.constant 0 : index
    %2 = vector.load %arg3[%c0_2, %c0_3] : memref<4x64xf32, #tpu.memory_space<vmem>>, vector<4x64xf32>
    %3 = vector.extract_strided_slice %1 {offsets = [0, 0], sizes = [16, 1], strides = [1, 1]} : vector<16x4xf32> to vector<16x1xf32>
    %4 = vector.extract_strided_slice %2 {offsets = [0, 0], sizes = [1, 64], strides = [1, 1]} : vector<4x64xf32> to vector<1x64xf32>
    %5 = vector.broadcast %3 : vector<16x1xf32> to vector<16x64xf32>
    %6 = vector.broadcast %4 : vector<1x64xf32> to vector<16x64xf32>
    %7 = arith.mulf %5, %6 : vector<16x64xf32>
    %8 = vector.extract_strided_slice %1 {offsets = [0, 1], sizes = [16, 1], strides = [1, 1]} : vector<16x4xf32> to vector<16x1xf32>
    %9 = vector.extract_strided_slice %2 {offsets = [1, 0], sizes = [1, 64], strides = [1, 1]} : vector<4x64xf32> to vector<1x64xf32>
    %10 = vector.broadcast %8 : vector<16x1xf32> to vector<16x64xf32>
    %11 = vector.broadcast %9 : vector<1x64xf32> to vector<16x64xf32>
    %12 = arith.mulf %10, %11 : vector<16x64xf32>
    %13 = arith.addf %7, %12 : vector<16x64xf32>
    %14 = vector.extract_strided_slice %1 {offsets = [0, 2], sizes = [16, 1], strides = [1, 1]} : vector<16x4xf32> to vector<16x1xf32>
    %15 = vector.extract_strided_slice %2 {offsets = [2, 0], sizes = [1, 64], strides = [1, 1]} : vector<4x64xf32> to vector<1x64xf32>
    %16 = vector.broadcast %14 : vector<16x1xf32> to vector<16x64xf32>
    %17 = vector.broadcast %15 : vector<1x64xf32> to vector<16x64xf32>
    %18 = arith.mulf %16, %17 : vector<16x64xf32>
    %19 = arith.addf %13, %18 : vector<16x64xf32>
    %20 = vector.extract_strided_slice %1 {offsets = [0, 3], sizes = [16, 1], strides = [1, 1]} : vector<16x4xf32> to vector<16x1xf32>
    %21 = vector.extract_strided_slice %2 {offsets = [3, 0], sizes = [1, 64], strides = [1, 1]} : vector<4x64xf32> to vector<1x64xf32>
    %22 = vector.broadcast %20 : vector<16x1xf32> to vector<16x64xf32>
    %23 = vector.broadcast %21 : vector<1x64xf32> to vector<16x64xf32>
    %24 = arith.mulf %22, %23 : vector<16x64xf32>
    %25 = arith.addf %19, %24 : vector<16x64xf32>
    %c0_i32 = arith.constant 0 : i32
    %26 = arith.cmpi eq, %arg1, %c0_i32 : i32
    %27 = arith.extui %26 : i1 to i32
    %c0_i32_4 = arith.constant 0 : i32
    %28 = arith.cmpi ne, %27, %c0_i32_4 : i32
    scf.if %28 {
      %cst_18 = arith.constant 0.000000e+00 : f32
      %46 = vector.broadcast %cst_18 : f32 to vector<1x64xf32>
      %c0_19 = arith.constant 0 : index
      %c0_20 = arith.constant 0 : index
      %c0_21 = arith.constant 0 : index
      %47 = vector.load %arg4[%c0_19, %c0_20, %c0_21] : memref<1x1x64xf32, #tpu.memory_space<vmem>>, vector<1x1x64xf32>
      %48 = vector.shape_cast %47 : vector<1x1x64xf32> to vector<1x64xf32>
      %49 = vector.shape_cast %46 : vector<1x64xf32> to vector<1x1x64xf32>
      tpu.vector_store %arg4[%c0_19, %c0_20, %c0_21], %49 {strides = array<i32>} : memref<1x1x64xf32, #tpu.memory_space<vmem>>, vector<1x1x64xf32>,
      %cst_22 = arith.constant 0.000000e+00 : f32
      %50 = vector.broadcast %cst_22 : f32 to vector<1x64xf32>
      %c0_23 = arith.constant 0 : index
      %c0_24 = arith.constant 0 : index
      %c0_25 = arith.constant 0 : index
      %51 = vector.load %arg5[%c0_23, %c0_24, %c0_25] : memref<1x1x64xf32, #tpu.memory_space<vmem>>, vector<1x1x64xf32>
      %52 = vector.shape_cast %51 : vector<1x1x64xf32> to vector<1x64xf32>
      %53 = vector.shape_cast %50 : vector<1x64xf32> to vector<1x1x64xf32>
      tpu.vector_store %arg5[%c0_23, %c0_24, %c0_25], %53 {strides = array<i32>} : memref<1x1x64xf32, #tpu.memory_space<vmem>>, vector<1x1x64xf32>,
    } else {
    }
    %c0_5 = arith.constant 0 : index
    %c0_6 = arith.constant 0 : index
    %c0_7 = arith.constant 0 : index
    %29 = vector.load %arg4[%c0_5, %c0_6, %c0_7] : memref<1x1x64xf32, #tpu.memory_space<vmem>>, vector<1x1x64xf32>
    %30 = vector.shape_cast %29 : vector<1x1x64xf32> to vector<1x64xf32>
    %cst = arith.constant dense<0.000000e+00> : vector<64xf32>
    %31 = vector.multi_reduction <add>, %25, %cst [0] : vector<16x64xf32> to vector<64xf32>
    %32 = vector.shape_cast %31 : vector<64xf32> to vector<1x64xf32>
    %33 = arith.addf %30, %32 : vector<1x64xf32>
    %c0_8 = arith.constant 0 : index
    %c0_9 = arith.constant 0 : index
    %c0_10 = arith.constant 0 : index
    %34 = vector.load %arg4[%c0_8, %c0_9, %c0_10] : memref<1x1x64xf32, #tpu.memory_space<vmem>>, vector<1x1x64xf32>
    %35 = vector.shape_cast %34 : vector<1x1x64xf32> to vector<1x64xf32>
    %36 = vector.shape_cast %33 : vector<1x64xf32> to vector<1x1x64xf32>
    tpu.vector_store %arg4[%c0_8, %c0_9, %c0_10], %36 {strides = array<i32>} : memref<1x1x64xf32, #tpu.memory_space<vmem>>, vector<1x1x64xf32>,
    %c0_11 = arith.constant 0 : index
    %c0_12 = arith.constant 0 : index
    %c0_13 = arith.constant 0 : index
    %37 = vector.load %arg5[%c0_11, %c0_12, %c0_13] : memref<1x1x64xf32, #tpu.memory_space<vmem>>, vector<1x1x64xf32>
    %38 = vector.shape_cast %37 : vector<1x1x64xf32> to vector<1x64xf32>
    %39 = arith.mulf %25, %25 : vector<16x64xf32>
    %cst_14 = arith.constant dense<0.000000e+00> : vector<64xf32>
    %40 = vector.multi_reduction <add>, %39, %cst_14 [0] : vector<16x64xf32> to vector<64xf32>
    %41 = vector.shape_cast %40 : vector<64xf32> to vector<1x64xf32>
    %42 = arith.addf %38, %41 : vector<1x64xf32>
    %c0_15 = arith.constant 0 : index
    %c0_16 = arith.constant 0 : index
    %c0_17 = arith.constant 0 : index
    %43 = vector.load %arg5[%c0_15, %c0_16, %c0_17] : memref<1x1x64xf32, #tpu.memory_space<vmem>>, vector<1x1x64xf32>
    %44 = vector.shape_cast %43 : vector<1x1x64xf32> to vector<1x64xf32>
    %45 = vector.shape_cast %42 : vector<1x64xf32> to vector<1x1x64xf32>
    tpu.vector_store %arg5[%c0_15, %c0_16, %c0_17], %45 {strides = array<i32>} : memref<1x1x64xf32, #tpu.memory_space<vmem>>, vector<1x1x64xf32>,
    return
  }
  func.func @transform_0(%arg0: i32, %arg1: i32) -> (i32, i32, i32) {
    %c0_i32 = arith.constant 0 : i32
    %c0_i32_0 = arith.constant 0 : i32
    return %arg0, %arg1, %c0_i32 : i32, i32, i32
  }
  func.func @transform_1(%arg0: i32, %arg1: i32) -> (i32, i32) {
    %c0_i32 = arith.constant 0 : i32
    %c0_i32_0 = arith.constant 0 : i32
    %c0_i32_1 = arith.constant 0 : i32
    return %c0_i32, %c0_i32_0 : i32, i32
  }
  func.func @transform_2(%arg0: i32, %arg1: i32) -> (i32, i32, i32) {
    %c0_i32 = arith.constant 0 : i32
    %c0_i32_0 = arith.constant 0 : i32
    %c0_i32_1 = arith.constant 0 : i32
    return %arg0, %c0_i32, %c0_i32_0 : i32, i32, i32
  }
  func.func @transform_3(%arg0: i32, %arg1: i32) -> (i32, i32, i32) {
    %c0_i32 = arith.constant 0 : i32
    %c0_i32_0 = arith.constant 0 : i32
    %c0_i32_1 = arith.constant 0 : i32
    return %arg0, %c0_i32, %c0_i32_0 : i32, i32, i32
  }
}

module attributes {stable_mosaic.version = 11 : i64} {
  func.func @_fused_pass_kernel(%arg0: i32, %arg1: i32, %arg2: memref<1x16x4xf32, #tpu.memory_space<vmem>>, %arg3: memref<4x64xf32, #tpu.memory_space<vmem>>, %arg4: memref<1x64xf32, #tpu.memory_space<vmem>>, %arg5: memref<1x64xf32, #tpu.memory_space<vmem>>, %arg6: memref<64x128xbf16, #tpu.memory_space<vmem>>, %arg7: memref<1x128xf32, #tpu.memory_space<vmem>>, %arg8: memref<1x128xf32, #tpu.memory_space<vmem>>, %arg9: memref<128x1024xbf16, #tpu.memory_space<vmem>>, %arg10: memref<1x1x1024xf32, #tpu.memory_space<vmem>>, %arg11: memref<1x1x1024xf32, #tpu.memory_space<vmem>>, %arg12: memref<1x1x1024xf32, #tpu.memory_space<vmem>>, %arg13: memref<1x1x1024xf32, #tpu.memory_space<vmem>>) attributes {dimension_semantics = [#tpu.dimension_semantics<parallel>, #tpu.dimension_semantics<arbitrary>], iteration_bounds = array<i64: 2, 1>, scalar_prefetch = 0 : i64, scratch_operands = 0 : i64, tpu.core_type = #tpu.core_type<tc>, window_params = [{transform_indices = @transform_0, window_bounds = array<i64: 1, 16, 4>}, {pipeline_mode = #tpu.pipeline_mode<synchronous>, transform_indices = @transform_1, window_bounds = array<i64: 4, 64>}, {pipeline_mode = #tpu.pipeline_mode<synchronous>, transform_indices = @transform_2, window_bounds = array<i64: 1, 64>}, {pipeline_mode = #tpu.pipeline_mode<synchronous>, transform_indices = @transform_3, window_bounds = array<i64: 1, 64>}, {pipeline_mode = #tpu.pipeline_mode<synchronous>, transform_indices = @transform_4, window_bounds = array<i64: 64, 128>}, {pipeline_mode = #tpu.pipeline_mode<synchronous>, transform_indices = @transform_5, window_bounds = array<i64: 1, 128>}, {pipeline_mode = #tpu.pipeline_mode<synchronous>, transform_indices = @transform_6, window_bounds = array<i64: 1, 128>}, {pipeline_mode = #tpu.pipeline_mode<synchronous>, transform_indices = @transform_7, window_bounds = array<i64: 128, 1024>}, {transform_indices = @transform_8, window_bounds = array<i64: 1, 1, 1024>}, {transform_indices = @transform_9, window_bounds = array<i64: 1, 1, 1024>}, {transform_indices = @transform_10, window_bounds = array<i64: 1, 1, 1024>}, {transform_indices = @transform_11, window_bounds = array<i64: 1, 1, 1024>}]} {
    %c0 = arith.constant 0 : index
    %c0_0 = arith.constant 0 : index
    %c0_1 = arith.constant 0 : index
    %0 = vector.load %arg2[%c0, %c0_0, %c0_1] : memref<1x16x4xf32, #tpu.memory_space<vmem>>, vector<1x16x4xf32>
    %1 = vector.shape_cast %0 : vector<1x16x4xf32> to vector<16x4xf32>
    %c0_2 = arith.constant 0 : index
    %c0_3 = arith.constant 0 : index
    %2 = vector.load %arg3[%c0_2, %c0_3] : memref<4x64xf32, #tpu.memory_space<vmem>>, vector<4x64xf32>
    %3 = vector.extract_strided_slice %1 {offsets = [0, 0], sizes = [16, 1], strides = [1, 1]} : vector<16x4xf32> to vector<16x1xf32>
    %4 = vector.extract_strided_slice %2 {offsets = [0, 0], sizes = [1, 64], strides = [1, 1]} : vector<4x64xf32> to vector<1x64xf32>
    %5 = vector.broadcast %3 : vector<16x1xf32> to vector<16x64xf32>
    %6 = vector.broadcast %4 : vector<1x64xf32> to vector<16x64xf32>
    %7 = arith.mulf %5, %6 : vector<16x64xf32>
    %8 = vector.extract_strided_slice %1 {offsets = [0, 1], sizes = [16, 1], strides = [1, 1]} : vector<16x4xf32> to vector<16x1xf32>
    %9 = vector.extract_strided_slice %2 {offsets = [1, 0], sizes = [1, 64], strides = [1, 1]} : vector<4x64xf32> to vector<1x64xf32>
    %10 = vector.broadcast %8 : vector<16x1xf32> to vector<16x64xf32>
    %11 = vector.broadcast %9 : vector<1x64xf32> to vector<16x64xf32>
    %12 = arith.mulf %10, %11 : vector<16x64xf32>
    %13 = arith.addf %7, %12 : vector<16x64xf32>
    %14 = vector.extract_strided_slice %1 {offsets = [0, 2], sizes = [16, 1], strides = [1, 1]} : vector<16x4xf32> to vector<16x1xf32>
    %15 = vector.extract_strided_slice %2 {offsets = [2, 0], sizes = [1, 64], strides = [1, 1]} : vector<4x64xf32> to vector<1x64xf32>
    %16 = vector.broadcast %14 : vector<16x1xf32> to vector<16x64xf32>
    %17 = vector.broadcast %15 : vector<1x64xf32> to vector<16x64xf32>
    %18 = arith.mulf %16, %17 : vector<16x64xf32>
    %19 = arith.addf %13, %18 : vector<16x64xf32>
    %20 = vector.extract_strided_slice %1 {offsets = [0, 3], sizes = [16, 1], strides = [1, 1]} : vector<16x4xf32> to vector<16x1xf32>
    %21 = vector.extract_strided_slice %2 {offsets = [3, 0], sizes = [1, 64], strides = [1, 1]} : vector<4x64xf32> to vector<1x64xf32>
    %22 = vector.broadcast %20 : vector<16x1xf32> to vector<16x64xf32>
    %23 = vector.broadcast %21 : vector<1x64xf32> to vector<16x64xf32>
    %24 = arith.mulf %22, %23 : vector<16x64xf32>
    %25 = arith.addf %19, %24 : vector<16x64xf32>
    %c0_4 = arith.constant 0 : index
    %c0_5 = arith.constant 0 : index
    %26 = vector.load %arg4[%c0_4, %c0_5] : memref<1x64xf32, #tpu.memory_space<vmem>>, vector<1x64xf32>
    %27 = vector.broadcast %26 : vector<1x64xf32> to vector<16x64xf32>
    %28 = arith.mulf %25, %27 : vector<16x64xf32>
    %c0_6 = arith.constant 0 : index
    %c0_7 = arith.constant 0 : index
    %29 = vector.load %arg5[%c0_6, %c0_7] : memref<1x64xf32, #tpu.memory_space<vmem>>, vector<1x64xf32>
    %30 = vector.broadcast %29 : vector<1x64xf32> to vector<16x64xf32>
    %31 = arith.addf %28, %30 : vector<16x64xf32>
    %cst = arith.constant 0.000000e+00 : f32
    %32 = vector.broadcast %cst : f32 to vector<16x64xf32>
    %33 = arith.maximumf %31, %32 : vector<16x64xf32>
    %34 = arith.truncf %33 : vector<16x64xf32> to vector<16x64xbf16>
    %c0_8 = arith.constant 0 : index
    %c0_9 = arith.constant 0 : index
    %35 = vector.load %arg6[%c0_8, %c0_9] : memref<64x128xbf16, #tpu.memory_space<vmem>>, vector<64x128xbf16>
    %cst_10 = arith.constant dense<0.000000e+00> : vector<16x128xf32>
    %36 = tpu.matmul %34, %35, %cst_10 {dimension_numbers = #tpu.dot_dimension_numbers<[1], [0], [0], [1], [0, 0, 1, 1], [], []>} : vector<16x64xbf16>, vector<64x128xbf16>, vector<16x128xf32> -> vector<16x128xf32>
    %c0_11 = arith.constant 0 : index
    %c0_12 = arith.constant 0 : index
    %37 = vector.load %arg7[%c0_11, %c0_12] : memref<1x128xf32, #tpu.memory_space<vmem>>, vector<1x128xf32>
    %38 = vector.broadcast %37 : vector<1x128xf32> to vector<16x128xf32>
    %39 = arith.mulf %36, %38 : vector<16x128xf32>
    %c0_13 = arith.constant 0 : index
    %c0_14 = arith.constant 0 : index
    %40 = vector.load %arg8[%c0_13, %c0_14] : memref<1x128xf32, #tpu.memory_space<vmem>>, vector<1x128xf32>
    %41 = vector.broadcast %40 : vector<1x128xf32> to vector<16x128xf32>
    %42 = arith.addf %39, %41 : vector<16x128xf32>
    %cst_15 = arith.constant 0.000000e+00 : f32
    %43 = vector.broadcast %cst_15 : f32 to vector<16x128xf32>
    %44 = arith.maximumf %42, %43 : vector<16x128xf32>
    %45 = arith.truncf %44 : vector<16x128xf32> to vector<16x128xbf16>
    %c0_16 = arith.constant 0 : index
    %c0_17 = arith.constant 0 : index
    %46 = vector.load %arg9[%c0_16, %c0_17] : memref<128x1024xbf16, #tpu.memory_space<vmem>>, vector<128x1024xbf16>
    %cst_18 = arith.constant dense<0.000000e+00> : vector<16x1024xf32>
    %47 = tpu.matmul %45, %46, %cst_18 {dimension_numbers = #tpu.dot_dimension_numbers<[1], [0], [0], [1], [0, 0, 1, 1], [], []>} : vector<16x128xbf16>, vector<128x1024xbf16>, vector<16x1024xf32> -> vector<16x1024xf32>
    %c0_i32 = arith.constant 0 : i32
    %48 = arith.cmpi eq, %arg1, %c0_i32 : i32
    %49 = arith.extui %48 : i1 to i32
    %c0_i32_19 = arith.constant 0 : i32
    %50 = arith.cmpi ne, %49, %c0_i32_19 : i32
    scf.if %50 {
      %cst_50 = arith.constant 0.000000e+00 : f32
      %87 = vector.broadcast %cst_50 : f32 to vector<1x1024xf32>
      %c0_51 = arith.constant 0 : index
      %c0_52 = arith.constant 0 : index
      %c0_53 = arith.constant 0 : index
      %88 = vector.load %arg10[%c0_51, %c0_52, %c0_53] : memref<1x1x1024xf32, #tpu.memory_space<vmem>>, vector<1x1x1024xf32>
      %89 = vector.shape_cast %88 : vector<1x1x1024xf32> to vector<1x1024xf32>
      %90 = vector.shape_cast %87 : vector<1x1024xf32> to vector<1x1x1024xf32>
      tpu.vector_store %arg10[%c0_51, %c0_52, %c0_53], %90 {strides = array<i32>} : memref<1x1x1024xf32, #tpu.memory_space<vmem>>, vector<1x1x1024xf32>,
      %cst_54 = arith.constant 0.000000e+00 : f32
      %91 = vector.broadcast %cst_54 : f32 to vector<1x1024xf32>
      %c0_55 = arith.constant 0 : index
      %c0_56 = arith.constant 0 : index
      %c0_57 = arith.constant 0 : index
      %92 = vector.load %arg11[%c0_55, %c0_56, %c0_57] : memref<1x1x1024xf32, #tpu.memory_space<vmem>>, vector<1x1x1024xf32>
      %93 = vector.shape_cast %92 : vector<1x1x1024xf32> to vector<1x1024xf32>
      %94 = vector.shape_cast %91 : vector<1x1024xf32> to vector<1x1x1024xf32>
      tpu.vector_store %arg11[%c0_55, %c0_56, %c0_57], %94 {strides = array<i32>} : memref<1x1x1024xf32, #tpu.memory_space<vmem>>, vector<1x1x1024xf32>,
    } else {
    }
    %c0_20 = arith.constant 0 : index
    %c0_21 = arith.constant 0 : index
    %c0_22 = arith.constant 0 : index
    %51 = vector.load %arg10[%c0_20, %c0_21, %c0_22] : memref<1x1x1024xf32, #tpu.memory_space<vmem>>, vector<1x1x1024xf32>
    %52 = vector.shape_cast %51 : vector<1x1x1024xf32> to vector<1x1024xf32>
    %cst_23 = arith.constant dense<0.000000e+00> : vector<1024xf32>
    %53 = vector.multi_reduction <add>, %47, %cst_23 [0] : vector<16x1024xf32> to vector<1024xf32>
    %54 = vector.shape_cast %53 : vector<1024xf32> to vector<1x1024xf32>
    %55 = arith.addf %52, %54 : vector<1x1024xf32>
    %c0_24 = arith.constant 0 : index
    %c0_25 = arith.constant 0 : index
    %c0_26 = arith.constant 0 : index
    %56 = vector.load %arg10[%c0_24, %c0_25, %c0_26] : memref<1x1x1024xf32, #tpu.memory_space<vmem>>, vector<1x1x1024xf32>
    %57 = vector.shape_cast %56 : vector<1x1x1024xf32> to vector<1x1024xf32>
    %58 = vector.shape_cast %55 : vector<1x1024xf32> to vector<1x1x1024xf32>
    tpu.vector_store %arg10[%c0_24, %c0_25, %c0_26], %58 {strides = array<i32>} : memref<1x1x1024xf32, #tpu.memory_space<vmem>>, vector<1x1x1024xf32>,
    %c0_27 = arith.constant 0 : index
    %c0_28 = arith.constant 0 : index
    %c0_29 = arith.constant 0 : index
    %59 = vector.load %arg11[%c0_27, %c0_28, %c0_29] : memref<1x1x1024xf32, #tpu.memory_space<vmem>>, vector<1x1x1024xf32>
    %60 = vector.shape_cast %59 : vector<1x1x1024xf32> to vector<1x1024xf32>
    %61 = arith.mulf %47, %47 : vector<16x1024xf32>
    %cst_30 = arith.constant dense<0.000000e+00> : vector<1024xf32>
    %62 = vector.multi_reduction <add>, %61, %cst_30 [0] : vector<16x1024xf32> to vector<1024xf32>
    %63 = vector.shape_cast %62 : vector<1024xf32> to vector<1x1024xf32>
    %64 = arith.addf %60, %63 : vector<1x1024xf32>
    %c0_31 = arith.constant 0 : index
    %c0_32 = arith.constant 0 : index
    %c0_33 = arith.constant 0 : index
    %65 = vector.load %arg11[%c0_31, %c0_32, %c0_33] : memref<1x1x1024xf32, #tpu.memory_space<vmem>>, vector<1x1x1024xf32>
    %66 = vector.shape_cast %65 : vector<1x1x1024xf32> to vector<1x1024xf32>
    %67 = vector.shape_cast %64 : vector<1x1024xf32> to vector<1x1x1024xf32>
    tpu.vector_store %arg11[%c0_31, %c0_32, %c0_33], %67 {strides = array<i32>} : memref<1x1x1024xf32, #tpu.memory_space<vmem>>, vector<1x1x1024xf32>,
    %c0_i32_34 = arith.constant 0 : i32
    %68 = arith.cmpi eq, %arg1, %c0_i32_34 : i32
    %69 = arith.extui %68 : i1 to i32
    %c0_i32_35 = arith.constant 0 : i32
    %70 = arith.cmpi ne, %69, %c0_i32_35 : i32
    scf.if %70 {
      %cst_50 = arith.constant 0xFF800000 : f32
      %87 = vector.broadcast %cst_50 : f32 to vector<1x1024xf32>
      %c0_51 = arith.constant 0 : index
      %c0_52 = arith.constant 0 : index
      %c0_53 = arith.constant 0 : index
      %88 = vector.load %arg12[%c0_51, %c0_52, %c0_53] : memref<1x1x1024xf32, #tpu.memory_space<vmem>>, vector<1x1x1024xf32>
      %89 = vector.shape_cast %88 : vector<1x1x1024xf32> to vector<1x1024xf32>
      %90 = vector.shape_cast %87 : vector<1x1024xf32> to vector<1x1x1024xf32>
      tpu.vector_store %arg12[%c0_51, %c0_52, %c0_53], %90 {strides = array<i32>} : memref<1x1x1024xf32, #tpu.memory_space<vmem>>, vector<1x1x1024xf32>,
      %cst_54 = arith.constant 0x7F800000 : f32
      %91 = vector.broadcast %cst_54 : f32 to vector<1x1024xf32>
      %c0_55 = arith.constant 0 : index
      %c0_56 = arith.constant 0 : index
      %c0_57 = arith.constant 0 : index
      %92 = vector.load %arg13[%c0_55, %c0_56, %c0_57] : memref<1x1x1024xf32, #tpu.memory_space<vmem>>, vector<1x1x1024xf32>
      %93 = vector.shape_cast %92 : vector<1x1x1024xf32> to vector<1x1024xf32>
      %94 = vector.shape_cast %91 : vector<1x1024xf32> to vector<1x1x1024xf32>
      tpu.vector_store %arg13[%c0_55, %c0_56, %c0_57], %94 {strides = array<i32>} : memref<1x1x1024xf32, #tpu.memory_space<vmem>>, vector<1x1x1024xf32>,
    } else {
    }
    %c0_36 = arith.constant 0 : index
    %c0_37 = arith.constant 0 : index
    %c0_38 = arith.constant 0 : index
    %71 = vector.load %arg12[%c0_36, %c0_37, %c0_38] : memref<1x1x1024xf32, #tpu.memory_space<vmem>>, vector<1x1x1024xf32>
    %72 = vector.shape_cast %71 : vector<1x1x1024xf32> to vector<1x1024xf32>
    %cst_39 = arith.constant dense<0xFF800000> : vector<1024xf32>
    %73 = vector.multi_reduction <maximumf>, %47, %cst_39 [0] : vector<16x1024xf32> to vector<1024xf32>
    %74 = vector.shape_cast %73 : vector<1024xf32> to vector<1x1024xf32>
    %75 = arith.maximumf %72, %74 : vector<1x1024xf32>
    %c0_40 = arith.constant 0 : index
    %c0_41 = arith.constant 0 : index
    %c0_42 = arith.constant 0 : index
    %76 = vector.load %arg12[%c0_40, %c0_41, %c0_42] : memref<1x1x1024xf32, #tpu.memory_space<vmem>>, vector<1x1x1024xf32>
    %77 = vector.shape_cast %76 : vector<1x1x1024xf32> to vector<1x1024xf32>
    %78 = vector.shape_cast %75 : vector<1x1024xf32> to vector<1x1x1024xf32>
    tpu.vector_store %arg12[%c0_40, %c0_41, %c0_42], %78 {strides = array<i32>} : memref<1x1x1024xf32, #tpu.memory_space<vmem>>, vector<1x1x1024xf32>,
    %c0_43 = arith.constant 0 : index
    %c0_44 = arith.constant 0 : index
    %c0_45 = arith.constant 0 : index
    %79 = vector.load %arg13[%c0_43, %c0_44, %c0_45] : memref<1x1x1024xf32, #tpu.memory_space<vmem>>, vector<1x1x1024xf32>
    %80 = vector.shape_cast %79 : vector<1x1x1024xf32> to vector<1x1024xf32>
    %cst_46 = arith.constant dense<0x7F800000> : vector<1024xf32>
    %81 = vector.multi_reduction <minimumf>, %47, %cst_46 [0] : vector<16x1024xf32> to vector<1024xf32>
    %82 = vector.shape_cast %81 : vector<1024xf32> to vector<1x1024xf32>
    %83 = arith.minimumf %80, %82 : vector<1x1024xf32>
    %c0_47 = arith.constant 0 : index
    %c0_48 = arith.constant 0 : index
    %c0_49 = arith.constant 0 : index
    %84 = vector.load %arg13[%c0_47, %c0_48, %c0_49] : memref<1x1x1024xf32, #tpu.memory_space<vmem>>, vector<1x1x1024xf32>
    %85 = vector.shape_cast %84 : vector<1x1x1024xf32> to vector<1x1024xf32>
    %86 = vector.shape_cast %83 : vector<1x1024xf32> to vector<1x1x1024xf32>
    tpu.vector_store %arg13[%c0_47, %c0_48, %c0_49], %86 {strides = array<i32>} : memref<1x1x1024xf32, #tpu.memory_space<vmem>>, vector<1x1x1024xf32>,
    return
  }
  func.func @transform_0(%arg0: i32, %arg1: i32) -> (i32, i32, i32) {
    %c0_i32 = arith.constant 0 : i32
    %c0_i32_0 = arith.constant 0 : i32
    return %arg0, %arg1, %c0_i32 : i32, i32, i32
  }
  func.func @transform_1(%arg0: i32, %arg1: i32) -> (i32, i32) {
    %c0_i32 = arith.constant 0 : i32
    %c0_i32_0 = arith.constant 0 : i32
    %c0_i32_1 = arith.constant 0 : i32
    return %c0_i32, %c0_i32_0 : i32, i32
  }
  func.func @transform_2(%arg0: i32, %arg1: i32) -> (i32, i32) {
    %c0_i32 = arith.constant 0 : i32
    %c0_i32_0 = arith.constant 0 : i32
    %c0_i32_1 = arith.constant 0 : i32
    return %c0_i32, %c0_i32_0 : i32, i32
  }
  func.func @transform_3(%arg0: i32, %arg1: i32) -> (i32, i32) {
    %c0_i32 = arith.constant 0 : i32
    %c0_i32_0 = arith.constant 0 : i32
    %c0_i32_1 = arith.constant 0 : i32
    return %c0_i32, %c0_i32_0 : i32, i32
  }
  func.func @transform_4(%arg0: i32, %arg1: i32) -> (i32, i32) {
    %c0_i32 = arith.constant 0 : i32
    %c0_i32_0 = arith.constant 0 : i32
    %c0_i32_1 = arith.constant 0 : i32
    return %c0_i32, %c0_i32_0 : i32, i32
  }
  func.func @transform_5(%arg0: i32, %arg1: i32) -> (i32, i32) {
    %c0_i32 = arith.constant 0 : i32
    %c0_i32_0 = arith.constant 0 : i32
    %c0_i32_1 = arith.constant 0 : i32
    return %c0_i32, %c0_i32_0 : i32, i32
  }
  func.func @transform_6(%arg0: i32, %arg1: i32) -> (i32, i32) {
    %c0_i32 = arith.constant 0 : i32
    %c0_i32_0 = arith.constant 0 : i32
    %c0_i32_1 = arith.constant 0 : i32
    return %c0_i32, %c0_i32_0 : i32, i32
  }
  func.func @transform_7(%arg0: i32, %arg1: i32) -> (i32, i32) {
    %c0_i32 = arith.constant 0 : i32
    %c0_i32_0 = arith.constant 0 : i32
    %c0_i32_1 = arith.constant 0 : i32
    return %c0_i32, %c0_i32_0 : i32, i32
  }
  func.func @transform_8(%arg0: i32, %arg1: i32) -> (i32, i32, i32) {
    %c0_i32 = arith.constant 0 : i32
    %c0_i32_0 = arith.constant 0 : i32
    %c0_i32_1 = arith.constant 0 : i32
    return %arg0, %c0_i32, %c0_i32_0 : i32, i32, i32
  }
  func.func @transform_9(%arg0: i32, %arg1: i32) -> (i32, i32, i32) {
    %c0_i32 = arith.constant 0 : i32
    %c0_i32_0 = arith.constant 0 : i32
    %c0_i32_1 = arith.constant 0 : i32
    return %arg0, %c0_i32, %c0_i32_0 : i32, i32, i32
  }
  func.func @transform_10(%arg0: i32, %arg1: i32) -> (i32, i32, i32) {
    %c0_i32 = arith.constant 0 : i32
    %c0_i32_0 = arith.constant 0 : i32
    %c0_i32_1 = arith.constant 0 : i32
    return %arg0, %c0_i32, %c0_i32_0 : i32, i32, i32
  }
  func.func @transform_11(%arg0: i32, %arg1: i32) -> (i32, i32, i32) {
    %c0_i32 = arith.constant 0 : i32
    %c0_i32_0 = arith.constant 0 : i32
    %c0_i32_1 = arith.constant 0 : i32
    return %arg0, %c0_i32, %c0_i32_0 : i32, i32, i32
  }
}

module attributes {stable_mosaic.version = 11 : i64} {
  func.func @_fc_head_kernel(%arg0: memref<2x1024xf32, #tpu.memory_space<vmem>>, %arg1: memref<1024x512xbf16, #tpu.memory_space<vmem>>, %arg2: memref<1x512xf32, #tpu.memory_space<vmem>>, %arg3: memref<1x512xf32, #tpu.memory_space<vmem>>, %arg4: memref<512x256xbf16, #tpu.memory_space<vmem>>, %arg5: memref<1x256xf32, #tpu.memory_space<vmem>>, %arg6: memref<1x256xf32, #tpu.memory_space<vmem>>, %arg7: memref<256x128xbf16, #tpu.memory_space<vmem>>, %arg8: memref<1x128xf32, #tpu.memory_space<vmem>>, %arg9: memref<2x128xf32, #tpu.memory_space<vmem>>) attributes {dimension_semantics = [], scalar_prefetch = 0 : i64, scratch_operands = 0 : i64, tpu.core_type = #tpu.core_type<tc>} {
    %c0 = arith.constant 0 : index
    %c0_0 = arith.constant 0 : index
    %0 = vector.load %arg0[%c0, %c0_0] : memref<2x1024xf32, #tpu.memory_space<vmem>>, vector<2x1024xf32>
    %1 = arith.truncf %0 : vector<2x1024xf32> to vector<2x1024xbf16>
    %c0_1 = arith.constant 0 : index
    %c0_2 = arith.constant 0 : index
    %2 = vector.load %arg1[%c0_1, %c0_2] : memref<1024x512xbf16, #tpu.memory_space<vmem>>, vector<1024x512xbf16>
    %cst = arith.constant dense<0.000000e+00> : vector<2x512xf32>
    %3 = tpu.matmul %1, %2, %cst {dimension_numbers = #tpu.dot_dimension_numbers<[1], [0], [0], [1], [0, 0, 1, 1], [], []>} : vector<2x1024xbf16>, vector<1024x512xbf16>, vector<2x512xf32> -> vector<2x512xf32>
    %c0_3 = arith.constant 0 : index
    %c0_4 = arith.constant 0 : index
    %4 = vector.load %arg2[%c0_3, %c0_4] : memref<1x512xf32, #tpu.memory_space<vmem>>, vector<1x512xf32>
    %c0_5 = arith.constant 0 : index
    %c0_6 = arith.constant 0 : index
    %5 = vector.load %arg3[%c0_5, %c0_6] : memref<1x512xf32, #tpu.memory_space<vmem>>, vector<1x512xf32>
    %cst_7 = arith.constant dense<0.000000e+00> : vector<512xf32>
    %6 = vector.multi_reduction <add>, %3, %cst_7 [0] : vector<2x512xf32> to vector<512xf32>
    %7 = vector.shape_cast %6 : vector<512xf32> to vector<1x512xf32>
    %cst_8 = arith.constant 2.000000e+00 : f32
    %8 = vector.broadcast %cst_8 : f32 to vector<1x512xf32>
    %9 = arith.divf %7, %8 : vector<1x512xf32>
    %10 = arith.mulf %3, %3 : vector<2x512xf32>
    %cst_9 = arith.constant dense<0.000000e+00> : vector<512xf32>
    %11 = vector.multi_reduction <add>, %10, %cst_9 [0] : vector<2x512xf32> to vector<512xf32>
    %12 = vector.shape_cast %11 : vector<512xf32> to vector<1x512xf32>
    %cst_10 = arith.constant 2.000000e+00 : f32
    %13 = vector.broadcast %cst_10 : f32 to vector<1x512xf32>
    %14 = arith.divf %12, %13 : vector<1x512xf32>
    %15 = arith.mulf %9, %9 : vector<1x512xf32>
    %16 = arith.subf %14, %15 : vector<1x512xf32>
    %cst_11 = arith.constant 0.000000e+00 : f32
    %17 = vector.broadcast %cst_11 : f32 to vector<1x512xf32>
    %18 = arith.maximumf %16, %17 : vector<1x512xf32>
    %19 = vector.broadcast %9 : vector<1x512xf32> to vector<2x512xf32>
    %20 = arith.subf %3, %19 : vector<2x512xf32>
    %cst_12 = arith.constant 9.99999974E-6 : f32
    %21 = vector.broadcast %cst_12 : f32 to vector<1x512xf32>
    %22 = arith.addf %18, %21 : vector<1x512xf32>
    %23 = math.rsqrt %22 : vector<1x512xf32>
    %24 = vector.broadcast %23 : vector<1x512xf32> to vector<2x512xf32>
    %25 = arith.mulf %20, %24 : vector<2x512xf32>
    %26 = vector.broadcast %4 : vector<1x512xf32> to vector<2x512xf32>
    %27 = arith.mulf %25, %26 : vector<2x512xf32>
    %28 = vector.broadcast %5 : vector<1x512xf32> to vector<2x512xf32>
    %29 = arith.addf %27, %28 : vector<2x512xf32>
    %cst_13 = arith.constant 0.000000e+00 : f32
    %30 = vector.broadcast %cst_13 : f32 to vector<2x512xf32>
    %31 = arith.maximumf %29, %30 : vector<2x512xf32>
    %32 = arith.truncf %31 : vector<2x512xf32> to vector<2x512xbf16>
    %c0_14 = arith.constant 0 : index
    %c0_15 = arith.constant 0 : index
    %33 = vector.load %arg4[%c0_14, %c0_15] : memref<512x256xbf16, #tpu.memory_space<vmem>>, vector<512x256xbf16>
    %cst_16 = arith.constant dense<0.000000e+00> : vector<2x256xf32>
    %34 = tpu.matmul %32, %33, %cst_16 {dimension_numbers = #tpu.dot_dimension_numbers<[1], [0], [0], [1], [0, 0, 1, 1], [], []>} : vector<2x512xbf16>, vector<512x256xbf16>, vector<2x256xf32> -> vector<2x256xf32>
    %c0_17 = arith.constant 0 : index
    %c0_18 = arith.constant 0 : index
    %35 = vector.load %arg5[%c0_17, %c0_18] : memref<1x256xf32, #tpu.memory_space<vmem>>, vector<1x256xf32>
    %c0_19 = arith.constant 0 : index
    %c0_20 = arith.constant 0 : index
    %36 = vector.load %arg6[%c0_19, %c0_20] : memref<1x256xf32, #tpu.memory_space<vmem>>, vector<1x256xf32>
    %cst_21 = arith.constant dense<0.000000e+00> : vector<256xf32>
    %37 = vector.multi_reduction <add>, %34, %cst_21 [0] : vector<2x256xf32> to vector<256xf32>
    %38 = vector.shape_cast %37 : vector<256xf32> to vector<1x256xf32>
    %cst_22 = arith.constant 2.000000e+00 : f32
    %39 = vector.broadcast %cst_22 : f32 to vector<1x256xf32>
    %40 = arith.divf %38, %39 : vector<1x256xf32>
    %41 = arith.mulf %34, %34 : vector<2x256xf32>
    %cst_23 = arith.constant dense<0.000000e+00> : vector<256xf32>
    %42 = vector.multi_reduction <add>, %41, %cst_23 [0] : vector<2x256xf32> to vector<256xf32>
    %43 = vector.shape_cast %42 : vector<256xf32> to vector<1x256xf32>
    %cst_24 = arith.constant 2.000000e+00 : f32
    %44 = vector.broadcast %cst_24 : f32 to vector<1x256xf32>
    %45 = arith.divf %43, %44 : vector<1x256xf32>
    %46 = arith.mulf %40, %40 : vector<1x256xf32>
    %47 = arith.subf %45, %46 : vector<1x256xf32>
    %cst_25 = arith.constant 0.000000e+00 : f32
    %48 = vector.broadcast %cst_25 : f32 to vector<1x256xf32>
    %49 = arith.maximumf %47, %48 : vector<1x256xf32>
    %50 = vector.broadcast %40 : vector<1x256xf32> to vector<2x256xf32>
    %51 = arith.subf %34, %50 : vector<2x256xf32>
    %cst_26 = arith.constant 9.99999974E-6 : f32
    %52 = vector.broadcast %cst_26 : f32 to vector<1x256xf32>
    %53 = arith.addf %49, %52 : vector<1x256xf32>
    %54 = math.rsqrt %53 : vector<1x256xf32>
    %55 = vector.broadcast %54 : vector<1x256xf32> to vector<2x256xf32>
    %56 = arith.mulf %51, %55 : vector<2x256xf32>
    %57 = vector.broadcast %35 : vector<1x256xf32> to vector<2x256xf32>
    %58 = arith.mulf %56, %57 : vector<2x256xf32>
    %59 = vector.broadcast %36 : vector<1x256xf32> to vector<2x256xf32>
    %60 = arith.addf %58, %59 : vector<2x256xf32>
    %cst_27 = arith.constant 0.000000e+00 : f32
    %61 = vector.broadcast %cst_27 : f32 to vector<2x256xf32>
    %62 = arith.maximumf %60, %61 : vector<2x256xf32>
    %63 = arith.truncf %62 : vector<2x256xf32> to vector<2x256xbf16>
    %c0_28 = arith.constant 0 : index
    %c0_29 = arith.constant 0 : index
    %64 = vector.load %arg7[%c0_28, %c0_29] : memref<256x128xbf16, #tpu.memory_space<vmem>>, vector<256x128xbf16>
    %cst_30 = arith.constant dense<0.000000e+00> : vector<2x128xf32>
    %65 = tpu.matmul %63, %64, %cst_30 {dimension_numbers = #tpu.dot_dimension_numbers<[1], [0], [0], [1], [0, 0, 1, 1], [], []>} : vector<2x256xbf16>, vector<256x128xbf16>, vector<2x128xf32> -> vector<2x128xf32>
    %c0_31 = arith.constant 0 : index
    %c0_32 = arith.constant 0 : index
    %66 = vector.load %arg8[%c0_31, %c0_32] : memref<1x128xf32, #tpu.memory_space<vmem>>, vector<1x128xf32>
    %67 = vector.broadcast %66 : vector<1x128xf32> to vector<2x128xf32>
    %68 = arith.addf %65, %67 : vector<2x128xf32>
    %c0_33 = arith.constant 0 : index
    %c0_34 = arith.constant 0 : index
    %69 = vector.load %arg9[%c0_33, %c0_34] : memref<2x128xf32, #tpu.memory_space<vmem>>, vector<2x128xf32>
    tpu.vector_store %arg9[%c0_33, %c0_34], %68 {strides = array<i32>} : memref<2x128xf32, #tpu.memory_space<vmem>>, vector<2x128xf32>,
    return
  }
}

</mosaic_0001>

<llo_original>
// kernel: feature_transform_net.4
$region0: #{feature_transform_net.4}
  #allocation0 [shape = 'u32[]', space=smem, size = 0x4, offset = 0x4, fixed_abs, tag = 'smem constant byte address 0x4 - core index']
  #allocation1 [shape = 'u32[72,128]{1,0:T(1,128)}', space=vmem, size = 0x9000, scoped, tag = 'internal scratch']
  %s0 = inlined_call_operand.vmem [shape: f32[2,16,4], index: 0, kind: input, shape index: {}]
  %s1 = inlined_call_operand.hbm [shape: f32[4,64], index: 1, kind: input, shape index: {}]
  %s2 = inlined_call_operand.vmem [shape: f32[2,1,64], index: 2, kind: output, shape index: {0}]
  %s3 = inlined_call_operand.vmem [shape: f32[2,1,64], index: 3, kind: output, shape index: {1}]
  %4 = xla_tuple %s2, %s3
  %s5 = sld [smem:[#allocation0]]
  $region57: #{feature_transform_net.4} parent=0
    _
  %s7 = ssub.s32 1, %s5
  %s8 = scalar_select 0, %s7, %s5
  $region1: #{feature_transform_net.4} parent=0
    #allocation2 [shape = 'u8[2048]{0}', space=vmem, size = 0x800, scoped, tag = 'input window, operand 1, single buffered']
    #allocation3 [shape = 's32[2]{0}', space=sflag, size = 0x8, scoped, tag = 'scoped memory for feature_transform_net.4']
    %9 = vsyncpa [#allocation3], 0
    loop: start=0, step=1, limit=4
    $region2: #{feature_transform_net.4} parent=1 // loop_pre_header
      _
    $region3: #{feature_transform_net.4} parent=1 // loop_header
      %s11 = sphi 0, %s15
      %p12 = scmp.ge.s32.totalorder %s11, 4
      %s18 = sphi 0, %s30
      %s19 = sphi 0, %s26
      %s20 = sphi 0, %s18
      %s21 = sphi 0, %s19
      %s22 = sphi 0, %s20
      %s23 = sphi 0, %s21
      %s35 = sphi 0, %s37
      %s38 = sphi 0, %s35
      %s39 = sphi 0, %s38
      %s55 = sphi 0, %s39
      %s59 = sphi 0, %s59
      %s61 = sphi 0, %s59
      %s62 = sphi 0, %s61
      %s76 = sphi 0, %s62
      %s82 = sphi 0, %s84
      %s85 = sphi 0, %s82
      %s86 = sphi 0, %s85
      %s102 = sphi 0, %s86
      %s108 = sphi 0, %s110
      %s111 = sphi 0, %s108
      %s112 = sphi 0, %s111
      %s128 = sphi 0, %s112
    $region4: #{feature_transform_net.4} parent=1 // loop_header_branch
      %14 = sbr.rel (%p12) target = $region8
    $region5: #{feature_transform_net.4} parent=1 // loop_body
      %s16 = ssub.s32 %s11, 1
      %s17 = ssub.s32 %s11, 2
      %s24 = sadd.s32 1, %s19
      %p25 = scmp.ge.s32.totalorder %s24, 1
      %s26 = scalar_select %p25, 0, %s24
      %s27 = sadd.s32 1, %s18
      %s28 = scalar_select %p25, %s27, %s18
      %p29 = scmp.ge.s32.totalorder %s28, 2
      %s30 = scalar_select %p29, 0, %s28
      %s31 = ssub.s32 %s18, %s30
      %s32 = ssub.s32 %s19, %s26
      %s33 = sor.u32 %s31, %s32
      %p34 = scmp.eq.s32.totalorder %s33, 0
      %s36 = sadd.s32 %s35, 1
      %s37 = scalar_select %p34, %s35, %s36
      %p40 = pneg %p34
      %p41 = scmp.eq.s32.totalorder %s11, 1
      %p42 = por %p40, %p41
      %p43 = scmp.ne.s32.totalorder %s35, %s38
      %p44 = scmp.eq.s32.totalorder %s11, 0
      %p45 = por %p43, %p44
      %p46 = scmp.ne.s32.totalorder %s35, %s38
      %p47 = scmp.eq.s32.totalorder %s16, 1
      %p48 = por %p46, %p47
      %p49 = scmp.ne.s32.totalorder %s38, %s39
      %p50 = scmp.eq.s32.totalorder %s16, 0
      %p51 = por %p49, %p50
      %p52 = scmp.ne.s32.totalorder %s38, %s39
      %p53 = scmp.eq.s32.totalorder %s17, 1
      %p54 = por %p52, %p53
      %p56 = scmp.ne.s32.totalorder %s39, %s55
      %p57 = scmp.eq.s32.totalorder %s17, 0
      %p58 = por %p56, %p57
      %s60 = sadd.s32 %s59, 1
      %p63 = scmp.eq.s32.totalorder %s11, 1
      %p64 = scmp.ne.s32.totalorder %s59, %s61
      %p65 = scmp.eq.s32.totalorder %s11, 0
      %p66 = por %p64, %p65
      %p67 = scmp.ne.s32.totalorder %s59, %s61
      %p68 = scmp.eq.s32.totalorder %s16, 1
      %p69 = por %p67, %p68
      %p70 = scmp.ne.s32.totalorder %s61, %s62
      %p71 = scmp.eq.s32.totalorder %s16, 0
      %p72 = por %p70, %p71
      %p73 = scmp.ne.s32.totalorder %s61, %s62
      %p74 = scmp.eq.s32.totalorder %s17, 1
      %p75 = por %p73, %p74
      %p77 = scmp.ne.s32.totalorder %s62, %s76
      %p78 = scmp.eq.s32.totalorder %s17, 0
      %p79 = por %p77, %p78
      %s80 = ssub.s32 %s18, %s30
      %p81 = scmp.eq.s32.totalorder %s80, 0
      %s83 = sadd.s32 %s82, 1
      %s84 = scalar_select %p81, %s82, %s83
      %p87 = pneg %p81
      %p88 = scmp.eq.s32.totalorder %s11, 1
      %p89 = por %p87, %p88
      %p90 = scmp.ne.s32.totalorder %s82, %s85
      %p91 = scmp.eq.s32.totalorder %s11, 0
      %p92 = por %p90, %p91
      %p93 = scmp.ne.s32.totalorder %s82, %s85
      %p94 = scmp.eq.s32.totalorder %s16, 1
      %p95 = por %p93, %p94
      %p96 = scmp.ne.s32.totalorder %s85, %s86
      %p97 = scmp.eq.s32.totalorder %s16, 0
      %p98 = por %p96, %p97
      %p99 = scmp.ne.s32.totalorder %s85, %s86
      %p100 = scmp.eq.s32.totalorder %s17, 1
      %p101 = por %p99, %p100
      %p103 = scmp.ne.s32.totalorder %s86, %s102
      %p104 = scmp.eq.s32.totalorder %s17, 0
      %p105 = por %p103, %p104
      %s106 = ssub.s32 %s18, %s30
      %p107 = scmp.eq.s32.totalorder %s106, 0
      %s109 = sadd.s32 %s108, 1
      %s110 = scalar_select %p107, %s108, %s109
      %p113 = pneg %p107
      %p114 = scmp.eq.s32.totalorder %s11, 1
      %p115 = por %p113, %p114
      %p116 = scmp.ne.s32.totalorder %s108, %s111
      %p117 = scmp.eq.s32.totalorder %s11, 0
      %p118 = por %p116, %p117
      %p119 = scmp.ne.s32.totalorder %s108, %s111
      %p120 = scmp.eq.s32.totalorder %s16, 1
      %p121 = por %p119, %p120
      %p122 = scmp.ne.s32.totalorder %s111, %s112
      %p123 = scmp.eq.s32.totalorder %s16, 0
      %p124 = por %p122, %p123
      %p125 = scmp.ne.s32.totalorder %s111, %s112
      %p126 = scmp.eq.s32.totalorder %s17, 1
      %p127 = por %p125, %p126
      %p129 = scmp.ne.s32.totalorder %s112, %s128
      %p130 = scmp.eq.s32.totalorder %s17, 0
      %p131 = por %p129, %p130
      %p132 = scmp.le.s32.totalorder 1, %s11
      %p133 = scmp.lt.s32.totalorder %s11, 3
      %p134 = pnand %p132, %p133
      %p135 = pneg %p134
      // Predicated region
      $region9: #{feature_transform_net.4} parent=5 // pred_check
        _
      $region10: #{feature_transform_net.4} parent=5 // pred_check_branch
        %137 = sbr.rel (%p134) target = $region12
      $region11: #{feature_transform_net.4} parent=5 // pred_region
        %s138 = ssub.s32 %s11, 1
        // Predicated region
        $region13: #{feature_transform_net.4} parent=11 // pred_check
          %p139 = pneg %p72
        $region14: #{feature_transform_net.4} parent=11 // pred_check_branch
          %141 = sbr.rel (%p139) target = $region16
        $region15: #{feature_transform_net.4} parent=11 // pred_region
          %143 = vsyncadd [#allocation3], 0
          %s145 = sshll.u32 %s1, 4
          %s146 = int_to_ptr.hbm [resolvable:$true] %s145
          %s147 = sshll.u32 [#allocation2], 4
          %s148 = int_to_ptr.vmem [resolvable:$true] %s147
          %150 = dma.hbm_to_vmem [thread:$0]  %s146, 64, %s148, [#allocation3]
        $region16: #{feature_transform_net.4} parent=11 // pred_fallthru
          _
      $region12: #{feature_transform_net.4} parent=5 // pred_fallthru
        _
      %p151 = scmp.lt.s32.totalorder %s11, 2
      // Predicated region
      $region17: #{feature_transform_net.4} parent=5 // pred_check
        %p152 = pneg %p151
      $region18: #{feature_transform_net.4} parent=5 // pred_check_branch
        %154 = sbr.rel (%p152) target = $region20
      $region19: #{feature_transform_net.4} parent=5 // pred_region
        // Predicated region
        $region21: #{feature_transform_net.4} parent=19 // pred_check
          %p155 = pneg %p45
        $region22: #{feature_transform_net.4} parent=19 // pred_check_branch
          %157 = sbr.rel (%p155) target = $region24
        $region23: #{feature_transform_net.4} parent=19 // pred_region
          %s158 = smul.u32 2, %s19
          %p159 = scmp.lt.s32.totalorder %s18, 1
          %s160 = scalar_select %p159, %s18, 1
          %p161 = scmp.lt.s32.totalorder %s158, 1
          %s162 = scalar_select %p161, %s158, 1
          %s163 = smul.addr %s160, 2
          %s164 = sadd.s32 %s162, %s163
          %s165 = smul.addr %s164, 8
          %s166 = scalar_lea.vmem %s0, %s165
          %s167 = smul.u32 2, %s19
        $region24: #{feature_transform_net.4} parent=19 // pred_fallthru
          _
      $region20: #{feature_transform_net.4} parent=5 // pred_fallthru
        _
      %p168 = scmp.le.s32.totalorder 1, %s11
      %p169 = scmp.lt.s32.totalorder %s11, 3
      %p170 = pnand %p168, %p169
      %p171 = pneg %p170
      // Predicated region
      $region25: #{feature_transform_net.4} parent=5 // pred_check
        _
      $region26: #{feature_transform_net.4} parent=5 // pred_check_branch
        %173 = sbr.rel (%p170) target = $region28
      $region27: #{feature_transform_net.4} parent=5 // pred_region
        %s174 = ssub.s32 %s11, 1
        // Predicated region
        $region29: #{feature_transform_net.4} parent=27 // pred_check
          %p175 = pneg %p72
        $region30: #{feature_transform_net.4} parent=27 // pred_check_branch
          %177 = sbr.rel (%p175) target = $region32
        $region31: #{feature_transform_net.4} parent=27 // pred_region
          %179 = dma.done [#allocation3], 64
        $region32: #{feature_transform_net.4} parent=27 // pred_fallthru
          _
        %s180 = smul.u32 2, %s21
        %p181 = scmp.lt.s32.totalorder %s20, 1
        %s182 = scalar_select %p181, %s20, 1
        %p183 = scmp.lt.s32.totalorder %s180, 1
        %s184 = scalar_select %p183, %s180, 1
        %s185 = smul.addr %s182, 2
        %s186 = sadd.s32 %s184, %s185
        %s187 = smul.addr %s186, 8
        %s188 = scalar_lea.vmem %s0, %s187
        %p189 = pneg %p51
        %p190 = pneg %p48
        %p191 = pneg %p72
        %p192 = pneg %p69
        %p193 = pneg %p98
        %p194 = pneg %p95
        %p195 = scmp.lt.s32.totalorder %s20, 1
        %s196 = scalar_select %p195, %s20, 1
        %s197 = scalar_lea.vmem %s2, %s196
        %p198 = pneg %p124
        %p199 = pneg %p121
        %p200 = scmp.lt.s32.totalorder %s20, 1
        %s201 = scalar_select %p200, %s20, 1
        %s202 = scalar_lea.vmem %s3, %s201
        %s203 = smul.u32 2, %s21
        %p204 = scmp.lt.s32.totalorder %s20, 1
        %s205 = scalar_select %p204, %s20, 1
        %p206 = scmp.lt.s32.totalorder %s203, 1
        %s207 = scalar_select %p206, %s203, 1
        %s208 = smul.addr %s205, 2
        %s209 = sadd.s32 %s207, %s208
        %s210 = smul.addr %s209, 8
        %s211 = scalar_lea.vmem %s0, %s210
        %s212 = smul.u32 2, %s21
        %p213 = scmp.lt.s32.totalorder %s20, 1
        %s214 = scalar_select %p213, %s20, 1
        %s215 = scalar_lea.vmem %s2, %s214
        %p216 = scmp.lt.s32.totalorder %s20, 1
        %s217 = scalar_select %p216, %s20, 1
        %s218 = scalar_lea.vmem %s3, %s217
        %v219 = vld [vmem:[%s211] sm:$0xff]
        %v220 = vld [vmem:[%s211 + $0x8] sm:$0xff]
        %v221 = vld [vmem:[#allocation2] sm:$0xf]
        %223 = vset.pattern.permute.xlu0 0
        %224 = vperm.xlu0 %223, %v219
        %v225 = vpop.permute.xlu0 %224
        %228 = vset.pattern.permute.xlu0 0
        %229 = vperm.xlu0 %228, %v220
        %v230 = vpop.permute.xlu0 %229
        %v232 = vperm.slane %v221, 0
        %v233 = vmul.f32 %v225, %v232
        %v234 = vmul.f32 %v230, %v232
        %235 = vset.pattern.permute.xlu0 1
        %236 = vperm.xlu0 %235, %v219
        %v237 = vpop.permute.xlu0 %236
        %239 = vset.pattern.permute.xlu0 1
        %240 = vperm.xlu0 %239, %v220
        %v241 = vpop.permute.xlu0 %240
        %v243 = vperm.slane %v221, 1
        %v244 = vmul.f32 %v237, %v243
        %v245 = vmul.f32 %v241, %v243
        %v246 = vadd.f32 %v233, %v244
        %v247 = vadd.f32 %v234, %v245
        %248 = vset.pattern.permute.xlu0 2
        %249 = vperm.xlu0 %248, %v219
        %v250 = vpop.permute.xlu0 %249
        %252 = vset.pattern.permute.xlu0 2
        %253 = vperm.xlu0 %252, %v220
        %v254 = vpop.permute.xlu0 %253
        %v256 = vperm.slane %v221, 2
        %v257 = vmul.f32 %v250, %v256
        %v258 = vmul.f32 %v254, %v256
        %v259 = vadd.f32 %v246, %v257
        %v260 = vadd.f32 %v247, %v258
        %261 = vset.pattern.permute.xlu0 3
        %262 = vperm.xlu0 %261, %v219
        %v263 = vpop.permute.xlu0 %262
        %265 = vset.pattern.permute.xlu0 3
        %266 = vperm.xlu0 %265, %v220
        %v267 = vpop.permute.xlu0 %266
        %v269 = vperm.slane %v221, 3
        %v270 = vmul.f32 %v263, %v269
        %v271 = vmul.f32 %v267, %v269
        %v272 = vadd.f32 %v259, %v270
        %v273 = vadd.f32 %v260, %v271
        %p274 = scmp.eq.s32.totalorder %s21, 0
        // Predicated region
        $region33: #{feature_transform_net.4} parent=27 // pred_check
          %p275 = pneg %p274
        $region34: #{feature_transform_net.4} parent=27 // pred_check_branch
          %277 = sbr.rel (%p275) target = $region36
        $region35: #{feature_transform_net.4} parent=27 // pred_region
          %vm278 = vcmask 516096
          %279 = vst.msk [vmem:[%s215] sm:$0x1] %vm278, 0.0
          %280 = vst.msk [vmem:[%s218] sm:$0x1] %vm278, 0.0
        $region36: #{feature_transform_net.4} parent=27 // pred_fallthru
          _
        %v281 = vld [vmem:[%s215] sm:$0x1]
        %vm282 = vcmask 523264
        %v283 = vsel %vm282, %v272, 0.0
        %v284 = vsel %vm282, %v273, 0.0
        %v285 = vadd.f32 %v283, %v284
        %v286 = vrot.slane %v285, 4
        %v287 = vadd.f32 %v285, %v286
        %v288 = vrot.slane %v287, 2
        %v289 = vadd.f32 %v287, %v288
        %v290 = vrot.slane %v289, 1
        %v291 = vadd.f32 %v289, %v290
        %v292 = vadd.f32 %v281, %v291
        %vm293 = vcmask 516096
        %294 = vst.msk [vmem:[%s215] sm:$0x1] %vm293, %v292
        %v295 = vld [vmem:[%s218] sm:$0x1]
        %v296 = vmul.f32 %v272, %v272
        %v297 = vmul.f32 %v273, %v273
        %v298 = vsel %vm282, %v296, 0.0
        %v299 = vsel %vm282, %v297, 0.0
        %v300 = vadd.f32 %v298, %v299
        %v301 = vrot.slane %v300, 4
        %v302 = vadd.f32 %v300, %v301
        %v303 = vrot.slane %v302, 2
        %v304 = vadd.f32 %v302, %v303
        %v305 = vrot.slane %v304, 1
        %v306 = vadd.f32 %v304, %v305
        %v307 = vadd.f32 %v295, %v306
        %308 = vst.msk [vmem:[%s218] sm:$0x1] %vm293, %v307
        %p309 = scmp.lt.s32.totalorder %s20, 1
        %s310 = scalar_select %p309, %s20, 1
        %s311 = scalar_lea.vmem %s2, %s310
        %p312 = scmp.lt.s32.totalorder %s20, 1
        %s313 = scalar_select %p312, %s20, 1
        %s314 = scalar_lea.vmem %s3, %s313
        // Predicated region
        $region37: #{feature_transform_net.4} parent=27 // pred_check
          %p315 = pneg %p95
        $region38: #{feature_transform_net.4} parent=27 // pred_check_branch
          %317 = sbr.rel (%p315) target = $region40
        $region39: #{feature_transform_net.4} parent=27 // pred_region
          _
        $region40: #{feature_transform_net.4} parent=27 // pred_fallthru
          _
        // Predicated region
        $region41: #{feature_transform_net.4} parent=27 // pred_check
          %p318 = pneg %p121
        $region42: #{feature_transform_net.4} parent=27 // pred_check_branch
          %320 = sbr.rel (%p318) target = $region44
        $region43: #{feature_transform_net.4} parent=27 // pred_region
          _
        $region44: #{feature_transform_net.4} parent=27 // pred_fallthru
          _
      $region28: #{feature_transform_net.4} parent=5 // pred_fallthru
        _
      %p321 = scmp.le.s32.totalorder 2, %s11
      // Predicated region
      $region45: #{feature_transform_net.4} parent=5 // pred_check
        %p322 = pneg %p321
      $region46: #{feature_transform_net.4} parent=5 // pred_check_branch
        %324 = sbr.rel (%p322) target = $region48
      $region47: #{feature_transform_net.4} parent=5 // pred_region
        %s325 = ssub.s32 %s11, 2
        // Predicated region
        $region49: #{feature_transform_net.4} parent=47 // pred_check
          %p326 = pneg %p101
        $region50: #{feature_transform_net.4} parent=47 // pred_check_branch
          %328 = sbr.rel (%p326) target = $region52
        $region51: #{feature_transform_net.4} parent=47 // pred_region
          %p329 = scmp.lt.s32.totalorder %s22, 1
          %s330 = scalar_select %p329, %s22, 1
          %s331 = scalar_lea.vmem %s2, %s330
        $region52: #{feature_transform_net.4} parent=47 // pred_fallthru
          _
        // Predicated region
        $region53: #{feature_transform_net.4} parent=47 // pred_check
          %p332 = pneg %p127
        $region54: #{feature_transform_net.4} parent=47 // pred_check_branch
          %334 = sbr.rel (%p332) target = $region56
        $region55: #{feature_transform_net.4} parent=47 // pred_region
          %p335 = scmp.lt.s32.totalorder %s22, 1
          %s336 = scalar_select %p335, %s22, 1
          %s337 = scalar_lea.vmem %s3, %s336
        $region56: #{feature_transform_net.4} parent=47 // pred_fallthru
          _
      $region48: #{feature_transform_net.4} parent=5 // pred_fallthru
        _
    $region6: #{feature_transform_net.4} parent=1 // loop_footer
      %s15 = sadd.s32 1, %s11
    $region7: #{feature_transform_net.4} parent=1 // loop_footer_branch
      %10 = sbr.rel target = $region3
    $region8: #{feature_transform_net.4} parent=1 // loop_exit
      _
    %338 = vsyncpa [#allocation3], 1
    %s339 = scalar_lea.sflag [#allocation3], 1
    %340 = vsyncpa %s339, 1

// kernel: feature_transform_net.5
$region0: #{feature_transform_net.5}
  #allocation0 [shape = 'u32[]', space=smem, size = 0x4, offset = 0x4, fixed_abs, tag = 'smem constant byte address 0x4 - core index']
  #allocation1 [shape = 'u32[72,128]{1,0:T(1,128)}', space=vmem, size = 0x9000, scoped, tag = 'internal scratch']
  %s0 = inlined_call_operand.vmem [shape: f32[2,16,4], index: 0, kind: input, shape index: {}]
  %s1 = inlined_call_operand.hbm [shape: f32[4,64], index: 1, kind: input, shape index: {}]
  %s2 = inlined_call_operand.vmem [shape: f32[1,64], index: 2, kind: input, shape index: {}]
  %s3 = inlined_call_operand.vmem [shape: f32[1,64], index: 3, kind: input, shape index: {}]
  %s4 = inlined_call_operand.vmem [shape: bf16[64,128], index: 4, kind: input, shape index: {}]
  %s5 = inlined_call_operand.vmem [shape: f32[2,1,128], index: 5, kind: output, shape index: {0}]
  %s6 = inlined_call_operand.vmem [shape: f32[2,1,128], index: 6, kind: output, shape index: {1}]
  %7 = xla_tuple %s5, %s6
  %s8 = sld [smem:[#allocation0]]
  $region69: #{feature_transform_net.5} parent=0
    _
  %s10 = ssub.s32 1, %s8
  %s11 = scalar_select 0, %s10, %s8
  $region1: #{feature_transform_net.5} parent=0
    #allocation2 [shape = 'u8[2048]{0}', space=vmem, size = 0x800, scoped, tag = 'input window, operand 1, single buffered']
    #allocation3 [shape = 's32[2]{0}', space=sflag, size = 0x8, scoped, tag = 'scoped memory for feature_transform_net.5']
    %12 = vsyncpa [#allocation3], 0
    loop: start=0, step=1, limit=4
    $region2: #{feature_transform_net.5} parent=1 // loop_pre_header
      _
    $region3: #{feature_transform_net.5} parent=1 // loop_header
      %s14 = sphi 0, %s18
      %p15 = scmp.ge.s32.totalorder %s14, 4
      %s21 = sphi 0, %s33
      %s22 = sphi 0, %s29
      %s23 = sphi 0, %s21
      %s24 = sphi 0, %s22
      %s25 = sphi 0, %s23
      %s26 = sphi 0, %s24
      %s38 = sphi 0, %s40
      %s41 = sphi 0, %s38
      %s42 = sphi 0, %s41
      %s58 = sphi 0, %s42
      %s62 = sphi 0, %s62
      %s64 = sphi 0, %s62
      %s65 = sphi 0, %s64
      %s79 = sphi 0, %s65
      %s83 = sphi 0, %s83
      %s85 = sphi 0, %s83
      %s86 = sphi 0, %s85
      %s100 = sphi 0, %s86
      %s104 = sphi 0, %s104
      %s106 = sphi 0, %s104
      %s107 = sphi 0, %s106
      %s121 = sphi 0, %s107
      %s125 = sphi 0, %s125
      %s127 = sphi 0, %s125
      %s128 = sphi 0, %s127
      %s142 = sphi 0, %s128
      %s148 = sphi 0, %s150
      %s151 = sphi 0, %s148
      %s152 = sphi 0, %s151
      %s168 = sphi 0, %s152
      %s174 = sphi 0, %s176
      %s177 = sphi 0, %s174
      %s178 = sphi 0, %s177
      %s194 = sphi 0, %s178
    $region4: #{feature_transform_net.5} parent=1 // loop_header_branch
      %17 = sbr.rel (%p15) target = $region8
    $region5: #{feature_transform_net.5} parent=1 // loop_body
      %s19 = ssub.s32 %s14, 1
      %s20 = ssub.s32 %s14, 2
      %s27 = sadd.s32 1, %s22
      %p28 = scmp.ge.s32.totalorder %s27, 1
      %s29 = scalar_select %p28, 0, %s27
      %s30 = sadd.s32 1, %s21
      %s31 = scalar_select %p28, %s30, %s21
      %p32 = scmp.ge.s32.totalorder %s31, 2
      %s33 = scalar_select %p32, 0, %s31
      %s34 = ssub.s32 %s21, %s33
      %s35 = ssub.s32 %s22, %s29
      %s36 = sor.u32 %s34, %s35
      %p37 = scmp.eq.s32.totalorder %s36, 0
      %s39 = sadd.s32 %s38, 1
      %s40 = scalar_select %p37, %s38, %s39
      %p43 = pneg %p37
      %p44 = scmp.eq.s32.totalorder %s14, 1
      %p45 = por %p43, %p44
      %p46 = scmp.ne.s32.totalorder %s38, %s41
      %p47 = scmp.eq.s32.totalorder %s14, 0
      %p48 = por %p46, %p47
      %p49 = scmp.ne.s32.totalorder %s38, %s41
      %p50 = scmp.eq.s32.totalorder %s19, 1
      %p51 = por %p49, %p50
      %p52 = scmp.ne.s32.totalorder %s41, %s42
      %p53 = scmp.eq.s32.totalorder %s19, 0
      %p54 = por %p52, %p53
      %p55 = scmp.ne.s32.totalorder %s41, %s42
      %p56 = scmp.eq.s32.totalorder %s20, 1
      %p57 = por %p55, %p56
      %p59 = scmp.ne.s32.totalorder %s42, %s58
      %p60 = scmp.eq.s32.totalorder %s20, 0
      %p61 = por %p59, %p60
      %s63 = sadd.s32 %s62, 1
      %p66 = scmp.eq.s32.totalorder %s14, 1
      %p67 = scmp.ne.s32.totalorder %s62, %s64
      %p68 = scmp.eq.s32.totalorder %s14, 0
      %p69 = por %p67, %p68
      %p70 = scmp.ne.s32.totalorder %s62, %s64
      %p71 = scmp.eq.s32.totalorder %s19, 1
      %p72 = por %p70, %p71
      %p73 = scmp.ne.s32.totalorder %s64, %s65
      %p74 = scmp.eq.s32.totalorder %s19, 0
      %p75 = por %p73, %p74
      %p76 = scmp.ne.s32.totalorder %s64, %s65
      %p77 = scmp.eq.s32.totalorder %s20, 1
      %p78 = por %p76, %p77
      %p80 = scmp.ne.s32.totalorder %s65, %s79
      %p81 = scmp.eq.s32.totalorder %s20, 0
      %p82 = por %p80, %p81
      %s84 = sadd.s32 %s83, 1
      %p87 = scmp.eq.s32.totalorder %s14, 1
      %p88 = scmp.ne.s32.totalorder %s83, %s85
      %p89 = scmp.eq.s32.totalorder %s14, 0
      %p90 = por %p88, %p89
      %p91 = scmp.ne.s32.totalorder %s83, %s85
      %p92 = scmp.eq.s32.totalorder %s19, 1
      %p93 = por %p91, %p92
      %p94 = scmp.ne.s32.totalorder %s85, %s86
      %p95 = scmp.eq.s32.totalorder %s19, 0
      %p96 = por %p94, %p95
      %p97 = scmp.ne.s32.totalorder %s85, %s86
      %p98 = scmp.eq.s32.totalorder %s20, 1
      %p99 = por %p97, %p98
      %p101 = scmp.ne.s32.totalorder %s86, %s100
      %p102 = scmp.eq.s32.totalorder %s20, 0
      %p103 = por %p101, %p102
      %s105 = sadd.s32 %s104, 1
      %p108 = scmp.eq.s32.totalorder %s14, 1
      %p109 = scmp.ne.s32.totalorder %s104, %s106
      %p110 = scmp.eq.s32.totalorder %s14, 0
      %p111 = por %p109, %p110
      %p112 = scmp.ne.s32.totalorder %s104, %s106
      %p113 = scmp.eq.s32.totalorder %s19, 1
      %p114 = por %p112, %p113
      %p115 = scmp.ne.s32.totalorder %s106, %s107
      %p116 = scmp.eq.s32.totalorder %s19, 0
      %p117 = por %p115, %p116
      %p118 = scmp.ne.s32.totalorder %s106, %s107
      %p119 = scmp.eq.s32.totalorder %s20, 1
      %p120 = por %p118, %p119
      %p122 = scmp.ne.s32.totalorder %s107, %s121
      %p123 = scmp.eq.s32.totalorder %s20, 0
      %p124 = por %p122, %p123
      %s126 = sadd.s32 %s125, 1
      %p129 = scmp.eq.s32.totalorder %s14, 1
      %p130 = scmp.ne.s32.totalorder %s125, %s127
      %p131 = scmp.eq.s32.totalorder %s14, 0
      %p132 = por %p130, %p131
      %p133 = scmp.ne.s32.totalorder %s125, %s127
      %p134 = scmp.eq.s32.totalorder %s19, 1
      %p135 = por %p133, %p134
      %p136 = scmp.ne.s32.totalorder %s127, %s128
      %p137 = scmp.eq.s32.totalorder %s19, 0
      %p138 = por %p136, %p137
      %p139 = scmp.ne.s32.totalorder %s127, %s128
      %p140 = scmp.eq.s32.totalorder %s20, 1
      %p141 = por %p139, %p140
      %p143 = scmp.ne.s32.totalorder %s128, %s142
      %p144 = scmp.eq.s32.totalorder %s20, 0
      %p145 = por %p143, %p144
      %s146 = ssub.s32 %s21, %s33
      %p147 = scmp.eq.s32.totalorder %s146, 0
      %s149 = sadd.s32 %s148, 1
      %s150 = scalar_select %p147, %s148, %s149
      %p153 = pneg %p147
      %p154 = scmp.eq.s32.totalorder %s14, 1
      %p155 = por %p153, %p154
      %p156 = scmp.ne.s32.totalorder %s148, %s151
      %p157 = scmp.eq.s32.totalorder %s14, 0
      %p158 = por %p156, %p157
      %p159 = scmp.ne.s32.totalorder %s148, %s151
      %p160 = scmp.eq.s32.totalorder %s19, 1
      %p161 = por %p159, %p160
      %p162 = scmp.ne.s32.totalorder %s151, %s152
      %p163 = scmp.eq.s32.totalorder %s19, 0
      %p164 = por %p162, %p163
      %p165 = scmp.ne.s32.totalorder %s151, %s152
      %p166 = scmp.eq.s32.totalorder %s20, 1
      %p167 = por %p165, %p166
      %p169 = scmp.ne.s32.totalorder %s152, %s168
      %p170 = scmp.eq.s32.totalorder %s20, 0
      %p171 = por %p169, %p170
      %s172 = ssub.s32 %s21, %s33
      %p173 = scmp.eq.s32.totalorder %s172, 0
      %s175 = sadd.s32 %s174, 1
      %s176 = scalar_select %p173, %s174, %s175
      %p179 = pneg %p173
      %p180 = scmp.eq.s32.totalorder %s14, 1
      %p181 = por %p179, %p180
      %p182 = scmp.ne.s32.totalorder %s174, %s177
      %p183 = scmp.eq.s32.totalorder %s14, 0
      %p184 = por %p182, %p183
      %p185 = scmp.ne.s32.totalorder %s174, %s177
      %p186 = scmp.eq.s32.totalorder %s19, 1
      %p187 = por %p185, %p186
      %p188 = scmp.ne.s32.totalorder %s177, %s178
      %p189 = scmp.eq.s32.totalorder %s19, 0
      %p190 = por %p188, %p189
      %p191 = scmp.ne.s32.totalorder %s177, %s178
      %p192 = scmp.eq.s32.totalorder %s20, 1
      %p193 = por %p191, %p192
      %p195 = scmp.ne.s32.totalorder %s178, %s194
      %p196 = scmp.eq.s32.totalorder %s20, 0
      %p197 = por %p195, %p196
      %p198 = scmp.le.s32.totalorder 1, %s14
      %p199 = scmp.lt.s32.totalorder %s14, 3
      %p200 = pnand %p198, %p199
      %p201 = pneg %p200
      // Predicated region
      $region9: #{feature_transform_net.5} parent=5 // pred_check
        _
      $region10: #{feature_transform_net.5} parent=5 // pred_check_branch
        %203 = sbr.rel (%p200) target = $region12
      $region11: #{feature_transform_net.5} parent=5 // pred_region
        %s204 = ssub.s32 %s14, 1
        // Predicated region
        $region13: #{feature_transform_net.5} parent=11 // pred_check
          %p205 = pneg %p75
        $region14: #{feature_transform_net.5} parent=11 // pred_check_branch
          %207 = sbr.rel (%p205) target = $region16
        $region15: #{feature_transform_net.5} parent=11 // pred_region
          %209 = vsyncadd [#allocation3], 0
          %s211 = sshll.u32 %s1, 4
          %s212 = int_to_ptr.hbm [resolvable:$true] %s211
          %s213 = sshll.u32 [#allocation2], 4
          %s214 = int_to_ptr.vmem [resolvable:$true] %s213
          %216 = dma.hbm_to_vmem [thread:$0]  %s212, 64, %s214, [#allocation3]
        $region16: #{feature_transform_net.5} parent=11 // pred_fallthru
          _
        // Predicated region
        $region17: #{feature_transform_net.5} parent=11 // pred_check
          %p217 = pneg %p96
        $region18: #{feature_transform_net.5} parent=11 // pred_check_branch
          %219 = sbr.rel (%p217) target = $region20
        $region19: #{feature_transform_net.5} parent=11 // pred_region
          _
        $region20: #{feature_transform_net.5} parent=11 // pred_fallthru
          _
        // Predicated region
        $region21: #{feature_transform_net.5} parent=11 // pred_check
          %p220 = pneg %p117
        $region22: #{feature_transform_net.5} parent=11 // pred_check_branch
          %222 = sbr.rel (%p220) target = $region24
        $region23: #{feature_transform_net.5} parent=11 // pred_region
          _
        $region24: #{feature_transform_net.5} parent=11 // pred_fallthru
          _
        // Predicated region
        $region25: #{feature_transform_net.5} parent=11 // pred_check
          %p223 = pneg %p138
        $region26: #{feature_transform_net.5} parent=11 // pred_check_branch
          %225 = sbr.rel (%p223) target = $region28
        $region27: #{feature_transform_net.5} parent=11 // pred_region
          _
        $region28: #{feature_transform_net.5} parent=11 // pred_fallthru
          _
      $region12: #{feature_transform_net.5} parent=5 // pred_fallthru
        _
      %p226 = scmp.lt.s32.totalorder %s14, 2
      // Predicated region
      $region29: #{feature_transform_net.5} parent=5 // pred_check
        %p227 = pneg %p226
      $region30: #{feature_transform_net.5} parent=5 // pred_check_branch
        %229 = sbr.rel (%p227) target = $region32
      $region31: #{feature_transform_net.5} parent=5 // pred_region
        // Predicated region
        $region33: #{feature_transform_net.5} parent=31 // pred_check
          %p230 = pneg %p48
        $region34: #{feature_transform_net.5} parent=31 // pred_check_branch
          %232 = sbr.rel (%p230) target = $region36
        $region35: #{feature_transform_net.5} parent=31 // pred_region
          %s233 = smul.u32 2, %s22
          %p234 = scmp.lt.s32.totalorder %s21, 1
          %s235 = scalar_select %p234, %s21, 1
          %p236 = scmp.lt.s32.totalorder %s233, 1
          %s237 = scalar_select %p236, %s233, 1
          %s238 = smul.addr %s235, 2
          %s239 = sadd.s32 %s237, %s238
          %s240 = smul.addr %s239, 8
          %s241 = scalar_lea.vmem %s0, %s240
          %s242 = smul.u32 2, %s22
        $region36: #{feature_transform_net.5} parent=31 // pred_fallthru
          _
      $region32: #{feature_transform_net.5} parent=5 // pred_fallthru
        _
      %p243 = scmp.le.s32.totalorder 1, %s14
      %p244 = scmp.lt.s32.totalorder %s14, 3
      %p245 = pnand %p243, %p244
      %p246 = pneg %p245
      // Predicated region
      $region37: #{feature_transform_net.5} parent=5 // pred_check
        _
      $region38: #{feature_transform_net.5} parent=5 // pred_check_branch
        %248 = sbr.rel (%p245) target = $region40
      $region39: #{feature_transform_net.5} parent=5 // pred_region
        %s249 = ssub.s32 %s14, 1
        // Predicated region
        $region41: #{feature_transform_net.5} parent=39 // pred_check
          %p250 = pneg %p75
        $region42: #{feature_transform_net.5} parent=39 // pred_check_branch
          %252 = sbr.rel (%p250) target = $region44
        $region43: #{feature_transform_net.5} parent=39 // pred_region
          %254 = dma.done [#allocation3], 64
        $region44: #{feature_transform_net.5} parent=39 // pred_fallthru
          _
        %s255 = smul.u32 2, %s24
        %p256 = scmp.lt.s32.totalorder %s23, 1
        %s257 = scalar_select %p256, %s23, 1
        %p258 = scmp.lt.s32.totalorder %s255, 1
        %s259 = scalar_select %p258, %s255, 1
        %s260 = smul.addr %s257, 2
        %s261 = sadd.s32 %s259, %s260
        %s262 = smul.addr %s261, 8
        %s263 = scalar_lea.vmem %s0, %s262
        %p264 = pneg %p54
        %p265 = pneg %p51
        %p266 = pneg %p75
        %p267 = pneg %p72
        %p268 = pneg %p96
        %p269 = pneg %p93
        %p270 = pneg %p117
        %p271 = pneg %p114
        %p272 = pneg %p138
        %p273 = pneg %p135
        %p274 = pneg %p164
        %p275 = pneg %p161
        %p276 = scmp.lt.s32.totalorder %s23, 1
        %s277 = scalar_select %p276, %s23, 1
        %s278 = scalar_lea.vmem %s5, %s277
        %p279 = pneg %p190
        %p280 = pneg %p187
        %p281 = scmp.lt.s32.totalorder %s23, 1
        %s282 = scalar_select %p281, %s23, 1
        %s283 = scalar_lea.vmem %s6, %s282
        %s284 = smul.u32 2, %s24
        %p285 = scmp.lt.s32.totalorder %s23, 1
        %s286 = scalar_select %p285, %s23, 1
        %p287 = scmp.lt.s32.totalorder %s284, 1
        %s288 = scalar_select %p287, %s284, 1
        %s289 = smul.addr %s286, 2
        %s290 = sadd.s32 %s288, %s289
        %s291 = smul.addr %s290, 8
        %s292 = scalar_lea.vmem %s0, %s291
        %s293 = smul.u32 2, %s24
        %p294 = scmp.lt.s32.totalorder %s23, 1
        %s295 = scalar_select %p294, %s23, 1
        %s296 = scalar_lea.vmem %s5, %s295
        %p297 = scmp.lt.s32.totalorder %s23, 1
        %s298 = scalar_select %p297, %s23, 1
        %s299 = scalar_lea.vmem %s6, %s298
        %v301 = vld [vmem:[%s292] sm:$0xff]
        %v302 = vld [vmem:[%s292 + $0x8] sm:$0xff]
        %v303 = vld [vmem:[#allocation2] sm:$0xf]
        %305 = vset.pattern.permute.xlu0 0
        %306 = vperm.xlu0 %305, %v301
        %v307 = vpop.permute.xlu0 %306
        %310 = vset.pattern.permute.xlu0 0
        %311 = vperm.xlu0 %310, %v302
        %v312 = vpop.permute.xlu0 %311
        %v314 = vperm.slane %v303, 0
        %v315 = vmul.f32 %v307, %v314
        %v316 = vmul.f32 %v312, %v314
        %317 = vset.pattern.permute.xlu0 1
        %318 = vperm.xlu0 %317, %v301
        %v319 = vpop.permute.xlu0 %318
        %321 = vset.pattern.permute.xlu0 1
        %322 = vperm.xlu0 %321, %v302
        %v323 = vpop.permute.xlu0 %322
        %v325 = vperm.slane %v303, 1
        %v326 = vmul.f32 %v319, %v325
        %v327 = vmul.f32 %v323, %v325
        %v328 = vadd.f32 %v315, %v326
        %v329 = vadd.f32 %v316, %v327
        %330 = vset.pattern.permute.xlu0 2
        %331 = vperm.xlu0 %330, %v301
        %v332 = vpop.permute.xlu0 %331
        %334 = vset.pattern.permute.xlu0 2
        %335 = vperm.xlu0 %334, %v302
        %v336 = vpop.permute.xlu0 %335
        %v338 = vperm.slane %v303, 2
        %v339 = vmul.f32 %v332, %v338
        %v340 = vmul.f32 %v336, %v338
        %v341 = vadd.f32 %v328, %v339
        %v342 = vadd.f32 %v329, %v340
        %343 = vset.pattern.permute.xlu0 3
        %344 = vperm.xlu0 %343, %v301
        %v345 = vpop.permute.xlu0 %344
        %347 = vset.pattern.permute.xlu0 3
        %348 = vperm.xlu0 %347, %v302
        %v349 = vpop.permute.xlu0 %348
        %v351 = vperm.slane %v303, 3
        %v352 = vmul.f32 %v345, %v351
        %v353 = vmul.f32 %v349, %v351
        %v354 = vadd.f32 %v341, %v352
        %v355 = vadd.f32 %v342, %v353
        %v356 = vld [vmem:[%s2] sm:$0x1]
        %v358 = vperm.slane %v356, 0
        %v360 = vmul.f32 %v354, %v358
        %v361 = vmul.f32 %v355, %v358
        %v362 = vld [vmem:[%s3] sm:$0x1]
        %v364 = vperm.slane %v362, 0
        %v366 = vadd.f32 %v360, %v364
        %v367 = vadd.f32 %v361, %v364
        %v368 = vmax.f32 %v366, 0.0
        %v369 = vmax.f32 %v367, 0.0
        %v370 = vpack.c.bf16 %v369, %v368
        %v371 = vld [vmem:[%s4] sm:$0xf]
        %v372 = vld [vmem:[%s4 + $0x4] sm:$0xf]
        %v373 = vld [vmem:[%s4 + $0x8] sm:$0xf]
        %v374 = vld [vmem:[%s4 + $0xc] sm:$0xf]
        %v375 = vld [vmem:[%s4 + $0x10] sm:$0xf]
        %v376 = vld [vmem:[%s4 + $0x14] sm:$0xf]
        %v377 = vld [vmem:[%s4 + $0x18] sm:$0xf]
        %v378 = vld [vmem:[%s4 + $0x1c] sm:$0xf]
        %v387 = vunpack.c.l.b16 %v371
        %v388 = vunpack.c.l.b16 %v372
        %v389 = vunpack.c.l.b16 %v373
        %v390 = vunpack.c.l.b16 %v374
        %v391 = vunpack.c.l.b16 %v375
        %v392 = vunpack.c.l.b16 %v376
        %v393 = vunpack.c.l.b16 %v377
        %v394 = vunpack.c.l.b16 %v378
        %v395 = vpack.c.b16 %v388, %v387
        %v396 = vpack.c.b16 %v390, %v389
        %v397 = vpack.c.b16 %v392, %v391
        %v398 = vpack.c.b16 %v394, %v393
        %vm403 = vcmask 523264
        %v405 = vsel %vm403, %v370, 0
        %407 = vmatpush.bf16.msra.mxu0 0
        %408 = vmatpush.bf16.msra.mxu0 0
        %409 = vmatpush.bf16.msra.mxu0 0
        %410 = vmatpush.bf16.msra.mxu0 0
        %411 = vmatpush.bf16.msra.mxu0 %v398
        %412 = vmatpush.bf16.msra.mxu0 %v397
        %413 = vmatpush.bf16.msra.mxu0 %v396
        %414 = vmatpush.bf16.msra.mxu0 %v395
        %415 = vmatmul.bf16.gmra.mxu0 %v405
        %v416 = vpop.f32.mrf.mxu0
        %v417 = vadd.f32 0.0, %v416
        %v418 = vpop.f32.mrf.mxu0
        %v419 = vadd.f32 0.0, %v418
        %420 = vdwg.mxu0
        %p421 = scmp.eq.s32.totalorder %s24, 0
        // Predicated region
        $region45: #{feature_transform_net.5} parent=39 // pred_check
          %p422 = pneg %p421
        $region46: #{feature_transform_net.5} parent=39 // pred_check_branch
          %424 = sbr.rel (%p422) target = $region48
        $region47: #{feature_transform_net.5} parent=39 // pred_region
          %425 = vst [vmem:[%s296] sm:$0x1] 0.0
          %426 = vst [vmem:[%s299] sm:$0x1] 0.0
        $region48: #{feature_transform_net.5} parent=39 // pred_fallthru
          _
        %v427 = vld [vmem:[%s296] sm:$0x1]
        %v428 = vadd.f32 %v417, %v419
        %v429 = vrot.slane %v428, 4
        %v430 = vadd.f32 %v428, %v429
        %v431 = vrot.slane %v430, 2
        %v432 = vadd.f32 %v430, %v431
        %v433 = vrot.slane %v432, 1
        %v434 = vadd.f32 %v432, %v433
        %v435 = vadd.f32 %v427, %v434
        %436 = vst [vmem:[%s296] sm:$0x1] %v435
        %v437 = vld [vmem:[%s299] sm:$0x1]
        %v438 = vmul.f32 %v417, %v417
        %v439 = vmul.f32 %v419, %v419
        %v440 = vadd.f32 %v438, %v439
        %v441 = vrot.slane %v440, 4
        %v442 = vadd.f32 %v440, %v441
        %v443 = vrot.slane %v442, 2
        %v444 = vadd.f32 %v442, %v443
        %v445 = vrot.slane %v444, 1
        %v446 = vadd.f32 %v444, %v445
        %v447 = vadd.f32 %v437, %v446
        %448 = vst [vmem:[%s299] sm:$0x1] %v447
        %p449 = scmp.lt.s32.totalorder %s23, 1
        %s450 = scalar_select %p449, %s23, 1
        %s451 = scalar_lea.vmem %s5, %s450
        %p452 = scmp.lt.s32.totalorder %s23, 1
        %s453 = scalar_select %p452, %s23, 1
        %s454 = scalar_lea.vmem %s6, %s453
        // Predicated region
        $region49: #{feature_transform_net.5} parent=39 // pred_check
          %p455 = pneg %p161
        $region50: #{feature_transform_net.5} parent=39 // pred_check_branch
          %457 = sbr.rel (%p455) target = $region52
        $region51: #{feature_transform_net.5} parent=39 // pred_region
          _
        $region52: #{feature_transform_net.5} parent=39 // pred_fallthru
          _
        // Predicated region
        $region53: #{feature_transform_net.5} parent=39 // pred_check
          %p458 = pneg %p187
        $region54: #{feature_transform_net.5} parent=39 // pred_check_branch
          %460 = sbr.rel (%p458) target = $region56
        $region55: #{feature_transform_net.5} parent=39 // pred_region
          _
        $region56: #{feature_transform_net.5} parent=39 // pred_fallthru
          _
      $region40: #{feature_transform_net.5} parent=5 // pred_fallthru
        _
      %p461 = scmp.le.s32.totalorder 2, %s14
      // Predicated region
      $region57: #{feature_transform_net.5} parent=5 // pred_check
        %p462 = pneg %p461
      $region58: #{feature_transform_net.5} parent=5 // pred_check_branch
        %464 = sbr.rel (%p462) target = $region60
      $region59: #{feature_transform_net.5} parent=5 // pred_region
        %s465 = ssub.s32 %s14, 2
        // Predicated region
        $region61: #{feature_transform_net.5} parent=59 // pred_check
          %p466 = pneg %p167
        $region62: #{feature_transform_net.5} parent=59 // pred_check_branch
          %468 = sbr.rel (%p466) target = $region64
        $region63: #{feature_transform_net.5} parent=59 // pred_region
          %p469 = scmp.lt.s32.totalorder %s25, 1
          %s470 = scalar_select %p469, %s25, 1
          %s471 = scalar_lea.vmem %s5, %s470
        $region64: #{feature_transform_net.5} parent=59 // pred_fallthru
          _
        // Predicated region
        $region65: #{feature_transform_net.5} parent=59 // pred_check
          %p472 = pneg %p193
        $region66: #{feature_transform_net.5} parent=59 // pred_check_branch
          %474 = sbr.rel (%p472) target = $region68
        $region67: #{feature_transform_net.5} parent=59 // pred_region
          %p475 = scmp.lt.s32.totalorder %s25, 1
          %s476 = scalar_select %p475, %s25, 1
          %s477 = scalar_lea.vmem %s6, %s476
        $region68: #{feature_transform_net.5} parent=59 // pred_fallthru
          _
      $region60: #{feature_transform_net.5} parent=5 // pred_fallthru
        _
    $region6: #{feature_transform_net.5} parent=1 // loop_footer
      %s18 = sadd.s32 1, %s14
    $region7: #{feature_transform_net.5} parent=1 // loop_footer_branch
      %13 = sbr.rel target = $region3
    $region8: #{feature_transform_net.5} parent=1 // loop_exit
      _
    %478 = vsyncpa [#allocation3], 1
    %s479 = scalar_lea.sflag [#allocation3], 1
    %480 = vsyncpa %s479, 1

// kernel: feature_transform_net.6
$region0: #{feature_transform_net.6}
  #allocation0 [shape = 'u32[]', space=smem, size = 0x4, offset = 0x4, fixed_abs, tag = 'smem constant byte address 0x4 - core index']
  #allocation1 [shape = 'u32[72,128]{1,0:T(1,128)}', space=vmem, size = 0x9000, scoped, tag = 'internal scratch']
  %s0 = inlined_call_operand.vmem [shape: f32[2,16,4], index: 0, kind: input, shape index: {}]
  %s1 = inlined_call_operand.hbm [shape: f32[4,64], index: 1, kind: input, shape index: {}]
  %s2 = inlined_call_operand.vmem [shape: f32[1,64], index: 2, kind: input, shape index: {}]
  %s3 = inlined_call_operand.vmem [shape: f32[1,64], index: 3, kind: input, shape index: {}]
  %s4 = inlined_call_operand.vmem [shape: bf16[64,128], index: 4, kind: input, shape index: {}]
  %s5 = inlined_call_operand.vmem [shape: f32[1,128], index: 5, kind: input, shape index: {}]
  %s6 = inlined_call_operand.vmem [shape: f32[1,128], index: 6, kind: input, shape index: {}]
  %s7 = inlined_call_operand.vmem [shape: bf16[128,1024], index: 7, kind: input, shape index: {}]
  %s8 = inlined_call_operand.vmem [shape: f32[2,1,1024], index: 8, kind: output, shape index: {0}]
  %s9 = inlined_call_operand.vmem [shape: f32[2,1,1024], index: 9, kind: output, shape index: {1}]
  %s10 = inlined_call_operand.vmem [shape: f32[2,1,1024], index: 10, kind: output, shape index: {2}]
  %s11 = inlined_call_operand.vmem [shape: f32[2,1,1024], index: 11, kind: output, shape index: {3}]
  %12 = xla_tuple %s8, %s9, %s10, %s11
  %s13 = sld [smem:[#allocation0]]
  $region101: #{feature_transform_net.6} parent=0
    _
  %s15 = ssub.s32 1, %s13
  %s16 = scalar_select 0, %s15, %s13
  $region1: #{feature_transform_net.6} parent=0
    #allocation2 [shape = 'u8[2048]{0}', space=vmem, size = 0x800, scoped, tag = 'input window, operand 1, single buffered']
    #allocation3 [shape = 's32[2]{0}', space=sflag, size = 0x8, scoped, tag = 'scoped memory for feature_transform_net.6']
    %17 = vsyncpa [#allocation3], 0
    loop: start=0, step=1, limit=4
    $region2: #{feature_transform_net.6} parent=1 // loop_pre_header
      _
    $region3: #{feature_transform_net.6} parent=1 // loop_header
      %s19 = sphi 0, %s23
      %p20 = scmp.ge.s32.totalorder %s19, 4
      %s26 = sphi 0, %s38
      %s27 = sphi 0, %s34
      %s28 = sphi 0, %s26
      %s29 = sphi 0, %s27
      %s30 = sphi 0, %s28
      %s31 = sphi 0, %s29
      %s43 = sphi 0, %s45
      %s46 = sphi 0, %s43
      %s47 = sphi 0, %s46
      %s63 = sphi 0, %s47
      %s67 = sphi 0, %s67
      %s69 = sphi 0, %s67
      %s70 = sphi 0, %s69
      %s84 = sphi 0, %s70
      %s88 = sphi 0, %s88
      %s90 = sphi 0, %s88
      %s91 = sphi 0, %s90
      %s105 = sphi 0, %s91
      %s109 = sphi 0, %s109
      %s111 = sphi 0, %s109
      %s112 = sphi 0, %s111
      %s126 = sphi 0, %s112
      %s130 = sphi 0, %s130
      %s132 = sphi 0, %s130
      %s133 = sphi 0, %s132
      %s147 = sphi 0, %s133
      %s151 = sphi 0, %s151
      %s153 = sphi 0, %s151
      %s154 = sphi 0, %s153
      %s168 = sphi 0, %s154
      %s172 = sphi 0, %s172
      %s174 = sphi 0, %s172
      %s175 = sphi 0, %s174
      %s189 = sphi 0, %s175
      %s193 = sphi 0, %s193
      %s195 = sphi 0, %s193
      %s196 = sphi 0, %s195
      %s210 = sphi 0, %s196
      %s216 = sphi 0, %s218
      %s219 = sphi 0, %s216
      %s220 = sphi 0, %s219
      %s236 = sphi 0, %s220
      %s242 = sphi 0, %s244
      %s245 = sphi 0, %s242
      %s246 = sphi 0, %s245
      %s262 = sphi 0, %s246
      %s268 = sphi 0, %s270
      %s271 = sphi 0, %s268
      %s272 = sphi 0, %s271
      %s288 = sphi 0, %s272
      %s294 = sphi 0, %s296
      %s297 = sphi 0, %s294
      %s298 = sphi 0, %s297
      %s314 = sphi 0, %s298
    $region4: #{feature_transform_net.6} parent=1 // loop_header_branch
      %22 = sbr.rel (%p20) target = $region8
    $region5: #{feature_transform_net.6} parent=1 // loop_body
      %s24 = ssub.s32 %s19, 1
      %s25 = ssub.s32 %s19, 2
      %s32 = sadd.s32 1, %s27
      %p33 = scmp.ge.s32.totalorder %s32, 1
      %s34 = scalar_select %p33, 0, %s32
      %s35 = sadd.s32 1, %s26
      %s36 = scalar_select %p33, %s35, %s26
      %p37 = scmp.ge.s32.totalorder %s36, 2
      %s38 = scalar_select %p37, 0, %s36
      %s39 = ssub.s32 %s26, %s38
      %s40 = ssub.s32 %s27, %s34
      %s41 = sor.u32 %s39, %s40
      %p42 = scmp.eq.s32.totalorder %s41, 0
      %s44 = sadd.s32 %s43, 1
      %s45 = scalar_select %p42, %s43, %s44
      %p48 = pneg %p42
      %p49 = scmp.eq.s32.totalorder %s19, 1
      %p50 = por %p48, %p49
      %p51 = scmp.ne.s32.totalorder %s43, %s46
      %p52 = scmp.eq.s32.totalorder %s19, 0
      %p53 = por %p51, %p52
      %p54 = scmp.ne.s32.totalorder %s43, %s46
      %p55 = scmp.eq.s32.totalorder %s24, 1
      %p56 = por %p54, %p55
      %p57 = scmp.ne.s32.totalorder %s46, %s47
      %p58 = scmp.eq.s32.totalorder %s24, 0
      %p59 = por %p57, %p58
      %p60 = scmp.ne.s32.totalorder %s46, %s47
      %p61 = scmp.eq.s32.totalorder %s25, 1
      %p62 = por %p60, %p61
      %p64 = scmp.ne.s32.totalorder %s47, %s63
      %p65 = scmp.eq.s32.totalorder %s25, 0
      %p66 = por %p64, %p65
      %s68 = sadd.s32 %s67, 1
      %p71 = scmp.eq.s32.totalorder %s19, 1
      %p72 = scmp.ne.s32.totalorder %s67, %s69
      %p73 = scmp.eq.s32.totalorder %s19, 0
      %p74 = por %p72, %p73
      %p75 = scmp.ne.s32.totalorder %s67, %s69
      %p76 = scmp.eq.s32.totalorder %s24, 1
      %p77 = por %p75, %p76
      %p78 = scmp.ne.s32.totalorder %s69, %s70
      %p79 = scmp.eq.s32.totalorder %s24, 0
      %p80 = por %p78, %p79
      %p81 = scmp.ne.s32.totalorder %s69, %s70
      %p82 = scmp.eq.s32.totalorder %s25, 1
      %p83 = por %p81, %p82
      %p85 = scmp.ne.s32.totalorder %s70, %s84
      %p86 = scmp.eq.s32.totalorder %s25, 0
      %p87 = por %p85, %p86
      %s89 = sadd.s32 %s88, 1
      %p92 = scmp.eq.s32.totalorder %s19, 1
      %p93 = scmp.ne.s32.totalorder %s88, %s90
      %p94 = scmp.eq.s32.totalorder %s19, 0
      %p95 = por %p93, %p94
      %p96 = scmp.ne.s32.totalorder %s88, %s90
      %p97 = scmp.eq.s32.totalorder %s24, 1
      %p98 = por %p96, %p97
      %p99 = scmp.ne.s32.totalorder %s90, %s91
      %p100 = scmp.eq.s32.totalorder %s24, 0
      %p101 = por %p99, %p100
      %p102 = scmp.ne.s32.totalorder %s90, %s91
      %p103 = scmp.eq.s32.totalorder %s25, 1
      %p104 = por %p102, %p103
      %p106 = scmp.ne.s32.totalorder %s91, %s105
      %p107 = scmp.eq.s32.totalorder %s25, 0
      %p108 = por %p106, %p107
      %s110 = sadd.s32 %s109, 1
      %p113 = scmp.eq.s32.totalorder %s19, 1
      %p114 = scmp.ne.s32.totalorder %s109, %s111
      %p115 = scmp.eq.s32.totalorder %s19, 0
      %p116 = por %p114, %p115
      %p117 = scmp.ne.s32.totalorder %s109, %s111
      %p118 = scmp.eq.s32.totalorder %s24, 1
      %p119 = por %p117, %p118
      %p120 = scmp.ne.s32.totalorder %s111, %s112
      %p121 = scmp.eq.s32.totalorder %s24, 0
      %p122 = por %p120, %p121
      %p123 = scmp.ne.s32.totalorder %s111, %s112
      %p124 = scmp.eq.s32.totalorder %s25, 1
      %p125 = por %p123, %p124
      %p127 = scmp.ne.s32.totalorder %s112, %s126
      %p128 = scmp.eq.s32.totalorder %s25, 0
      %p129 = por %p127, %p128
      %s131 = sadd.s32 %s130, 1
      %p134 = scmp.eq.s32.totalorder %s19, 1
      %p135 = scmp.ne.s32.totalorder %s130, %s132
      %p136 = scmp.eq.s32.totalorder %s19, 0
      %p137 = por %p135, %p136
      %p138 = scmp.ne.s32.totalorder %s130, %s132
      %p139 = scmp.eq.s32.totalorder %s24, 1
      %p140 = por %p138, %p139
      %p141 = scmp.ne.s32.totalorder %s132, %s133
      %p142 = scmp.eq.s32.totalorder %s24, 0
      %p143 = por %p141, %p142
      %p144 = scmp.ne.s32.totalorder %s132, %s133
      %p145 = scmp.eq.s32.totalorder %s25, 1
      %p146 = por %p144, %p145
      %p148 = scmp.ne.s32.totalorder %s133, %s147
      %p149 = scmp.eq.s32.totalorder %s25, 0
      %p150 = por %p148, %p149
      %s152 = sadd.s32 %s151, 1
      %p155 = scmp.eq.s32.totalorder %s19, 1
      %p156 = scmp.ne.s32.totalorder %s151, %s153
      %p157 = scmp.eq.s32.totalorder %s19, 0
      %p158 = por %p156, %p157
      %p159 = scmp.ne.s32.totalorder %s151, %s153
      %p160 = scmp.eq.s32.totalorder %s24, 1
      %p161 = por %p159, %p160
      %p162 = scmp.ne.s32.totalorder %s153, %s154
      %p163 = scmp.eq.s32.totalorder %s24, 0
      %p164 = por %p162, %p163
      %p165 = scmp.ne.s32.totalorder %s153, %s154
      %p166 = scmp.eq.s32.totalorder %s25, 1
      %p167 = por %p165, %p166
      %p169 = scmp.ne.s32.totalorder %s154, %s168
      %p170 = scmp.eq.s32.totalorder %s25, 0
      %p171 = por %p169, %p170
      %s173 = sadd.s32 %s172, 1
      %p176 = scmp.eq.s32.totalorder %s19, 1
      %p177 = scmp.ne.s32.totalorder %s172, %s174
      %p178 = scmp.eq.s32.totalorder %s19, 0
      %p179 = por %p177, %p178
      %p180 = scmp.ne.s32.totalorder %s172, %s174
      %p181 = scmp.eq.s32.totalorder %s24, 1
      %p182 = por %p180, %p181
      %p183 = scmp.ne.s32.totalorder %s174, %s175
      %p184 = scmp.eq.s32.totalorder %s24, 0
      %p185 = por %p183, %p184
      %p186 = scmp.ne.s32.totalorder %s174, %s175
      %p187 = scmp.eq.s32.totalorder %s25, 1
      %p188 = por %p186, %p187
      %p190 = scmp.ne.s32.totalorder %s175, %s189
      %p191 = scmp.eq.s32.totalorder %s25, 0
      %p192 = por %p190, %p191
      %s194 = sadd.s32 %s193, 1
      %p197 = scmp.eq.s32.totalorder %s19, 1
      %p198 = scmp.ne.s32.totalorder %s193, %s195
      %p199 = scmp.eq.s32.totalorder %s19, 0
      %p200 = por %p198, %p199
      %p201 = scmp.ne.s32.totalorder %s193, %s195
      %p202 = scmp.eq.s32.totalorder %s24, 1
      %p203 = por %p201, %p202
      %p204 = scmp.ne.s32.totalorder %s195, %s196
      %p205 = scmp.eq.s32.totalorder %s24, 0
      %p206 = por %p204, %p205
      %p207 = scmp.ne.s32.totalorder %s195, %s196
      %p208 = scmp.eq.s32.totalorder %s25, 1
      %p209 = por %p207, %p208
      %p211 = scmp.ne.s32.totalorder %s196, %s210
      %p212 = scmp.eq.s32.totalorder %s25, 0
      %p213 = por %p211, %p212
      %s214 = ssub.s32 %s26, %s38
      %p215 = scmp.eq.s32.totalorder %s214, 0
      %s217 = sadd.s32 %s216, 1
      %s218 = scalar_select %p215, %s216, %s217
      %p221 = pneg %p215
      %p222 = scmp.eq.s32.totalorder %s19, 1
      %p223 = por %p221, %p222
      %p224 = scmp.ne.s32.totalorder %s216, %s219
      %p225 = scmp.eq.s32.totalorder %s19, 0
      %p226 = por %p224, %p225
      %p227 = scmp.ne.s32.totalorder %s216, %s219
      %p228 = scmp.eq.s32.totalorder %s24, 1
      %p229 = por %p227, %p228
      %p230 = scmp.ne.s32.totalorder %s219, %s220
      %p231 = scmp.eq.s32.totalorder %s24, 0
      %p232 = por %p230, %p231
      %p233 = scmp.ne.s32.totalorder %s219, %s220
      %p234 = scmp.eq.s32.totalorder %s25, 1
      %p235 = por %p233, %p234
      %p237 = scmp.ne.s32.totalorder %s220, %s236
      %p238 = scmp.eq.s32.totalorder %s25, 0
      %p239 = por %p237, %p238
      %s240 = ssub.s32 %s26, %s38
      %p241 = scmp.eq.s32.totalorder %s240, 0
      %s243 = sadd.s32 %s242, 1
      %s244 = scalar_select %p241, %s242, %s243
      %p247 = pneg %p241
      %p248 = scmp.eq.s32.totalorder %s19, 1
      %p249 = por %p247, %p248
      %p250 = scmp.ne.s32.totalorder %s242, %s245
      %p251 = scmp.eq.s32.totalorder %s19, 0
      %p252 = por %p250, %p251
      %p253 = scmp.ne.s32.totalorder %s242, %s245
      %p254 = scmp.eq.s32.totalorder %s24, 1
      %p255 = por %p253, %p254
      %p256 = scmp.ne.s32.totalorder %s245, %s246
      %p257 = scmp.eq.s32.totalorder %s24, 0
      %p258 = por %p256, %p257
      %p259 = scmp.ne.s32.totalorder %s245, %s246
      %p260 = scmp.eq.s32.totalorder %s25, 1
      %p261 = por %p259, %p260
      %p263 = scmp.ne.s32.totalorder %s246, %s262
      %p264 = scmp.eq.s32.totalorder %s25, 0
      %p265 = por %p263, %p264
      %s266 = ssub.s32 %s26, %s38
      %p267 = scmp.eq.s32.totalorder %s266, 0
      %s269 = sadd.s32 %s268, 1
      %s270 = scalar_select %p267, %s268, %s269
      %p273 = pneg %p267
      %p274 = scmp.eq.s32.totalorder %s19, 1
      %p275 = por %p273, %p274
      %p276 = scmp.ne.s32.totalorder %s268, %s271
      %p277 = scmp.eq.s32.totalorder %s19, 0
      %p278 = por %p276, %p277
      %p279 = scmp.ne.s32.totalorder %s268, %s271
      %p280 = scmp.eq.s32.totalorder %s24, 1
      %p281 = por %p279, %p280
      %p282 = scmp.ne.s32.totalorder %s271, %s272
      %p283 = scmp.eq.s32.totalorder %s24, 0
      %p284 = por %p282, %p283
      %p285 = scmp.ne.s32.totalorder %s271, %s272
      %p286 = scmp.eq.s32.totalorder %s25, 1
      %p287 = por %p285, %p286
      %p289 = scmp.ne.s32.totalorder %s272, %s288
      %p290 = scmp.eq.s32.totalorder %s25, 0
      %p291 = por %p289, %p290
      %s292 = ssub.s32 %s26, %s38
      %p293 = scmp.eq.s32.totalorder %s292, 0
      %s295 = sadd.s32 %s294, 1
      %s296 = scalar_select %p293, %s294, %s295
      %p299 = pneg %p293
      %p300 = scmp.eq.s32.totalorder %s19, 1
      %p301 = por %p299, %p300
      %p302 = scmp.ne.s32.totalorder %s294, %s297
      %p303 = scmp.eq.s32.totalorder %s19, 0
      %p304 = por %p302, %p303
      %p305 = scmp.ne.s32.totalorder %s294, %s297
      %p306 = scmp.eq.s32.totalorder %s24, 1
      %p307 = por %p305, %p306
      %p308 = scmp.ne.s32.totalorder %s297, %s298
      %p309 = scmp.eq.s32.totalorder %s24, 0
      %p310 = por %p308, %p309
      %p311 = scmp.ne.s32.totalorder %s297, %s298
      %p312 = scmp.eq.s32.totalorder %s25, 1
      %p313 = por %p311, %p312
      %p315 = scmp.ne.s32.totalorder %s298, %s314
      %p316 = scmp.eq.s32.totalorder %s25, 0
      %p317 = por %p315, %p316
      %p318 = scmp.le.s32.totalorder 1, %s19
      %p319 = scmp.lt.s32.totalorder %s19, 3
      %p320 = pnand %p318, %p319
      %p321 = pneg %p320
      // Predicated region
      $region9: #{feature_transform_net.6} parent=5 // pred_check
        _
      $region10: #{feature_transform_net.6} parent=5 // pred_check_branch
        %323 = sbr.rel (%p320) target = $region12
      $region11: #{feature_transform_net.6} parent=5 // pred_region
        %s324 = ssub.s32 %s19, 1
        // Predicated region
        $region13: #{feature_transform_net.6} parent=11 // pred_check
          %p325 = pneg %p80
        $region14: #{feature_transform_net.6} parent=11 // pred_check_branch
          %327 = sbr.rel (%p325) target = $region16
        $region15: #{feature_transform_net.6} parent=11 // pred_region
          %329 = vsyncadd [#allocation3], 0
          %s331 = sshll.u32 %s1, 4
          %s332 = int_to_ptr.hbm [resolvable:$true] %s331
          %s333 = sshll.u32 [#allocation2], 4
          %s334 = int_to_ptr.vmem [resolvable:$true] %s333
          %336 = dma.hbm_to_vmem [thread:$0]  %s332, 64, %s334, [#allocation3]
        $region16: #{feature_transform_net.6} parent=11 // pred_fallthru
          _
        // Predicated region
        $region17: #{feature_transform_net.6} parent=11 // pred_check
          %p337 = pneg %p101
        $region18: #{feature_transform_net.6} parent=11 // pred_check_branch
          %339 = sbr.rel (%p337) target = $region20
        $region19: #{feature_transform_net.6} parent=11 // pred_region
          _
        $region20: #{feature_transform_net.6} parent=11 // pred_fallthru
          _
        // Predicated region
        $region21: #{feature_transform_net.6} parent=11 // pred_check
          %p340 = pneg %p122
        $region22: #{feature_transform_net.6} parent=11 // pred_check_branch
          %342 = sbr.rel (%p340) target = $region24
        $region23: #{feature_transform_net.6} parent=11 // pred_region
          _
        $region24: #{feature_transform_net.6} parent=11 // pred_fallthru
          _
        // Predicated region
        $region25: #{feature_transform_net.6} parent=11 // pred_check
          %p343 = pneg %p143
        $region26: #{feature_transform_net.6} parent=11 // pred_check_branch
          %345 = sbr.rel (%p343) target = $region28
        $region27: #{feature_transform_net.6} parent=11 // pred_region
          _
        $region28: #{feature_transform_net.6} parent=11 // pred_fallthru
          _
        // Predicated region
        $region29: #{feature_transform_net.6} parent=11 // pred_check
          %p346 = pneg %p164
        $region30: #{feature_transform_net.6} parent=11 // pred_check_branch
          %348 = sbr.rel (%p346) target = $region32
        $region31: #{feature_transform_net.6} parent=11 // pred_region
          _
        $region32: #{feature_transform_net.6} parent=11 // pred_fallthru
          _
        // Predicated region
        $region33: #{feature_transform_net.6} parent=11 // pred_check
          %p349 = pneg %p185
        $region34: #{feature_transform_net.6} parent=11 // pred_check_branch
          %351 = sbr.rel (%p349) target = $region36
        $region35: #{feature_transform_net.6} parent=11 // pred_region
          _
        $region36: #{feature_transform_net.6} parent=11 // pred_fallthru
          _
        // Predicated region
        $region37: #{feature_transform_net.6} parent=11 // pred_check
          %p352 = pneg %p206
        $region38: #{feature_transform_net.6} parent=11 // pred_check_branch
          %354 = sbr.rel (%p352) target = $region40
        $region39: #{feature_transform_net.6} parent=11 // pred_region
          _
        $region40: #{feature_transform_net.6} parent=11 // pred_fallthru
          _
      $region12: #{feature_transform_net.6} parent=5 // pred_fallthru
        _
      %p355 = scmp.lt.s32.totalorder %s19, 2
      // Predicated region
      $region41: #{feature_transform_net.6} parent=5 // pred_check
        %p356 = pneg %p355
      $region42: #{feature_transform_net.6} parent=5 // pred_check_branch
        %358 = sbr.rel (%p356) target = $region44
      $region43: #{feature_transform_net.6} parent=5 // pred_region
        // Predicated region
        $region45: #{feature_transform_net.6} parent=43 // pred_check
          %p359 = pneg %p53
        $region46: #{feature_transform_net.6} parent=43 // pred_check_branch
          %361 = sbr.rel (%p359) target = $region48
        $region47: #{feature_transform_net.6} parent=43 // pred_region
          %s362 = smul.u32 2, %s27
          %p363 = scmp.lt.s32.totalorder %s26, 1
          %s364 = scalar_select %p363, %s26, 1
          %p365 = scmp.lt.s32.totalorder %s362, 1
          %s366 = scalar_select %p365, %s362, 1
          %s367 = smul.addr %s364, 2
          %s368 = sadd.s32 %s366, %s367
          %s369 = smul.addr %s368, 8
          %s370 = scalar_lea.vmem %s0, %s369
          %s371 = smul.u32 2, %s27
        $region48: #{feature_transform_net.6} parent=43 // pred_fallthru
          _
      $region44: #{feature_transform_net.6} parent=5 // pred_fallthru
        _
      %p372 = scmp.le.s32.totalorder 1, %s19
      %p373 = scmp.lt.s32.totalorder %s19, 3
      %p374 = pnand %p372, %p373
      %p375 = pneg %p374
      // Predicated region
      $region49: #{feature_transform_net.6} parent=5 // pred_check
        _
      $region50: #{feature_transform_net.6} parent=5 // pred_check_branch
        %377 = sbr.rel (%p374) target = $region52
      $region51: #{feature_transform_net.6} parent=5 // pred_region
        %s378 = ssub.s32 %s19, 1
        // Predicated region
        $region53: #{feature_transform_net.6} parent=51 // pred_check
          %p379 = pneg %p80
        $region54: #{feature_transform_net.6} parent=51 // pred_check_branch
          %381 = sbr.rel (%p379) target = $region56
        $region55: #{feature_transform_net.6} parent=51 // pred_region
          %383 = dma.done [#allocation3], 64
        $region56: #{feature_transform_net.6} parent=51 // pred_fallthru
          _
        %s384 = smul.u32 2, %s29
        %p385 = scmp.lt.s32.totalorder %s28, 1
        %s386 = scalar_select %p385, %s28, 1
        %p387 = scmp.lt.s32.totalorder %s384, 1
        %s388 = scalar_select %p387, %s384, 1
        %s389 = smul.addr %s386, 2
        %s390 = sadd.s32 %s388, %s389
        %s391 = smul.addr %s390, 8
        %s392 = scalar_lea.vmem %s0, %s391
        %p393 = pneg %p59
        %p394 = pneg %p56
        %p395 = pneg %p80
        %p396 = pneg %p77
        %p397 = pneg %p101
        %p398 = pneg %p98
        %p399 = pneg %p122
        %p400 = pneg %p119
        %p401 = pneg %p143
        %p402 = pneg %p140
        %p403 = pneg %p164
        %p404 = pneg %p161
        %p405 = pneg %p185
        %p406 = pneg %p182
        %p407 = pneg %p206
        %p408 = pneg %p203
        %p409 = pneg %p232
        %p410 = pneg %p229
        %p411 = scmp.lt.s32.totalorder %s28, 1
        %s412 = scalar_select %p411, %s28, 1
        %s413 = smul.addr %s412, 8
        %s414 = scalar_lea.vmem %s8, %s413
        %p415 = pneg %p258
        %p416 = pneg %p255
        %p417 = scmp.lt.s32.totalorder %s28, 1
        %s418 = scalar_select %p417, %s28, 1
        %s419 = smul.addr %s418, 8
        %s420 = scalar_lea.vmem %s9, %s419
        %p421 = pneg %p284
        %p422 = pneg %p281
        %p423 = scmp.lt.s32.totalorder %s28, 1
        %s424 = scalar_select %p423, %s28, 1
        %s425 = smul.addr %s424, 8
        %s426 = scalar_lea.vmem %s10, %s425
        %p427 = pneg %p310
        %p428 = pneg %p307
        %p429 = scmp.lt.s32.totalorder %s28, 1
        %s430 = scalar_select %p429, %s28, 1
        %s431 = smul.addr %s430, 8
        %s432 = scalar_lea.vmem %s11, %s431
        %s433 = smul.u32 2, %s29
        %p434 = scmp.lt.s32.totalorder %s28, 1
        %s435 = scalar_select %p434, %s28, 1
        %p436 = scmp.lt.s32.totalorder %s433, 1
        %s437 = scalar_select %p436, %s433, 1
        %s438 = smul.addr %s435, 2
        %s439 = sadd.s32 %s437, %s438
        %s440 = smul.addr %s439, 8
        %s441 = scalar_lea.vmem %s0, %s440
        %s442 = smul.u32 2, %s29
        %p443 = scmp.lt.s32.totalorder %s28, 1
        %s444 = scalar_select %p443, %s28, 1
        %s445 = smul.addr %s444, 8
        %s446 = scalar_lea.vmem %s8, %s445
        %p447 = scmp.lt.s32.totalorder %s28, 1
        %s448 = scalar_select %p447, %s28, 1
        %s449 = smul.addr %s448, 8
        %s450 = scalar_lea.vmem %s9, %s449
        %p451 = scmp.lt.s32.totalorder %s28, 1
        %s452 = scalar_select %p451, %s28, 1
        %s453 = smul.addr %s452, 8
        %s454 = scalar_lea.vmem %s10, %s453
        %p455 = scmp.lt.s32.totalorder %s28, 1
        %s456 = scalar_select %p455, %s28, 1
        %s457 = smul.addr %s456, 8
        %s458 = scalar_lea.vmem %s11, %s457
        %v460 = vld [vmem:[%s441] sm:$0xff]
        %v461 = vld [vmem:[%s441 + $0x8] sm:$0xff]
        %v462 = vld [vmem:[#allocation2] sm:$0xf]
        %464 = vset.pattern.permute.xlu0 0
        %465 = vperm.xlu0 %464, %v460
        %v466 = vpop.permute.xlu0 %465
        %469 = vset.pattern.permute.xlu0 0
        %470 = vperm.xlu0 %469, %v461
        %v471 = vpop.permute.xlu0 %470
        %v473 = vperm.slane %v462, 0
        %v474 = vmul.f32 %v466, %v473
        %v475 = vmul.f32 %v471, %v473
        %476 = vset.pattern.permute.xlu0 1
        %477 = vperm.xlu0 %476, %v460
        %v478 = vpop.permute.xlu0 %477
        %480 = vset.pattern.permute.xlu0 1
        %481 = vperm.xlu0 %480, %v461
        %v482 = vpop.permute.xlu0 %481
        %v484 = vperm.slane %v462, 1
        %v485 = vmul.f32 %v478, %v484
        %v486 = vmul.f32 %v482, %v484
        %v487 = vadd.f32 %v474, %v485
        %v488 = vadd.f32 %v475, %v486
        %489 = vset.pattern.permute.xlu0 2
        %490 = vperm.xlu0 %489, %v460
        %v491 = vpop.permute.xlu0 %490
        %493 = vset.pattern.permute.xlu0 2
        %494 = vperm.xlu0 %493, %v461
        %v495 = vpop.permute.xlu0 %494
        %v497 = vperm.slane %v462, 2
        %v498 = vmul.f32 %v491, %v497
        %v499 = vmul.f32 %v495, %v497
        %v500 = vadd.f32 %v487, %v498
        %v501 = vadd.f32 %v488, %v499
        %502 = vset.pattern.permute.xlu0 3
        %503 = vperm.xlu0 %502, %v460
        %v504 = vpop.permute.xlu0 %503
        %506 = vset.pattern.permute.xlu0 3
        %507 = vperm.xlu0 %506, %v461
        %v508 = vpop.permute.xlu0 %507
        %v510 = vperm.slane %v462, 3
        %v511 = vmul.f32 %v504, %v510
        %v512 = vmul.f32 %v508, %v510
        %v513 = vadd.f32 %v500, %v511
        %v514 = vadd.f32 %v501, %v512
        %v515 = vld [vmem:[%s2] sm:$0x1]
        %v517 = vperm.slane %v515, 0
        %v519 = vmul.f32 %v513, %v517
        %v520 = vmul.f32 %v514, %v517
        %v521 = vld [vmem:[%s3] sm:$0x1]
        %v523 = vperm.slane %v521, 0
        %v525 = vadd.f32 %v519, %v523
        %v526 = vadd.f32 %v520, %v523
        %v527 = vmax.f32 %v525, 0.0
        %v528 = vmax.f32 %v526, 0.0
        %v529 = vpack.c.bf16 %v528, %v527
        %v530 = vld [vmem:[%s4] sm:$0xf]
        %v531 = vld [vmem:[%s4 + $0x4] sm:$0xf]
        %v532 = vld [vmem:[%s4 + $0x8] sm:$0xf]
        %v533 = vld [vmem:[%s4 + $0xc] sm:$0xf]
        %v534 = vld [vmem:[%s4 + $0x10] sm:$0xf]
        %v535 = vld [vmem:[%s4 + $0x14] sm:$0xf]
        %v536 = vld [vmem:[%s4 + $0x18] sm:$0xf]
        %v537 = vld [vmem:[%s4 + $0x1c] sm:$0xf]
        %v546 = vunpack.c.l.b16 %v530
        %v547 = vunpack.c.l.b16 %v531
        %v548 = vunpack.c.l.b16 %v532
        %v549 = vunpack.c.l.b16 %v533
        %v550 = vunpack.c.l.b16 %v534
        %v551 = vunpack.c.l.b16 %v535
        %v552 = vunpack.c.l.b16 %v536
        %v553 = vunpack.c.l.b16 %v537
        %v554 = vpack.c.b16 %v547, %v546
        %v555 = vpack.c.b16 %v549, %v548
        %v556 = vpack.c.b16 %v551, %v550
        %v557 = vpack.c.b16 %v553, %v552
        %vm562 = vcmask 523264
        %v564 = vsel %vm562, %v529, 0
        %566 = vmatpush.bf16.msra.mxu0 0
        %567 = vmatpush.bf16.msra.mxu0 0
        %568 = vmatpush.bf16.msra.mxu0 0
        %569 = vmatpush.bf16.msra.mxu0 0
        %570 = vmatpush.bf16.msra.mxu0 %v557
        %571 = vmatpush.bf16.msra.mxu0 %v556
        %572 = vmatpush.bf16.msra.mxu0 %v555
        %573 = vmatpush.bf16.msra.mxu0 %v554
        %574 = vmatmul.bf16.gmra.mxu0 %v564
        %v575 = vpop.f32.mrf.mxu0
        %v576 = vadd.f32 0.0, %v575
        %v577 = vpop.f32.mrf.mxu0
        %v578 = vadd.f32 0.0, %v577
        %579 = vdwg.mxu0
        %v580 = vld [vmem:[%s5] sm:$0x1]
        %v582 = vperm.slane %v580, 0
        %v584 = vmul.f32 %v576, %v582
        %v585 = vmul.f32 %v578, %v582
        %v586 = vld [vmem:[%s6] sm:$0x1]
        %v588 = vperm.slane %v586, 0
        %v590 = vadd.f32 %v584, %v588
        %v591 = vadd.f32 %v585, %v588
        %v592 = vmax.f32 %v590, 0.0
        %v593 = vmax.f32 %v591, 0.0
        %v594 = vpack.c.bf16 %v593, %v592
        %v595 = vld [vmem:[%s7] sm:$0xff]
        %v596 = vld [vmem:[%s7 + $0x8] sm:$0xff]
        %v597 = vld [vmem:[%s7 + $0x10] sm:$0xff]
        %v598 = vld [vmem:[%s7 + $0x18] sm:$0xff]
        %v599 = vld [vmem:[%s7 + $0x20] sm:$0xff]
        %v600 = vld [vmem:[%s7 + $0x28] sm:$0xff]
        %v601 = vld [vmem:[%s7 + $0x30] sm:$0xff]
        %v602 = vld [vmem:[%s7 + $0x38] sm:$0xff]
        %v603 = vld [vmem:[%s7 + $0x40] sm:$0xff]
        %v604 = vld [vmem:[%s7 + $0x48] sm:$0xff]
        %v605 = vld [vmem:[%s7 + $0x50] sm:$0xff]
        %v606 = vld [vmem:[%s7 + $0x58] sm:$0xff]
        %v607 = vld [vmem:[%s7 + $0x60] sm:$0xff]
        %v608 = vld [vmem:[%s7 + $0x68] sm:$0xff]
        %v609 = vld [vmem:[%s7 + $0x70] sm:$0xff]
        %v610 = vld [vmem:[%s7 + $0x78] sm:$0xff]
        %v611 = vld [vmem:[%s7 + $0x80] sm:$0xff]
        %v612 = vld [vmem:[%s7 + $0x88] sm:$0xff]
        %v613 = vld [vmem:[%s7 + $0x90] sm:$0xff]
        %v614 = vld [vmem:[%s7 + $0x98] sm:$0xff]
        %v615 = vld [vmem:[%s7 + $0xa0] sm:$0xff]
        %v616 = vld [vmem:[%s7 + $0xa8] sm:$0xff]
        %v617 = vld [vmem:[%s7 + $0xb0] sm:$0xff]
        %v618 = vld [vmem:[%s7 + $0xb8] sm:$0xff]
        %v619 = vld [vmem:[%s7 + $0xc0] sm:$0xff]
        %v620 = vld [vmem:[%s7 + $0xc8] sm:$0xff]
        %v621 = vld [vmem:[%s7 + $0xd0] sm:$0xff]
        %v622 = vld [vmem:[%s7 + $0xd8] sm:$0xff]
        %v623 = vld [vmem:[%s7 + $0xe0] sm:$0xff]
        %v624 = vld [vmem:[%s7 + $0xe8] sm:$0xff]
        %v625 = vld [vmem:[%s7 + $0xf0] sm:$0xff]
        %v626 = vld [vmem:[%s7 + $0xf8] sm:$0xff]
        %v627 = vld [vmem:[%s7 + $0x100] sm:$0xff]
        %v628 = vld [vmem:[%s7 + $0x108] sm:$0xff]
        %v629 = vld [vmem:[%s7 + $0x110] sm:$0xff]
        %v630 = vld [vmem:[%s7 + $0x118] sm:$0xff]
        %v631 = vld [vmem:[%s7 + $0x120] sm:$0xff]
        %v632 = vld [vmem:[%s7 + $0x128] sm:$0xff]
        %v633 = vld [vmem:[%s7 + $0x130] sm:$0xff]
        %v634 = vld [vmem:[%s7 + $0x138] sm:$0xff]
        %v635 = vld [vmem:[%s7 + $0x140] sm:$0xff]
        %v636 = vld [vmem:[%s7 + $0x148] sm:$0xff]
        %v637 = vld [vmem:[%s7 + $0x150] sm:$0xff]
        %v638 = vld [vmem:[%s7 + $0x158] sm:$0xff]
        %v639 = vld [vmem:[%s7 + $0x160] sm:$0xff]
        %v640 = vld [vmem:[%s7 + $0x168] sm:$0xff]
        %v641 = vld [vmem:[%s7 + $0x170] sm:$0xff]
        %v642 = vld [vmem:[%s7 + $0x178] sm:$0xff]
        %v643 = vld [vmem:[%s7 + $0x180] sm:$0xff]
        %v644 = vld [vmem:[%s7 + $0x188] sm:$0xff]
        %v645 = vld [vmem:[%s7 + $0x190] sm:$0xff]
        %v646 = vld [vmem:[%s7 + $0x198] sm:$0xff]
        %v647 = vld [vmem:[%s7 + $0x1a0] sm:$0xff]
        %v648 = vld [vmem:[%s7 + $0x1a8] sm:$0xff]
        %v649 = vld [vmem:[%s7 + $0x1b0] sm:$0xff]
        %v650 = vld [vmem:[%s7 + $0x1b8] sm:$0xff]
        %v651 = vld [vmem:[%s7 + $0x1c0] sm:$0xff]
        %v652 = vld [vmem:[%s7 + $0x1c8] sm:$0xff]
        %v653 = vld [vmem:[%s7 + $0x1d0] sm:$0xff]
        %v654 = vld [vmem:[%s7 + $0x1d8] sm:$0xff]
        %v655 = vld [vmem:[%s7 + $0x1e0] sm:$0xff]
        %v656 = vld [vmem:[%s7 + $0x1e8] sm:$0xff]
        %v657 = vld [vmem:[%s7 + $0x1f0] sm:$0xff]
        %v658 = vld [vmem:[%s7 + $0x1f8] sm:$0xff]
        %v723 = vunpack.c.l.b16 %v595
        %v724 = vunpack.c.h.b16 %v595
        %v725 = vunpack.c.l.b16 %v596
        %v726 = vunpack.c.h.b16 %v596
        %v727 = vunpack.c.l.b16 %v597
        %v728 = vunpack.c.h.b16 %v597
        %v729 = vunpack.c.l.b16 %v598
        %v730 = vunpack.c.h.b16 %v598
        %v731 = vunpack.c.l.b16 %v599
        %v732 = vunpack.c.h.b16 %v599
        %v733 = vunpack.c.l.b16 %v600
        %v734 = vunpack.c.h.b16 %v600
        %v735 = vunpack.c.l.b16 %v601
        %v736 = vunpack.c.h.b16 %v601
        %v737 = vunpack.c.l.b16 %v602
        %v738 = vunpack.c.h.b16 %v602
        %v739 = vunpack.c.l.b16 %v603
        %v740 = vunpack.c.h.b16 %v603
        %v741 = vunpack.c.l.b16 %v604
        %v742 = vunpack.c.h.b16 %v604
        %v743 = vunpack.c.l.b16 %v605
        %v744 = vunpack.c.h.b16 %v605
        %v745 = vunpack.c.l.b16 %v606
        %v746 = vunpack.c.h.b16 %v606
        %v747 = vunpack.c.l.b16 %v607
        %v748 = vunpack.c.h.b16 %v607
        %v749 = vunpack.c.l.b16 %v608
        %v750 = vunpack.c.h.b16 %v608
        %v751 = vunpack.c.l.b16 %v609
        %v752 = vunpack.c.h.b16 %v609
        %v753 = vunpack.c.l.b16 %v610
        %v754 = vunpack.c.h.b16 %v610
        %v755 = vunpack.c.l.b16 %v611
        %v756 = vunpack.c.h.b16 %v611
        %v757 = vunpack.c.l.b16 %v612
        %v758 = vunpack.c.h.b16 %v612
        %v759 = vunpack.c.l.b16 %v613
        %v760 = vunpack.c.h.b16 %v613
        %v761 = vunpack.c.l.b16 %v614
        %v762 = vunpack.c.h.b16 %v614
        %v763 = vunpack.c.l.b16 %v615
        %v764 = vunpack.c.h.b16 %v615
        %v765 = vunpack.c.l.b16 %v616
        %v766 = vunpack.c.h.b16 %v616
        %v767 = vunpack.c.l.b16 %v617
        %v768 = vunpack.c.h.b16 %v617
        %v769 = vunpack.c.l.b16 %v618
        %v770 = vunpack.c.h.b16 %v618
        %v771 = vunpack.c.l.b16 %v619
        %v772 = vunpack.c.h.b16 %v619
        %v773 = vunpack.c.l.b16 %v620
        %v774 = vunpack.c.h.b16 %v620
        %v775 = vunpack.c.l.b16 %v621
        %v776 = vunpack.c.h.b16 %v621
        %v777 = vunpack.c.l.b16 %v622
        %v778 = vunpack.c.h.b16 %v622
        %v779 = vunpack.c.l.b16 %v623
        %v780 = vunpack.c.h.b16 %v623
        %v781 = vunpack.c.l.b16 %v624
        %v782 = vunpack.c.h.b16 %v624
        %v783 = vunpack.c.l.b16 %v625
        %v784 = vunpack.c.h.b16 %v625
        %v785 = vunpack.c.l.b16 %v626
        %v786 = vunpack.c.h.b16 %v626
        %v787 = vunpack.c.l.b16 %v627
        %v788 = vunpack.c.h.b16 %v627
        %v789 = vunpack.c.l.b16 %v628
        %v790 = vunpack.c.h.b16 %v628
        %v791 = vunpack.c.l.b16 %v629
        %v792 = vunpack.c.h.b16 %v629
        %v793 = vunpack.c.l.b16 %v630
        %v794 = vunpack.c.h.b16 %v630
        %v795 = vunpack.c.l.b16 %v631
        %v796 = vunpack.c.h.b16 %v631
        %v797 = vunpack.c.l.b16 %v632
        %v798 = vunpack.c.h.b16 %v632
        %v799 = vunpack.c.l.b16 %v633
        %v800 = vunpack.c.h.b16 %v633
        %v801 = vunpack.c.l.b16 %v634
        %v802 = vunpack.c.h.b16 %v634
        %v803 = vunpack.c.l.b16 %v635
        %v804 = vunpack.c.h.b16 %v635
        %v805 = vunpack.c.l.b16 %v636
        %v806 = vunpack.c.h.b16 %v636
        %v807 = vunpack.c.l.b16 %v637
        %v808 = vunpack.c.h.b16 %v637
        %v809 = vunpack.c.l.b16 %v638
        %v810 = vunpack.c.h.b16 %v638
        %v811 = vunpack.c.l.b16 %v639
        %v812 = vunpack.c.h.b16 %v639
        %v813 = vunpack.c.l.b16 %v640
        %v814 = vunpack.c.h.b16 %v640
        %v815 = vunpack.c.l.b16 %v641
        %v816 = vunpack.c.h.b16 %v641
        %v817 = vunpack.c.l.b16 %v642
        %v818 = vunpack.c.h.b16 %v642
        %v819 = vunpack.c.l.b16 %v643
        %v820 = vunpack.c.h.b16 %v643
        %v821 = vunpack.c.l.b16 %v644
        %v822 = vunpack.c.h.b16 %v644
        %v823 = vunpack.c.l.b16 %v645
        %v824 = vunpack.c.h.b16 %v645
        %v825 = vunpack.c.l.b16 %v646
        %v826 = vunpack.c.h.b16 %v646
        %v827 = vunpack.c.l.b16 %v647
        %v828 = vunpack.c.h.b16 %v647
        %v829 = vunpack.c.l.b16 %v648
        %v830 = vunpack.c.h.b16 %v648
        %v831 = vunpack.c.l.b16 %v649
        %v832 = vunpack.c.h.b16 %v649
        %v833 = vunpack.c.l.b16 %v650
        %v834 = vunpack.c.h.b16 %v650
        %v835 = vunpack.c.l.b16 %v651
        %v836 = vunpack.c.h.b16 %v651
        %v837 = vunpack.c.l.b16 %v652
        %v838 = vunpack.c.h.b16 %v652
        %v839 = vunpack.c.l.b16 %v653
        %v840 = vunpack.c.h.b16 %v653
        %v841 = vunpack.c.l.b16 %v654
        %v842 = vunpack.c.h.b16 %v654
        %v843 = vunpack.c.l.b16 %v655
        %v844 = vunpack.c.h.b16 %v655
        %v845 = vunpack.c.l.b16 %v656
        %v846 = vunpack.c.h.b16 %v656
        %v847 = vunpack.c.l.b16 %v657
        %v848 = vunpack.c.h.b16 %v657
        %v849 = vunpack.c.l.b16 %v658
        %v850 = vunpack.c.h.b16 %v658
        %v851 = vpack.c.b16 %v731, %v723
        %v852 = vpack.c.b16 %v732, %v724
        %v853 = vpack.c.b16 %v733, %v725
        %v854 = vpack.c.b16 %v734, %v726
        %v855 = vpack.c.b16 %v735, %v727
        %v856 = vpack.c.b16 %v736, %v728
        %v857 = vpack.c.b16 %v737, %v729
        %v858 = vpack.c.b16 %v738, %v730
        %v859 = vpack.c.b16 %v747, %v739
        %v860 = vpack.c.b16 %v748, %v740
        %v861 = vpack.c.b16 %v749, %v741
        %v862 = vpack.c.b16 %v750, %v742
        %v863 = vpack.c.b16 %v751, %v743
        %v864 = vpack.c.b16 %v752, %v744
        %v865 = vpack.c.b16 %v753, %v745
        %v866 = vpack.c.b16 %v754, %v746
        %v867 = vpack.c.b16 %v763, %v755
        %v868 = vpack.c.b16 %v764, %v756
        %v869 = vpack.c.b16 %v765, %v757
        %v870 = vpack.c.b16 %v766, %v758
        %v871 = vpack.c.b16 %v767, %v759
        %v872 = vpack.c.b16 %v768, %v760
        %v873 = vpack.c.b16 %v769, %v761
        %v874 = vpack.c.b16 %v770, %v762
        %v875 = vpack.c.b16 %v779, %v771
        %v876 = vpack.c.b16 %v780, %v772
        %v877 = vpack.c.b16 %v781, %v773
        %v878 = vpack.c.b16 %v782, %v774
        %v879 = vpack.c.b16 %v783, %v775
        %v880 = vpack.c.b16 %v784, %v776
        %v881 = vpack.c.b16 %v785, %v777
        %v882 = vpack.c.b16 %v786, %v778
        %v883 = vpack.c.b16 %v795, %v787
        %v884 = vpack.c.b16 %v796, %v788
        %v885 = vpack.c.b16 %v797, %v789
        %v886 = vpack.c.b16 %v798, %v790
        %v887 = vpack.c.b16 %v799, %v791
        %v888 = vpack.c.b16 %v800, %v792
        %v889 = vpack.c.b16 %v801, %v793
        %v890 = vpack.c.b16 %v802, %v794
        %v891 = vpack.c.b16 %v811, %v803
        %v892 = vpack.c.b16 %v812, %v804
        %v893 = vpack.c.b16 %v813, %v805
        %v894 = vpack.c.b16 %v814, %v806
        %v895 = vpack.c.b16 %v815, %v807
        %v896 = vpack.c.b16 %v816, %v808
        %v897 = vpack.c.b16 %v817, %v809
        %v898 = vpack.c.b16 %v818, %v810
        %v899 = vpack.c.b16 %v827, %v819
        %v900 = vpack.c.b16 %v828, %v820
        %v901 = vpack.c.b16 %v829, %v821
        %v902 = vpack.c.b16 %v830, %v822
        %v903 = vpack.c.b16 %v831, %v823
        %v904 = vpack.c.b16 %v832, %v824
        %v905 = vpack.c.b16 %v833, %v825
        %v906 = vpack.c.b16 %v834, %v826
        %v907 = vpack.c.b16 %v843, %v835
        %v908 = vpack.c.b16 %v844, %v836
        %v909 = vpack.c.b16 %v845, %v837
        %v910 = vpack.c.b16 %v846, %v838
        %v911 = vpack.c.b16 %v847, %v839
        %v912 = vpack.c.b16 %v848, %v840
        %v913 = vpack.c.b16 %v849, %v841
        %v914 = vpack.c.b16 %v850, %v842
        %979 = vmatpush.bf16.msra.mxu0 %v907
        %980 = vmatpush.bf16.msra.mxu0 %v899
        %981 = vmatpush.bf16.msra.mxu0 %v891
        %982 = vmatpush.bf16.msra.mxu0 %v883
        %983 = vmatpush.bf16.msra.mxu0 %v875
        %984 = vmatpush.bf16.msra.mxu0 %v867
        %985 = vmatpush.bf16.msra.mxu0 %v859
        %986 = vmatpush.bf16.msra.mxu0 %v851
        %987 = vmatmul.bf16.gmra.mxu0 %v594
        %v988 = vpop.f32.mrf.mxu0
        %v989 = vadd.f32 0.0, %v988
        %v990 = vpop.f32.mrf.mxu0
        %v991 = vadd.f32 0.0, %v990
        %992 = vdwg.mxu0
        %993 = vmatpush.bf16.msra.mxu0 %v908
        %994 = vmatpush.bf16.msra.mxu0 %v900
        %995 = vmatpush.bf16.msra.mxu0 %v892
        %996 = vmatpush.bf16.msra.mxu0 %v884
        %997 = vmatpush.bf16.msra.mxu0 %v876
        %998 = vmatpush.bf16.msra.mxu0 %v868
        %999 = vmatpush.bf16.msra.mxu0 %v860
        %1000 = vmatpush.bf16.msra.mxu0 %v852
        %1001 = vmatmul.bf16.gmra.mxu0 %v594
        %v1002 = vpop.f32.mrf.mxu0
        %v1003 = vadd.f32 0.0, %v1002
        %v1004 = vpop.f32.mrf.mxu0
        %v1005 = vadd.f32 0.0, %v1004
        %1006 = vdwg.mxu0
        %1007 = vmatpush.bf16.msra.mxu0 %v909
        %1008 = vmatpush.bf16.msra.mxu0 %v901
        %1009 = vmatpush.bf16.msra.mxu0 %v893
        %1010 = vmatpush.bf16.msra.mxu0 %v885
        %1011 = vmatpush.bf16.msra.mxu0 %v877
        %1012 = vmatpush.bf16.msra.mxu0 %v869
        %1013 = vmatpush.bf16.msra.mxu0 %v861
        %1014 = vmatpush.bf16.msra.mxu0 %v853
        %1015 = vmatmul.bf16.gmra.mxu0 %v594
        %v1016 = vpop.f32.mrf.mxu0
        %v1017 = vadd.f32 0.0, %v1016
        %v1018 = vpop.f32.mrf.mxu0
        %v1019 = vadd.f32 0.0, %v1018
        %1020 = vdwg.mxu0
        %1021 = vmatpush.bf16.msra.mxu0 %v910
        %1022 = vmatpush.bf16.msra.mxu0 %v902
        %1023 = vmatpush.bf16.msra.mxu0 %v894
        %1024 = vmatpush.bf16.msra.mxu0 %v886
        %1025 = vmatpush.bf16.msra.mxu0 %v878
        %1026 = vmatpush.bf16.msra.mxu0 %v870
        %1027 = vmatpush.bf16.msra.mxu0 %v862
        %1028 = vmatpush.bf16.msra.mxu0 %v854
        %1029 = vmatmul.bf16.gmra.mxu0 %v594
        %v1030 = vpop.f32.mrf.mxu0
        %v1031 = vadd.f32 0.0, %v1030
        %v1032 = vpop.f32.mrf.mxu0
        %v1033 = vadd.f32 0.0, %v1032
        %1034 = vdwg.mxu0
        %1035 = vmatpush.bf16.msra.mxu0 %v911
        %1036 = vmatpush.bf16.msra.mxu0 %v903
        %1037 = vmatpush.bf16.msra.mxu0 %v895
        %1038 = vmatpush.bf16.msra.mxu0 %v887
        %1039 = vmatpush.bf16.msra.mxu0 %v879
        %1040 = vmatpush.bf16.msra.mxu0 %v871
        %1041 = vmatpush.bf16.msra.mxu0 %v863
        %1042 = vmatpush.bf16.msra.mxu0 %v855
        %1043 = vmatmul.bf16.gmra.mxu0 %v594
        %v1044 = vpop.f32.mrf.mxu0
        %v1045 = vadd.f32 0.0, %v1044
        %v1046 = vpop.f32.mrf.mxu0
        %v1047 = vadd.f32 0.0, %v1046
        %1048 = vdwg.mxu0
        %1049 = vmatpush.bf16.msra.mxu0 %v912
        %1050 = vmatpush.bf16.msra.mxu0 %v904
        %1051 = vmatpush.bf16.msra.mxu0 %v896
        %1052 = vmatpush.bf16.msra.mxu0 %v888
        %1053 = vmatpush.bf16.msra.mxu0 %v880
        %1054 = vmatpush.bf16.msra.mxu0 %v872
        %1055 = vmatpush.bf16.msra.mxu0 %v864
        %1056 = vmatpush.bf16.msra.mxu0 %v856
        %1057 = vmatmul.bf16.gmra.mxu0 %v594
        %v1058 = vpop.f32.mrf.mxu0
        %v1059 = vadd.f32 0.0, %v1058
        %v1060 = vpop.f32.mrf.mxu0
        %v1061 = vadd.f32 0.0, %v1060
        %1062 = vdwg.mxu0
        %1063 = vmatpush.bf16.msra.mxu0 %v913
        %1064 = vmatpush.bf16.msra.mxu0 %v905
        %1065 = vmatpush.bf16.msra.mxu0 %v897
        %1066 = vmatpush.bf16.msra.mxu0 %v889
        %1067 = vmatpush.bf16.msra.mxu0 %v881
        %1068 = vmatpush.bf16.msra.mxu0 %v873
        %1069 = vmatpush.bf16.msra.mxu0 %v865
        %1070 = vmatpush.bf16.msra.mxu0 %v857
        %1071 = vmatmul.bf16.gmra.mxu0 %v594
        %v1072 = vpop.f32.mrf.mxu0
        %v1073 = vadd.f32 0.0, %v1072
        %v1074 = vpop.f32.mrf.mxu0
        %v1075 = vadd.f32 0.0, %v1074
        %1076 = vdwg.mxu0
        %1077 = vmatpush.bf16.msra.mxu0 %v914
        %1078 = vmatpush.bf16.msra.mxu0 %v906
        %1079 = vmatpush.bf16.msra.mxu0 %v898
        %1080 = vmatpush.bf16.msra.mxu0 %v890
        %1081 = vmatpush.bf16.msra.mxu0 %v882
        %1082 = vmatpush.bf16.msra.mxu0 %v874
        %1083 = vmatpush.bf16.msra.mxu0 %v866
        %1084 = vmatpush.bf16.msra.mxu0 %v858
        %1085 = vmatmul.bf16.gmra.mxu0 %v594
        %v1086 = vpop.f32.mrf.mxu0
        %v1087 = vadd.f32 0.0, %v1086
        %v1088 = vpop.f32.mrf.mxu0
        %v1089 = vadd.f32 0.0, %v1088
        %1090 = vdwg.mxu0
        %p1091 = scmp.eq.s32.totalorder %s29, 0
        // Predicated region
        $region57: #{feature_transform_net.6} parent=51 // pred_check
          %p1092 = pneg %p1091
        $region58: #{feature_transform_net.6} parent=51 // pred_check_branch
          %1094 = sbr.rel (%p1092) target = $region60
        $region59: #{feature_transform_net.6} parent=51 // pred_region
          %1095 = vst [vmem:[%s446] sm:$0xff] 0.0
          %1096 = vst [vmem:[%s450] sm:$0xff] 0.0
        $region60: #{feature_transform_net.6} parent=51 // pred_fallthru
          _
        %v1097 = vld [vmem:[%s446] sm:$0xff]
        %v1098 = vadd.f32 %v989, %v991
        %v1099 = vrot.slane %v1098, 4
        %v1100 = vadd.f32 %v1098, %v1099
        %v1101 = vrot.slane %v1100, 2
        %v1102 = vadd.f32 %v1100, %v1101
        %v1103 = vrot.slane %v1102, 1
        %v1104 = vadd.f32 %v1102, %v1103
        %v1105 = vadd.f32 %v1003, %v1005
        %v1106 = vrot.slane %v1105, 4
        %v1107 = vadd.f32 %v1105, %v1106
        %v1108 = vrot.slane %v1107, 2
        %v1109 = vadd.f32 %v1107, %v1108
        %v1110 = vrot.slane %v1109, 1
        %v1111 = vadd.f32 %v1109, %v1110
        %v1112 = vadd.f32 %v1017, %v1019
        %v1113 = vrot.slane %v1112, 4
        %v1114 = vadd.f32 %v1112, %v1113
        %v1115 = vrot.slane %v1114, 2
        %v1116 = vadd.f32 %v1114, %v1115
        %v1117 = vrot.slane %v1116, 1
        %v1118 = vadd.f32 %v1116, %v1117
        %v1119 = vadd.f32 %v1031, %v1033
        %v1120 = vrot.slane %v1119, 4
        %v1121 = vadd.f32 %v1119, %v1120
        %v1122 = vrot.slane %v1121, 2
        %v1123 = vadd.f32 %v1121, %v1122
        %v1124 = vrot.slane %v1123, 1
        %v1125 = vadd.f32 %v1123, %v1124
        %v1126 = vadd.f32 %v1045, %v1047
        %v1127 = vrot.slane %v1126, 4
        %v1128 = vadd.f32 %v1126, %v1127
        %v1129 = vrot.slane %v1128, 2
        %v1130 = vadd.f32 %v1128, %v1129
        %v1131 = vrot.slane %v1130, 1
        %v1132 = vadd.f32 %v1130, %v1131
        %v1133 = vadd.f32 %v1059, %v1061
        %v1134 = vrot.slane %v1133, 4
        %v1135 = vadd.f32 %v1133, %v1134
        %v1136 = vrot.slane %v1135, 2
        %v1137 = vadd.f32 %v1135, %v1136
        %v1138 = vrot.slane %v1137, 1
        %v1139 = vadd.f32 %v1137, %v1138
        %v1140 = vadd.f32 %v1073, %v1075
        %v1141 = vrot.slane %v1140, 4
        %v1142 = vadd.f32 %v1140, %v1141
        %v1143 = vrot.slane %v1142, 2
        %v1144 = vadd.f32 %v1142, %v1143
        %v1145 = vrot.slane %v1144, 1
        %v1146 = vadd.f32 %v1144, %v1145
        %v1147 = vadd.f32 %v1087, %v1089
        %v1148 = vrot.slane %v1147, 4
        %v1149 = vadd.f32 %v1147, %v1148
        %v1150 = vrot.slane %v1149, 2
        %v1151 = vadd.f32 %v1149, %v1150
        %v1152 = vrot.slane %v1151, 1
        %v1153 = vadd.f32 %v1151, %v1152
        %v1162 = vrot.slane %v1111, 7
        %v1163 = vrot.slane %v1118, 6
        %v1164 = vrot.slane %v1125, 5
        %v1165 = vrot.slane %v1132, 4
        %v1166 = vrot.slane %v1139, 3
        %v1167 = vrot.slane %v1146, 2
        %v1168 = vrot.slane %v1153, 1
        %vm1169 = vcmask 1040384
        %v1170 = vsel %vm1169, %v1104, %v1162
        %vm1171 = vcmask 1042434
        %v1172 = vsel %vm1171, %v1163, %v1164
        %vm1173 = vcmask 1041408
        %v1174 = vsel %vm1173, %v1170, %v1172
        %vm1175 = vcmask 1044484
        %v1176 = vsel %vm1175, %v1165, %v1166
        %vm1177 = vcmask 1046534
        %v1178 = vsel %vm1177, %v1167, %v1168
        %vm1179 = vcmask 1045508
        %v1180 = vsel %vm1179, %v1176, %v1178
        %vm1181 = vcmask 1043456
        %v1182 = vsel %vm1181, %v1174, %v1180
        %v1184 = vadd.f32 %v1097, %v1182
        %1185 = vst [vmem:[%s446] sm:$0xff] %v1184
        %v1186 = vld [vmem:[%s450] sm:$0xff]
        %v1187 = vmul.f32 %v989, %v989
        %v1188 = vmul.f32 %v1003, %v1003
        %v1189 = vmul.f32 %v1017, %v1017
        %v1190 = vmul.f32 %v1031, %v1031
        %v1191 = vmul.f32 %v1045, %v1045
        %v1192 = vmul.f32 %v1059, %v1059
        %v1193 = vmul.f32 %v1073, %v1073
        %v1194 = vmul.f32 %v1087, %v1087
        %v1195 = vmul.f32 %v991, %v991
        %v1196 = vmul.f32 %v1005, %v1005
        %v1197 = vmul.f32 %v1019, %v1019
        %v1198 = vmul.f32 %v1033, %v1033
        %v1199 = vmul.f32 %v1047, %v1047
        %v1200 = vmul.f32 %v1061, %v1061
        %v1201 = vmul.f32 %v1075, %v1075
        %v1202 = vmul.f32 %v1089, %v1089
        %v1203 = vadd.f32 %v1187, %v1195
        %v1204 = vrot.slane %v1203, 4
        %v1205 = vadd.f32 %v1203, %v1204
        %v1206 = vrot.slane %v1205, 2
        %v1207 = vadd.f32 %v1205, %v1206
        %v1208 = vrot.slane %v1207, 1
        %v1209 = vadd.f32 %v1207, %v1208
        %v1210 = vadd.f32 %v1188, %v1196
        %v1211 = vrot.slane %v1210, 4
        %v1212 = vadd.f32 %v1210, %v1211
        %v1213 = vrot.slane %v1212, 2
        %v1214 = vadd.f32 %v1212, %v1213
        %v1215 = vrot.slane %v1214, 1
        %v1216 = vadd.f32 %v1214, %v1215
        %v1217 = vadd.f32 %v1189, %v1197
        %v1218 = vrot.slane %v1217, 4
        %v1219 = vadd.f32 %v1217, %v1218
        %v1220 = vrot.slane %v1219, 2
        %v1221 = vadd.f32 %v1219, %v1220
        %v1222 = vrot.slane %v1221, 1
        %v1223 = vadd.f32 %v1221, %v1222
        %v1224 = vadd.f32 %v1190, %v1198
        %v1225 = vrot.slane %v1224, 4
        %v1226 = vadd.f32 %v1224, %v1225
        %v1227 = vrot.slane %v1226, 2
        %v1228 = vadd.f32 %v1226, %v1227
        %v1229 = vrot.slane %v1228, 1
        %v1230 = vadd.f32 %v1228, %v1229
        %v1231 = vadd.f32 %v1191, %v1199
        %v1232 = vrot.slane %v1231, 4
        %v1233 = vadd.f32 %v1231, %v1232
        %v1234 = vrot.slane %v1233, 2
        %v1235 = vadd.f32 %v1233, %v1234
        %v1236 = vrot.slane %v1235, 1
        %v1237 = vadd.f32 %v1235, %v1236
        %v1238 = vadd.f32 %v1192, %v1200
        %v1239 = vrot.slane %v1238, 4
        %v1240 = vadd.f32 %v1238, %v1239
        %v1241 = vrot.slane %v1240, 2
        %v1242 = vadd.f32 %v1240, %v1241
        %v1243 = vrot.slane %v1242, 1
        %v1244 = vadd.f32 %v1242, %v1243
        %v1245 = vadd.f32 %v1193, %v1201
        %v1246 = vrot.slane %v1245, 4
        %v1247 = vadd.f32 %v1245, %v1246
        %v1248 = vrot.slane %v1247, 2
        %v1249 = vadd.f32 %v1247, %v1248
        %v1250 = vrot.slane %v1249, 1
        %v1251 = vadd.f32 %v1249, %v1250
        %v1252 = vadd.f32 %v1194, %v1202
        %v1253 = vrot.slane %v1252, 4
        %v1254 = vadd.f32 %v1252, %v1253
        %v1255 = vrot.slane %v1254, 2
        %v1256 = vadd.f32 %v1254, %v1255
        %v1257 = vrot.slane %v1256, 1
        %v1258 = vadd.f32 %v1256, %v1257
        %v1267 = vrot.slane %v1216, 7
        %v1268 = vrot.slane %v1223, 6
        %v1269 = vrot.slane %v1230, 5
        %v1270 = vrot.slane %v1237, 4
        %v1271 = vrot.slane %v1244, 3
        %v1272 = vrot.slane %v1251, 2
        %v1273 = vrot.slane %v1258, 1
        %v1274 = vsel %vm1169, %v1209, %v1267
        %v1275 = vsel %vm1171, %v1268, %v1269
        %v1276 = vsel %vm1173, %v1274, %v1275
        %v1277 = vsel %vm1175, %v1270, %v1271
        %v1278 = vsel %vm1177, %v1272, %v1273
        %v1279 = vsel %vm1179, %v1277, %v1278
        %v1280 = vsel %vm1181, %v1276, %v1279
        %v1282 = vadd.f32 %v1186, %v1280
        %1283 = vst [vmem:[%s450] sm:$0xff] %v1282
        // Predicated region
        $region61: #{feature_transform_net.6} parent=51 // pred_check
          %p1284 = pneg %p1091
        $region62: #{feature_transform_net.6} parent=51 // pred_check_branch
          %1286 = sbr.rel (%p1284) target = $region64
        $region63: #{feature_transform_net.6} parent=51 // pred_region
          %1287 = vst [vmem:[%s454] sm:$0xff] -inf
          %1288 = vst [vmem:[%s458] sm:$0xff] inf
        $region64: #{feature_transform_net.6} parent=51 // pred_fallthru
          _
        %v1289 = vld [vmem:[%s454] sm:$0xff]
        %v1290 = vmax.f32 %v989, %v991
        %v1291 = vrot.slane %v1290, 4
        %v1292 = vmax.f32 %v1290, %v1291
        %v1293 = vrot.slane %v1292, 2
        %v1294 = vmax.f32 %v1292, %v1293
        %v1295 = vrot.slane %v1294, 1
        %v1296 = vmax.f32 %v1294, %v1295
        %v1297 = vmax.f32 %v1003, %v1005
        %v1298 = vrot.slane %v1297, 4
        %v1299 = vmax.f32 %v1297, %v1298
        %v1300 = vrot.slane %v1299, 2
        %v1301 = vmax.f32 %v1299, %v1300
        %v1302 = vrot.slane %v1301, 1
        %v1303 = vmax.f32 %v1301, %v1302
        %v1304 = vmax.f32 %v1017, %v1019
        %v1305 = vrot.slane %v1304, 4
        %v1306 = vmax.f32 %v1304, %v1305
        %v1307 = vrot.slane %v1306, 2
        %v1308 = vmax.f32 %v1306, %v1307
        %v1309 = vrot.slane %v1308, 1
        %v1310 = vmax.f32 %v1308, %v1309
        %v1311 = vmax.f32 %v1031, %v1033
        %v1312 = vrot.slane %v1311, 4
        %v1313 = vmax.f32 %v1311, %v1312
        %v1314 = vrot.slane %v1313, 2
        %v1315 = vmax.f32 %v1313, %v1314
        %v1316 = vrot.slane %v1315, 1
        %v1317 = vmax.f32 %v1315, %v1316
        %v1318 = vmax.f32 %v1045, %v1047
        %v1319 = vrot.slane %v1318, 4
        %v1320 = vmax.f32 %v1318, %v1319
        %v1321 = vrot.slane %v1320, 2
        %v1322 = vmax.f32 %v1320, %v1321
        %v1323 = vrot.slane %v1322, 1
        %v1324 = vmax.f32 %v1322, %v1323
        %v1325 = vmax.f32 %v1059, %v1061
        %v1326 = vrot.slane %v1325, 4
        %v1327 = vmax.f32 %v1325, %v1326
        %v1328 = vrot.slane %v1327, 2
        %v1329 = vmax.f32 %v1327, %v1328
        %v1330 = vrot.slane %v1329, 1
        %v1331 = vmax.f32 %v1329, %v1330
        %v1332 = vmax.f32 %v1073, %v1075
        %v1333 = vrot.slane %v1332, 4
        %v1334 = vmax.f32 %v1332, %v1333
        %v1335 = vrot.slane %v1334, 2
        %v1336 = vmax.f32 %v1334, %v1335
        %v1337 = vrot.slane %v1336, 1
        %v1338 = vmax.f32 %v1336, %v1337
        %v1339 = vmax.f32 %v1087, %v1089
        %v1340 = vrot.slane %v1339, 4
        %v1341 = vmax.f32 %v1339, %v1340
        %v1342 = vrot.slane %v1341, 2
        %v1343 = vmax.f32 %v1341, %v1342
        %v1344 = vrot.slane %v1343, 1
        %v1345 = vmax.f32 %v1343, %v1344
        %v1354 = vrot.slane %v1303, 7
        %v1355 = vrot.slane %v1310, 6
        %v1356 = vrot.slane %v1317, 5
        %v1357 = vrot.slane %v1324, 4
        %v1358 = vrot.slane %v1331, 3
        %v1359 = vrot.slane %v1338, 2
        %v1360 = vrot.slane %v1345, 1
        %v1361 = vsel %vm1169, %v1296, %v1354
        %v1362 = vsel %vm1171, %v1355, %v1356
        %v1363 = vsel %vm1173, %v1361, %v1362
        %v1364 = vsel %vm1175, %v1357, %v1358
        %v1365 = vsel %vm1177, %v1359, %v1360
        %v1366 = vsel %vm1179, %v1364, %v1365
        %v1367 = vsel %vm1181, %v1363, %v1366
        %v1369 = vmax.f32 %v1289, %v1367
        %1370 = vst [vmem:[%s454] sm:$0xff] %v1369
        %v1371 = vld [vmem:[%s458] sm:$0xff]
        %v1372 = vmin.f32 %v989, %v991
        %v1373 = vrot.slane %v1372, 4
        %v1374 = vmin.f32 %v1372, %v1373
        %v1375 = vrot.slane %v1374, 2
        %v1376 = vmin.f32 %v1374, %v1375
        %v1377 = vrot.slane %v1376, 1
        %v1378 = vmin.f32 %v1376, %v1377
        %v1379 = vmin.f32 %v1003, %v1005
        %v1380 = vrot.slane %v1379, 4
        %v1381 = vmin.f32 %v1379, %v1380
        %v1382 = vrot.slane %v1381, 2
        %v1383 = vmin.f32 %v1381, %v1382
        %v1384 = vrot.slane %v1383, 1
        %v1385 = vmin.f32 %v1383, %v1384
        %v1386 = vmin.f32 %v1017, %v1019
        %v1387 = vrot.slane %v1386, 4
        %v1388 = vmin.f32 %v1386, %v1387
        %v1389 = vrot.slane %v1388, 2
        %v1390 = vmin.f32 %v1388, %v1389
        %v1391 = vrot.slane %v1390, 1
        %v1392 = vmin.f32 %v1390, %v1391
        %v1393 = vmin.f32 %v1031, %v1033
        %v1394 = vrot.slane %v1393, 4
        %v1395 = vmin.f32 %v1393, %v1394
        %v1396 = vrot.slane %v1395, 2
        %v1397 = vmin.f32 %v1395, %v1396
        %v1398 = vrot.slane %v1397, 1
        %v1399 = vmin.f32 %v1397, %v1398
        %v1400 = vmin.f32 %v1045, %v1047
        %v1401 = vrot.slane %v1400, 4
        %v1402 = vmin.f32 %v1400, %v1401
        %v1403 = vrot.slane %v1402, 2
        %v1404 = vmin.f32 %v1402, %v1403
        %v1405 = vrot.slane %v1404, 1
        %v1406 = vmin.f32 %v1404, %v1405
        %v1407 = vmin.f32 %v1059, %v1061
        %v1408 = vrot.slane %v1407, 4
        %v1409 = vmin.f32 %v1407, %v1408
        %v1410 = vrot.slane %v1409, 2
        %v1411 = vmin.f32 %v1409, %v1410
        %v1412 = vrot.slane %v1411, 1
        %v1413 = vmin.f32 %v1411, %v1412
        %v1414 = vmin.f32 %v1073, %v1075
        %v1415 = vrot.slane %v1414, 4
        %v1416 = vmin.f32 %v1414, %v1415
        %v1417 = vrot.slane %v1416, 2
        %v1418 = vmin.f32 %v1416, %v1417
        %v1419 = vrot.slane %v1418, 1
        %v1420 = vmin.f32 %v1418, %v1419
        %v1421 = vmin.f32 %v1087, %v1089
        %v1422 = vrot.slane %v1421, 4
        %v1423 = vmin.f32 %v1421, %v1422
        %v1424 = vrot.slane %v1423, 2
        %v1425 = vmin.f32 %v1423, %v1424
        %v1426 = vrot.slane %v1425, 1
        %v1427 = vmin.f32 %v1425, %v1426
        %v1436 = vrot.slane %v1385, 7
        %v1437 = vrot.slane %v1392, 6
        %v1438 = vrot.slane %v1399, 5
        %v1439 = vrot.slane %v1406, 4
        %v1440 = vrot.slane %v1413, 3
        %v1441 = vrot.slane %v1420, 2
        %v1442 = vrot.slane %v1427, 1
        %v1443 = vsel %vm1169, %v1378, %v1436
        %v1444 = vsel %vm1171, %v1437, %v1438
        %v1445 = vsel %vm1173, %v1443, %v1444
        %v1446 = vsel %vm1175, %v1439, %v1440
        %v1447 = vsel %vm1177, %v1441, %v1442
        %v1448 = vsel %vm1179, %v1446, %v1447
        %v1449 = vsel %vm1181, %v1445, %v1448
        %v1451 = vmin.f32 %v1371, %v1449
        %1452 = vst [vmem:[%s458] sm:$0xff] %v1451
        %p1453 = scmp.lt.s32.totalorder %s28, 1
        %s1454 = scalar_select %p1453, %s28, 1
        %s1455 = smul.addr %s1454, 8
        %s1456 = scalar_lea.vmem %s8, %s1455
        %p1457 = scmp.lt.s32.totalorder %s28, 1
        %s1458 = scalar_select %p1457, %s28, 1
        %s1459 = smul.addr %s1458, 8
        %s1460 = scalar_lea.vmem %s9, %s1459
        %p1461 = scmp.lt.s32.totalorder %s28, 1
        %s1462 = scalar_select %p1461, %s28, 1
        %s1463 = smul.addr %s1462, 8
        %s1464 = scalar_lea.vmem %s10, %s1463
        %p1465 = scmp.lt.s32.totalorder %s28, 1
        %s1466 = scalar_select %p1465, %s28, 1
        %s1467 = smul.addr %s1466, 8
        %s1468 = scalar_lea.vmem %s11, %s1467
        // Predicated region
        $region65: #{feature_transform_net.6} parent=51 // pred_check
          %p1469 = pneg %p229
        $region66: #{feature_transform_net.6} parent=51 // pred_check_branch
          %1471 = sbr.rel (%p1469) target = $region68
        $region67: #{feature_transform_net.6} parent=51 // pred_region
          _
        $region68: #{feature_transform_net.6} parent=51 // pred_fallthru
          _
        // Predicated region
        $region69: #{feature_transform_net.6} parent=51 // pred_check
          %p1472 = pneg %p255
        $region70: #{feature_transform_net.6} parent=51 // pred_check_branch
          %1474 = sbr.rel (%p1472) target = $region72
        $region71: #{feature_transform_net.6} parent=51 // pred_region
          _
        $region72: #{feature_transform_net.6} parent=51 // pred_fallthru
          _
        // Predicated region
        $region73: #{feature_transform_net.6} parent=51 // pred_check
          %p1475 = pneg %p281
        $region74: #{feature_transform_net.6} parent=51 // pred_check_branch
          %1477 = sbr.rel (%p1475) target = $region76
        $region75: #{feature_transform_net.6} parent=51 // pred_region
          _
        $region76: #{feature_transform_net.6} parent=51 // pred_fallthru
          _
        // Predicated region
        $region77: #{feature_transform_net.6} parent=51 // pred_check
          %p1478 = pneg %p307
        $region78: #{feature_transform_net.6} parent=51 // pred_check_branch
          %1480 = sbr.rel (%p1478) target = $region80
        $region79: #{feature_transform_net.6} parent=51 // pred_region
          _
        $region80: #{feature_transform_net.6} parent=51 // pred_fallthru
          _
      $region52: #{feature_transform_net.6} parent=5 // pred_fallthru
        _
      %p1481 = scmp.le.s32.totalorder 2, %s19
      // Predicated region
      $region81: #{feature_transform_net.6} parent=5 // pred_check
        %p1482 = pneg %p1481
      $region82: #{feature_transform_net.6} parent=5 // pred_check_branch
        %1484 = sbr.rel (%p1482) target = $region84
      $region83: #{feature_transform_net.6} parent=5 // pred_region
        %s1485 = ssub.s32 %s19, 2
        // Predicated region
        $region85: #{feature_transform_net.6} parent=83 // pred_check
          %p1486 = pneg %p235
        $region86: #{feature_transform_net.6} parent=83 // pred_check_branch
          %1488 = sbr.rel (%p1486) target = $region88
        $region87: #{feature_transform_net.6} parent=83 // pred_region
          %p1489 = scmp.lt.s32.totalorder %s30, 1
          %s1490 = scalar_select %p1489, %s30, 1
          %s1491 = smul.addr %s1490, 8
          %s1492 = scalar_lea.vmem %s8, %s1491
        $region88: #{feature_transform_net.6} parent=83 // pred_fallthru
          _
        // Predicated region
        $region89: #{feature_transform_net.6} parent=83 // pred_check
          %p1493 = pneg %p261
        $region90: #{feature_transform_net.6} parent=83 // pred_check_branch
          %1495 = sbr.rel (%p1493) target = $region92
        $region91: #{feature_transform_net.6} parent=83 // pred_region
          %p1496 = scmp.lt.s32.totalorder %s30, 1
          %s1497 = scalar_select %p1496, %s30, 1
          %s1498 = smul.addr %s1497, 8
          %s1499 = scalar_lea.vmem %s9, %s1498
        $region92: #{feature_transform_net.6} parent=83 // pred_fallthru
          _
        // Predicated region
        $region93: #{feature_transform_net.6} parent=83 // pred_check
          %p1500 = pneg %p287
        $region94: #{feature_transform_net.6} parent=83 // pred_check_branch
          %1502 = sbr.rel (%p1500) target = $region96
        $region95: #{feature_transform_net.6} parent=83 // pred_region
          %p1503 = scmp.lt.s32.totalorder %s30, 1
          %s1504 = scalar_select %p1503, %s30, 1
          %s1505 = smul.addr %s1504, 8
          %s1506 = scalar_lea.vmem %s10, %s1505
        $region96: #{feature_transform_net.6} parent=83 // pred_fallthru
          _
        // Predicated region
        $region97: #{feature_transform_net.6} parent=83 // pred_check
          %p1507 = pneg %p313
        $region98: #{feature_transform_net.6} parent=83 // pred_check_branch
          %1509 = sbr.rel (%p1507) target = $region100
        $region99: #{feature_transform_net.6} parent=83 // pred_region
          %p1510 = scmp.lt.s32.totalorder %s30, 1
          %s1511 = scalar_select %p1510, %s30, 1
          %s1512 = smul.addr %s1511, 8
          %s1513 = scalar_lea.vmem %s11, %s1512
        $region100: #{feature_transform_net.6} parent=83 // pred_fallthru
          _
      $region84: #{feature_transform_net.6} parent=5 // pred_fallthru
        _
    $region6: #{feature_transform_net.6} parent=1 // loop_footer
      %s23 = sadd.s32 1, %s19
    $region7: #{feature_transform_net.6} parent=1 // loop_footer_branch
      %18 = sbr.rel target = $region3
    $region8: #{feature_transform_net.6} parent=1 // loop_exit
      _
    %1514 = vsyncpa [#allocation3], 1
    %s1515 = scalar_lea.sflag [#allocation3], 1
    %1516 = vsyncpa %s1515, 1

// kernel: feature_transform_net.7
$region0: #{feature_transform_net.7}
  #allocation0 [shape = 'u32[]', space=smem, size = 0x4, offset = 0x4, fixed_abs, tag = 'smem constant byte address 0x4 - core index']
  #allocation1 [shape = 'u32[72,128]{1,0:T(1,128)}', space=vmem, size = 0x9000, scoped, tag = 'internal scratch']
  %s0 = inlined_call_operand.vmem [shape: f32[2,1024], index: 0, kind: input, shape index: {}]
  %s1 = inlined_call_operand.vmem [shape: bf16[1024,512], index: 1, kind: input, shape index: {}]
  %s2 = inlined_call_operand.vmem [shape: f32[1,512], index: 2, kind: input, shape index: {}]
  %s3 = inlined_call_operand.vmem [shape: f32[1,512], index: 3, kind: input, shape index: {}]
  %s4 = inlined_call_operand.vmem [shape: bf16[512,256], index: 4, kind: input, shape index: {}]
  %s5 = inlined_call_operand.vmem [shape: f32[1,256], index: 5, kind: input, shape index: {}]
  %s6 = inlined_call_operand.vmem [shape: f32[1,256], index: 6, kind: input, shape index: {}]
  %s7 = inlined_call_operand.vmem [shape: bf16[256,128], index: 7, kind: input, shape index: {}]
  %s8 = inlined_call_operand.vmem [shape: f32[1,128], index: 8, kind: input, shape index: {}]
  %s9 = inlined_call_operand.vmem [shape: f32[2,128], index: 9, kind: output, shape index: {}]
  %s10 = sld [smem:[#allocation0]]
  $region46: #{feature_transform_net.7} parent=0
    _
  %s12 = ssub.s32 1, %s10
  %s13 = scalar_select 0, %s12, %s10
  // Predicated region
  $region2: #{feature_transform_net.7} parent=0 // pred_check
    _
  $region3: #{feature_transform_net.7} parent=0 // pred_check_branch
    %15 = sbr.rel (0) target = $region5
  $region4: #{feature_transform_net.7} parent=0 // pred_region
    _
  $region5: #{feature_transform_net.7} parent=0 // pred_fallthru
    _
  // Predicated region
  $region6: #{feature_transform_net.7} parent=0 // pred_check
    _
  $region7: #{feature_transform_net.7} parent=0 // pred_check_branch
    %17 = sbr.rel (0) target = $region9
  $region8: #{feature_transform_net.7} parent=0 // pred_region
    _
  $region9: #{feature_transform_net.7} parent=0 // pred_fallthru
    _
  // Predicated region
  $region10: #{feature_transform_net.7} parent=0 // pred_check
    _
  $region11: #{feature_transform_net.7} parent=0 // pred_check_branch
    %19 = sbr.rel (0) target = $region13
  $region12: #{feature_transform_net.7} parent=0 // pred_region
    _
  $region13: #{feature_transform_net.7} parent=0 // pred_fallthru
    _
  // Predicated region
  $region14: #{feature_transform_net.7} parent=0 // pred_check
    _
  $region15: #{feature_transform_net.7} parent=0 // pred_check_branch
    %21 = sbr.rel (0) target = $region17
  $region16: #{feature_transform_net.7} parent=0 // pred_region
    _
  $region17: #{feature_transform_net.7} parent=0 // pred_fallthru
    _
  // Predicated region
  $region18: #{feature_transform_net.7} parent=0 // pred_check
    _
  $region19: #{feature_transform_net.7} parent=0 // pred_check_branch
    %23 = sbr.rel (0) target = $region21
  $region20: #{feature_transform_net.7} parent=0 // pred_region
    _
  $region21: #{feature_transform_net.7} parent=0 // pred_fallthru
    _
  // Predicated region
  $region22: #{feature_transform_net.7} parent=0 // pred_check
    _
  $region23: #{feature_transform_net.7} parent=0 // pred_check_branch
    %25 = sbr.rel (0) target = $region25
  $region24: #{feature_transform_net.7} parent=0 // pred_region
    _
  $region25: #{feature_transform_net.7} parent=0 // pred_fallthru
    _
  // Predicated region
  $region26: #{feature_transform_net.7} parent=0 // pred_check
    _
  $region27: #{feature_transform_net.7} parent=0 // pred_check_branch
    %27 = sbr.rel (0) target = $region29
  $region28: #{feature_transform_net.7} parent=0 // pred_region
    _
  $region29: #{feature_transform_net.7} parent=0 // pred_fallthru
    _
  // Predicated region
  $region30: #{feature_transform_net.7} parent=0 // pred_check
    _
  $region31: #{feature_transform_net.7} parent=0 // pred_check_branch
    %29 = sbr.rel (0) target = $region33
  $region32: #{feature_transform_net.7} parent=0 // pred_region
    _
  $region33: #{feature_transform_net.7} parent=0 // pred_fallthru
    _
  // Predicated region
  $region34: #{feature_transform_net.7} parent=0 // pred_check
    _
  $region35: #{feature_transform_net.7} parent=0 // pred_check_branch
    %31 = sbr.rel (0) target = $region37
  $region36: #{feature_transform_net.7} parent=0 // pred_region
    _
  $region37: #{feature_transform_net.7} parent=0 // pred_fallthru
    _
  %v32 = vld [vmem:[%s0] sm:$0xff]
  %v33 = vld [vmem:[%s0 + $0x8] sm:$0xff]
  %36 = vst [vmem:[#allocation1] ss:$4 sm:$0xff] %v32
  %s37 = scalar_lea.vmem [#allocation1], 32
  %38 = vst [vmem:[%s37] ss:$4 sm:$0xff] %v33
  %v39 = vld.sshfl [vmem:[#allocation1] sm:$0xff pattern:$0x73625140]
  %v40 = vld.sshfl [vmem:[#allocation1 + $0x8] sm:$0xff pattern:$0x73625140]
  %v41 = vld.sshfl [vmem:[#allocation1 + $0x10] sm:$0xff pattern:$0x73625140]
  %v42 = vld.sshfl [vmem:[#allocation1 + $0x18] sm:$0xff pattern:$0x73625140]
  %v43 = vld.sshfl [vmem:[#allocation1 + $0x20] sm:$0xff pattern:$0x73625140]
  %v44 = vld.sshfl [vmem:[#allocation1 + $0x28] sm:$0xff pattern:$0x73625140]
  %v45 = vld.sshfl [vmem:[#allocation1 + $0x30] sm:$0xff pattern:$0x73625140]
  %v46 = vld.sshfl [vmem:[#allocation1 + $0x38] sm:$0xff pattern:$0x73625140]
  %v55 = vpack.c.bf16 %v39, %v39
  %v56 = vpack.c.bf16 %v40, %v40
  %v57 = vpack.c.bf16 %v41, %v41
  %v58 = vpack.c.bf16 %v42, %v42
  %v59 = vpack.c.bf16 %v43, %v43
  %v60 = vpack.c.bf16 %v44, %v44
  %v61 = vpack.c.bf16 %v45, %v45
  %v62 = vpack.c.bf16 %v46, %v46
  %v63 = vld [vmem:[%s1] sm:$0xff]
  %v64 = vld [vmem:[%s1 + $0x8] sm:$0xff]
  %v65 = vld [vmem:[%s1 + $0x10] sm:$0xff]
  %v66 = vld [vmem:[%s1 + $0x18] sm:$0xff]
  %v67 = vld [vmem:[%s1 + $0x20] sm:$0xff]
  %v68 = vld [vmem:[%s1 + $0x28] sm:$0xff]
  %v69 = vld [vmem:[%s1 + $0x30] sm:$0xff]
  %v70 = vld [vmem:[%s1 + $0x38] sm:$0xff]
  %v71 = vld [vmem:[%s1 + $0x40] sm:$0xff]
  %v72 = vld [vmem:[%s1 + $0x48] sm:$0xff]
  %v73 = vld [vmem:[%s1 + $0x50] sm:$0xff]
  %v74 = vld [vmem:[%s1 + $0x58] sm:$0xff]
  %v75 = vld [vmem:[%s1 + $0x60] sm:$0xff]
  %v76 = vld [vmem:[%s1 + $0x68] sm:$0xff]
  %v77 = vld [vmem:[%s1 + $0x70] sm:$0xff]
  %v78 = vld [vmem:[%s1 + $0x78] sm:$0xff]
  %v79 = vld [vmem:[%s1 + $0x80] sm:$0xff]
  %v80 = vld [vmem:[%s1 + $0x88] sm:$0xff]
  %v81 = vld [vmem:[%s1 + $0x90] sm:$0xff]
  %v82 = vld [vmem:[%s1 + $0x98] sm:$0xff]
  %v83 = vld [vmem:[%s1 + $0xa0] sm:$0xff]
  %v84 = vld [vmem:[%s1 + $0xa8] sm:$0xff]
  %v85 = vld [vmem:[%s1 + $0xb0] sm:$0xff]
  %v86 = vld [vmem:[%s1 + $0xb8] sm:$0xff]
  %v87 = vld [vmem:[%s1 + $0xc0] sm:$0xff]
  %v88 = vld [vmem:[%s1 + $0xc8] sm:$0xff]
  %v89 = vld [vmem:[%s1 + $0xd0] sm:$0xff]
  %v90 = vld [vmem:[%s1 + $0xd8] sm:$0xff]
  %v91 = vld [vmem:[%s1 + $0xe0] sm:$0xff]
  %v92 = vld [vmem:[%s1 + $0xe8] sm:$0xff]
  %v93 = vld [vmem:[%s1 + $0xf0] sm:$0xff]
  %v94 = vld [vmem:[%s1 + $0xf8] sm:$0xff]
  %v95 = vld [vmem:[%s1 + $0x100] sm:$0xff]
  %v96 = vld [vmem:[%s1 + $0x108] sm:$0xff]
  %v97 = vld [vmem:[%s1 + $0x110] sm:$0xff]
  %v98 = vld [vmem:[%s1 + $0x118] sm:$0xff]
  %v99 = vld [vmem:[%s1 + $0x120] sm:$0xff]
  %v100 = vld [vmem:[%s1 + $0x128] sm:$0xff]
  %v101 = vld [vmem:[%s1 + $0x130] sm:$0xff]
  %v102 = vld [vmem:[%s1 + $0x138] sm:$0xff]
  %v103 = vld [vmem:[%s1 + $0x140] sm:$0xff]
  %v104 = vld [vmem:[%s1 + $0x148] sm:$0xff]
  %v105 = vld [vmem:[%s1 + $0x150] sm:$0xff]
  %v106 = vld [vmem:[%s1 + $0x158] sm:$0xff]
  %v107 = vld [vmem:[%s1 + $0x160] sm:$0xff]
  %v108 = vld [vmem:[%s1 + $0x168] sm:$0xff]
  %v109 = vld [vmem:[%s1 + $0x170] sm:$0xff]
  %v110 = vld [vmem:[%s1 + $0x178] sm:$0xff]
  %v111 = vld [vmem:[%s1 + $0x180] sm:$0xff]
  %v112 = vld [vmem:[%s1 + $0x188] sm:$0xff]
  %v113 = vld [vmem:[%s1 + $0x190] sm:$0xff]
  %v114 = vld [vmem:[%s1 + $0x198] sm:$0xff]
  %v115 = vld [vmem:[%s1 + $0x1a0] sm:$0xff]
  %v116 = vld [vmem:[%s1 + $0x1a8] sm:$0xff]
  %v117 = vld [vmem:[%s1 + $0x1b0] sm:$0xff]
  %v118 = vld [vmem:[%s1 + $0x1b8] sm:$0xff]
  %v119 = vld [vmem:[%s1 + $0x1c0] sm:$0xff]
  %v120 = vld [vmem:[%s1 + $0x1c8] sm:$0xff]
  %v121 = vld [vmem:[%s1 + $0x1d0] sm:$0xff]
  %v122 = vld [vmem:[%s1 + $0x1d8] sm:$0xff]
  %v123 = vld [vmem:[%s1 + $0x1e0] sm:$0xff]
  %v124 = vld [vmem:[%s1 + $0x1e8] sm:$0xff]
  %v125 = vld [vmem:[%s1 + $0x1f0] sm:$0xff]
  %v126 = vld [vmem:[%s1 + $0x1f8] sm:$0xff]
  %v127 = vld [vmem:[%s1 + $0x200] sm:$0xff]
  %v128 = vld [vmem:[%s1 + $0x208] sm:$0xff]
  %v129 = vld [vmem:[%s1 + $0x210] sm:$0xff]
  %v130 = vld [vmem:[%s1 + $0x218] sm:$0xff]
  %v131 = vld [vmem:[%s1 + $0x220] sm:$0xff]
  %v132 = vld [vmem:[%s1 + $0x228] sm:$0xff]
  %v133 = vld [vmem:[%s1 + $0x230] sm:$0xff]
  %v134 = vld [vmem:[%s1 + $0x238] sm:$0xff]
  %v135 = vld [vmem:[%s1 + $0x240] sm:$0xff]
  %v136 = vld [vmem:[%s1 + $0x248] sm:$0xff]
  %v137 = vld [vmem:[%s1 + $0x250] sm:$0xff]
  %v138 = vld [vmem:[%s1 + $0x258] sm:$0xff]
  %v139 = vld [vmem:[%s1 + $0x260] sm:$0xff]
  %v140 = vld [vmem:[%s1 + $0x268] sm:$0xff]
  %v141 = vld [vmem:[%s1 + $0x270] sm:$0xff]
  %v142 = vld [vmem:[%s1 + $0x278] sm:$0xff]
  %v143 = vld [vmem:[%s1 + $0x280] sm:$0xff]
  %v144 = vld [vmem:[%s1 + $0x288] sm:$0xff]
  %v145 = vld [vmem:[%s1 + $0x290] sm:$0xff]
  %v146 = vld [vmem:[%s1 + $0x298] sm:$0xff]
  %v147 = vld [vmem:[%s1 + $0x2a0] sm:$0xff]
  %v148 = vld [vmem:[%s1 + $0x2a8] sm:$0xff]
  %v149 = vld [vmem:[%s1 + $0x2b0] sm:$0xff]
  %v150 = vld [vmem:[%s1 + $0x2b8] sm:$0xff]
  %v151 = vld [vmem:[%s1 + $0x2c0] sm:$0xff]
  %v152 = vld [vmem:[%s1 + $0x2c8] sm:$0xff]
  %v153 = vld [vmem:[%s1 + $0x2d0] sm:$0xff]
  %v154 = vld [vmem:[%s1 + $0x2d8] sm:$0xff]
  %v155 = vld [vmem:[%s1 + $0x2e0] sm:$0xff]
  %v156 = vld [vmem:[%s1 + $0x2e8] sm:$0xff]
  %v157 = vld [vmem:[%s1 + $0x2f0] sm:$0xff]
  %v158 = vld [vmem:[%s1 + $0x2f8] sm:$0xff]
  %v159 = vld [vmem:[%s1 + $0x300] sm:$0xff]
  %v160 = vld [vmem:[%s1 + $0x308] sm:$0xff]
  %v161 = vld [vmem:[%s1 + $0x310] sm:$0xff]
  %v162 = vld [vmem:[%s1 + $0x318] sm:$0xff]
  %v163 = vld [vmem:[%s1 + $0x320] sm:$0xff]
  %v164 = vld [vmem:[%s1 + $0x328] sm:$0xff]
  %v165 = vld [vmem:[%s1 + $0x330] sm:$0xff]
  %v166 = vld [vmem:[%s1 + $0x338] sm:$0xff]
  %v167 = vld [vmem:[%s1 + $0x340] sm:$0xff]
  %v168 = vld [vmem:[%s1 + $0x348] sm:$0xff]
  %v169 = vld [vmem:[%s1 + $0x350] sm:$0xff]
  %v170 = vld [vmem:[%s1 + $0x358] sm:$0xff]
  %v171 = vld [vmem:[%s1 + $0x360] sm:$0xff]
  %v172 = vld [vmem:[%s1 + $0x368] sm:$0xff]
  %v173 = vld [vmem:[%s1 + $0x370] sm:$0xff]
  %v174 = vld [vmem:[%s1 + $0x378] sm:$0xff]
  %v175 = vld [vmem:[%s1 + $0x380] sm:$0xff]
  %v176 = vld [vmem:[%s1 + $0x388] sm:$0xff]
  %v177 = vld [vmem:[%s1 + $0x390] sm:$0xff]
  %v178 = vld [vmem:[%s1 + $0x398] sm:$0xff]
  %v179 = vld [vmem:[%s1 + $0x3a0] sm:$0xff]
  %v180 = vld [vmem:[%s1 + $0x3a8] sm:$0xff]
  %v181 = vld [vmem:[%s1 + $0x3b0] sm:$0xff]
  %v182 = vld [vmem:[%s1 + $0x3b8] sm:$0xff]
  %v183 = vld [vmem:[%s1 + $0x3c0] sm:$0xff]
  %v184 = vld [vmem:[%s1 + $0x3c8] sm:$0xff]
  %v185 = vld [vmem:[%s1 + $0x3d0] sm:$0xff]
  %v186 = vld [vmem:[%s1 + $0x3d8] sm:$0xff]
  %v187 = vld [vmem:[%s1 + $0x3e0] sm:$0xff]
  %v188 = vld [vmem:[%s1 + $0x3e8] sm:$0xff]
  %v189 = vld [vmem:[%s1 + $0x3f0] sm:$0xff]
  %v190 = vld [vmem:[%s1 + $0x3f8] sm:$0xff]
  %v191 = vld [vmem:[%s1 + $0x400] sm:$0xff]
  %v192 = vld [vmem:[%s1 + $0x408] sm:$0xff]
  %v193 = vld [vmem:[%s1 + $0x410] sm:$0xff]
  %v194 = vld [vmem:[%s1 + $0x418] sm:$0xff]
  %v195 = vld [vmem:[%s1 + $0x420] sm:$0xff]
  %v196 = vld [vmem:[%s1 + $0x428] sm:$0xff]
  %v197 = vld [vmem:[%s1 + $0x430] sm:$0xff]
  %v198 = vld [vmem:[%s1 + $0x438] sm:$0xff]
  %v199 = vld [vmem:[%s1 + $0x440] sm:$0xff]
  %v200 = vld [vmem:[%s1 + $0x448] sm:$0xff]
  %v201 = vld [vmem:[%s1 + $0x450] sm:$0xff]
  %v202 = vld [vmem:[%s1 + $0x458] sm:$0xff]
  %v203 = vld [vmem:[%s1 + $0x460] sm:$0xff]
  %v204 = vld [vmem:[%s1 + $0x468] sm:$0xff]
  %v205 = vld [vmem:[%s1 + $0x470] sm:$0xff]
  %v206 = vld [vmem:[%s1 + $0x478] sm:$0xff]
  %v207 = vld [vmem:[%s1 + $0x480] sm:$0xff]
  %v208 = vld [vmem:[%s1 + $0x488] sm:$0xff]
  %v209 = vld [vmem:[%s1 + $0x490] sm:$0xff]
  %v210 = vld [vmem:[%s1 + $0x498] sm:$0xff]
  %v211 = vld [vmem:[%s1 + $0x4a0] sm:$0xff]
  %v212 = vld [vmem:[%s1 + $0x4a8] sm:$0xff]
  %v213 = vld [vmem:[%s1 + $0x4b0] sm:$0xff]
  %v214 = vld [vmem:[%s1 + $0x4b8] sm:$0xff]
  %v215 = vld [vmem:[%s1 + $0x4c0] sm:$0xff]
  %v216 = vld [vmem:[%s1 + $0x4c8] sm:$0xff]
  %v217 = vld [vmem:[%s1 + $0x4d0] sm:$0xff]
  %v218 = vld [vmem:[%s1 + $0x4d8] sm:$0xff]
  %v219 = vld [vmem:[%s1 + $0x4e0] sm:$0xff]
  %v220 = vld [vmem:[%s1 + $0x4e8] sm:$0xff]
  %v221 = vld [vmem:[%s1 + $0x4f0] sm:$0xff]
  %v222 = vld [vmem:[%s1 + $0x4f8] sm:$0xff]
  %v223 = vld [vmem:[%s1 + $0x500] sm:$0xff]
  %v224 = vld [vmem:[%s1 + $0x508] sm:$0xff]
  %v225 = vld [vmem:[%s1 + $0x510] sm:$0xff]
  %v226 = vld [vmem:[%s1 + $0x518] sm:$0xff]
  %v227 = vld [vmem:[%s1 + $0x520] sm:$0xff]
  %v228 = vld [vmem:[%s1 + $0x528] sm:$0xff]
  %v229 = vld [vmem:[%s1 + $0x530] sm:$0xff]
  %v230 = vld [vmem:[%s1 + $0x538] sm:$0xff]
  %v231 = vld [vmem:[%s1 + $0x540] sm:$0xff]
  %v232 = vld [vmem:[%s1 + $0x548] sm:$0xff]
  %v233 = vld [vmem:[%s1 + $0x550] sm:$0xff]
  %v234 = vld [vmem:[%s1 + $0x558] sm:$0xff]
  %v235 = vld [vmem:[%s1 + $0x560] sm:$0xff]
  %v236 = vld [vmem:[%s1 + $0x568] sm:$0xff]
  %v237 = vld [vmem:[%s1 + $0x570] sm:$0xff]
  %v238 = vld [vmem:[%s1 + $0x578] sm:$0xff]
  %v239 = vld [vmem:[%s1 + $0x580] sm:$0xff]
  %v240 = vld [vmem:[%s1 + $0x588] sm:$0xff]
  %v241 = vld [vmem:[%s1 + $0x590] sm:$0xff]
  %v242 = vld [vmem:[%s1 + $0x598] sm:$0xff]
  %v243 = vld [vmem:[%s1 + $0x5a0] sm:$0xff]
  %v244 = vld [vmem:[%s1 + $0x5a8] sm:$0xff]
  %v245 = vld [vmem:[%s1 + $0x5b0] sm:$0xff]
  %v246 = vld [vmem:[%s1 + $0x5b8] sm:$0xff]
  %v247 = vld [vmem:[%s1 + $0x5c0] sm:$0xff]
  %v248 = vld [vmem:[%s1 + $0x5c8] sm:$0xff]
  %v249 = vld [vmem:[%s1 + $0x5d0] sm:$0xff]
  %v250 = vld [vmem:[%s1 + $0x5d8] sm:$0xff]
  %v251 = vld [vmem:[%s1 + $0x5e0] sm:$0xff]
  %v252 = vld [vmem:[%s1 + $0x5e8] sm:$0xff]
  %v253 = vld [vmem:[%s1 + $0x5f0] sm:$0xff]
  %v254 = vld [vmem:[%s1 + $0x5f8] sm:$0xff]
  %v255 = vld [vmem:[%s1 + $0x600] sm:$0xff]
  %v256 = vld [vmem:[%s1 + $0x608] sm:$0xff]
  %v257 = vld [vmem:[%s1 + $0x610] sm:$0xff]
  %v258 = vld [vmem:[%s1 + $0x618] sm:$0xff]
  %v259 = vld [vmem:[%s1 + $0x620] sm:$0xff]
  %v260 = vld [vmem:[%s1 + $0x628] sm:$0xff]
  %v261 = vld [vmem:[%s1 + $0x630] sm:$0xff]
  %v262 = vld [vmem:[%s1 + $0x638] sm:$0xff]
  %v263 = vld [vmem:[%s1 + $0x640] sm:$0xff]
  %v264 = vld [vmem:[%s1 + $0x648] sm:$0xff]
  %v265 = vld [vmem:[%s1 + $0x650] sm:$0xff]
  %v266 = vld [vmem:[%s1 + $0x658] sm:$0xff]
  %v267 = vld [vmem:[%s1 + $0x660] sm:$0xff]
  %v268 = vld [vmem:[%s1 + $0x668] sm:$0xff]
  %v269 = vld [vmem:[%s1 + $0x670] sm:$0xff]
  %v270 = vld [vmem:[%s1 + $0x678] sm:$0xff]
  %v271 = vld [vmem:[%s1 + $0x680] sm:$0xff]
  %v272 = vld [vmem:[%s1 + $0x688] sm:$0xff]
  %v273 = vld [vmem:[%s1 + $0x690] sm:$0xff]
  %v274 = vld [vmem:[%s1 + $0x698] sm:$0xff]
  %v275 = vld [vmem:[%s1 + $0x6a0] sm:$0xff]
  %v276 = vld [vmem:[%s1 + $0x6a8] sm:$0xff]
  %v277 = vld [vmem:[%s1 + $0x6b0] sm:$0xff]
  %v278 = vld [vmem:[%s1 + $0x6b8] sm:$0xff]
  %v279 = vld [vmem:[%s1 + $0x6c0] sm:$0xff]
  %v280 = vld [vmem:[%s1 + $0x6c8] sm:$0xff]
  %v281 = vld [vmem:[%s1 + $0x6d0] sm:$0xff]
  %v282 = vld [vmem:[%s1 + $0x6d8] sm:$0xff]
  %v283 = vld [vmem:[%s1 + $0x6e0] sm:$0xff]
  %v284 = vld [vmem:[%s1 + $0x6e8] sm:$0xff]
  %v285 = vld [vmem:[%s1 + $0x6f0] sm:$0xff]
  %v286 = vld [vmem:[%s1 + $0x6f8] sm:$0xff]
  %v287 = vld [vmem:[%s1 + $0x700] sm:$0xff]
  %v288 = vld [vmem:[%s1 + $0x708] sm:$0xff]
  %v289 = vld [vmem:[%s1 + $0x710] sm:$0xff]
  %v290 = vld [vmem:[%s1 + $0x718] sm:$0xff]
  %v291 = vld [vmem:[%s1 + $0x720] sm:$0xff]
  %v292 = vld [vmem:[%s1 + $0x728] sm:$0xff]
  %v293 = vld [vmem:[%s1 + $0x730] sm:$0xff]
  %v294 = vld [vmem:[%s1 + $0x738] sm:$0xff]
  %v295 = vld [vmem:[%s1 + $0x740] sm:$0xff]
  %v296 = vld [vmem:[%s1 + $0x748] sm:$0xff]
  %v297 = vld [vmem:[%s1 + $0x750] sm:$0xff]
  %v298 = vld [vmem:[%s1 + $0x758] sm:$0xff]
  %v299 = vld [vmem:[%s1 + $0x760] sm:$0xff]
  %v300 = vld [vmem:[%s1 + $0x768] sm:$0xff]
  %v301 = vld [vmem:[%s1 + $0x770] sm:$0xff]
  %v302 = vld [vmem:[%s1 + $0x778] sm:$0xff]
  %v303 = vld [vmem:[%s1 + $0x780] sm:$0xff]
  %v304 = vld [vmem:[%s1 + $0x788] sm:$0xff]
  %v305 = vld [vmem:[%s1 + $0x790] sm:$0xff]
  %v306 = vld [vmem:[%s1 + $0x798] sm:$0xff]
  %v307 = vld [vmem:[%s1 + $0x7a0] sm:$0xff]
  %v308 = vld [vmem:[%s1 + $0x7a8] sm:$0xff]
  %v309 = vld [vmem:[%s1 + $0x7b0] sm:$0xff]
  %v310 = vld [vmem:[%s1 + $0x7b8] sm:$0xff]
  %v311 = vld [vmem:[%s1 + $0x7c0] sm:$0xff]
  %v312 = vld [vmem:[%s1 + $0x7c8] sm:$0xff]
  %v313 = vld [vmem:[%s1 + $0x7d0] sm:$0xff]
  %v314 = vld [vmem:[%s1 + $0x7d8] sm:$0xff]
  %v315 = vld [vmem:[%s1 + $0x7e0] sm:$0xff]
  %v316 = vld [vmem:[%s1 + $0x7e8] sm:$0xff]
  %v317 = vld [vmem:[%s1 + $0x7f0] sm:$0xff]
  %v318 = vld [vmem:[%s1 + $0x7f8] sm:$0xff]
  %v575 = vunpack.c.l.b16 %v63
  %v576 = vunpack.c.h.b16 %v63
  %v577 = vunpack.c.l.b16 %v64
  %v578 = vunpack.c.h.b16 %v64
  %v579 = vunpack.c.l.b16 %v65
  %v580 = vunpack.c.h.b16 %v65
  %v581 = vunpack.c.l.b16 %v66
  %v582 = vunpack.c.h.b16 %v66
  %v583 = vunpack.c.l.b16 %v67
  %v584 = vunpack.c.h.b16 %v67
  %v585 = vunpack.c.l.b16 %v68
  %v586 = vunpack.c.h.b16 %v68
  %v587 = vunpack.c.l.b16 %v69
  %v588 = vunpack.c.h.b16 %v69
  %v589 = vunpack.c.l.b16 %v70
  %v590 = vunpack.c.h.b16 %v70
  %v591 = vunpack.c.l.b16 %v71
  %v592 = vunpack.c.h.b16 %v71
  %v593 = vunpack.c.l.b16 %v72
  %v594 = vunpack.c.h.b16 %v72
  %v595 = vunpack.c.l.b16 %v73
  %v596 = vunpack.c.h.b16 %v73
  %v597 = vunpack.c.l.b16 %v74
  %v598 = vunpack.c.h.b16 %v74
  %v599 = vunpack.c.l.b16 %v75
  %v600 = vunpack.c.h.b16 %v75
  %v601 = vunpack.c.l.b16 %v76
  %v602 = vunpack.c.h.b16 %v76
  %v603 = vunpack.c.l.b16 %v77
  %v604 = vunpack.c.h.b16 %v77
  %v605 = vunpack.c.l.b16 %v78
  %v606 = vunpack.c.h.b16 %v78
  %v607 = vunpack.c.l.b16 %v79
  %v608 = vunpack.c.h.b16 %v79
  %v609 = vunpack.c.l.b16 %v80
  %v610 = vunpack.c.h.b16 %v80
  %v611 = vunpack.c.l.b16 %v81
  %v612 = vunpack.c.h.b16 %v81
  %v613 = vunpack.c.l.b16 %v82
  %v614 = vunpack.c.h.b16 %v82
  %v615 = vunpack.c.l.b16 %v83
  %v616 = vunpack.c.h.b16 %v83
  %v617 = vunpack.c.l.b16 %v84
  %v618 = vunpack.c.h.b16 %v84
  %v619 = vunpack.c.l.b16 %v85
  %v620 = vunpack.c.h.b16 %v85
  %v621 = vunpack.c.l.b16 %v86
  %v622 = vunpack.c.h.b16 %v86
  %v623 = vunpack.c.l.b16 %v87
  %v624 = vunpack.c.h.b16 %v87
  %v625 = vunpack.c.l.b16 %v88
  %v626 = vunpack.c.h.b16 %v88
  %v627 = vunpack.c.l.b16 %v89
  %v628 = vunpack.c.h.b16 %v89
  %v629 = vunpack.c.l.b16 %v90
  %v630 = vunpack.c.h.b16 %v90
  %v631 = vunpack.c.l.b16 %v91
  %v632 = vunpack.c.h.b16 %v91
  %v633 = vunpack.c.l.b16 %v92
  %v634 = vunpack.c.h.b16 %v92
  %v635 = vunpack.c.l.b16 %v93
  %v636 = vunpack.c.h.b16 %v93
  %v637 = vunpack.c.l.b16 %v94
  %v638 = vunpack.c.h.b16 %v94
  %v639 = vunpack.c.l.b16 %v95
  %v640 = vunpack.c.h.b16 %v95
  %v641 = vunpack.c.l.b16 %v96
  %v642 = vunpack.c.h.b16 %v96
  %v643 = vunpack.c.l.b16 %v97
  %v644 = vunpack.c.h.b16 %v97
  %v645 = vunpack.c.l.b16 %v98
  %v646 = vunpack.c.h.b16 %v98
  %v647 = vunpack.c.l.b16 %v99
  %v648 = vunpack.c.h.b16 %v99
  %v649 = vunpack.c.l.b16 %v100
  %v650 = vunpack.c.h.b16 %v100
  %v651 = vunpack.c.l.b16 %v101
  %v652 = vunpack.c.h.b16 %v101
  %v653 = vunpack.c.l.b16 %v102
  %v654 = vunpack.c.h.b16 %v102
  %v655 = vunpack.c.l.b16 %v103
  %v656 = vunpack.c.h.b16 %v103
  %v657 = vunpack.c.l.b16 %v104
  %v658 = vunpack.c.h.b16 %v104
  %v659 = vunpack.c.l.b16 %v105
  %v660 = vunpack.c.h.b16 %v105
  %v661 = vunpack.c.l.b16 %v106
  %v662 = vunpack.c.h.b16 %v106
  %v663 = vunpack.c.l.b16 %v107
  %v664 = vunpack.c.h.b16 %v107
  %v665 = vunpack.c.l.b16 %v108
  %v666 = vunpack.c.h.b16 %v108
  %v667 = vunpack.c.l.b16 %v109
  %v668 = vunpack.c.h.b16 %v109
  %v669 = vunpack.c.l.b16 %v110
  %v670 = vunpack.c.h.b16 %v110
  %v671 = vunpack.c.l.b16 %v111
  %v672 = vunpack.c.h.b16 %v111
  %v673 = vunpack.c.l.b16 %v112
  %v674 = vunpack.c.h.b16 %v112
  %v675 = vunpack.c.l.b16 %v113
  %v676 = vunpack.c.h.b16 %v113
  %v677 = vunpack.c.l.b16 %v114
  %v678 = vunpack.c.h.b16 %v114
  %v679 = vunpack.c.l.b16 %v115
  %v680 = vunpack.c.h.b16 %v115
  %v681 = vunpack.c.l.b16 %v116
  %v682 = vunpack.c.h.b16 %v116
  %v683 = vunpack.c.l.b16 %v117
  %v684 = vunpack.c.h.b16 %v117
  %v685 = vunpack.c.l.b16 %v118
  %v686 = vunpack.c.h.b16 %v118
  %v687 = vunpack.c.l.b16 %v119
  %v688 = vunpack.c.h.b16 %v119
  %v689 = vunpack.c.l.b16 %v120
  %v690 = vunpack.c.h.b16 %v120
  %v691 = vunpack.c.l.b16 %v121
  %v692 = vunpack.c.h.b16 %v121
  %v693 = vunpack.c.l.b16 %v122
  %v694 = vunpack.c.h.b16 %v122
  %v695 = vunpack.c.l.b16 %v123
  %v696 = vunpack.c.h.b16 %v123
  %v697 = vunpack.c.l.b16 %v124
  %v698 = vunpack.c.h.b16 %v124
  %v699 = vunpack.c.l.b16 %v125
  %v700 = vunpack.c.h.b16 %v125
  %v701 = vunpack.c.l.b16 %v126
  %v702 = vunpack.c.h.b16 %v126
  %v703 = vunpack.c.l.b16 %v127
  %v704 = vunpack.c.h.b16 %v127
  %v705 = vunpack.c.l.b16 %v128
  %v706 = vunpack.c.h.b16 %v128
  %v707 = vunpack.c.l.b16 %v129
  %v708 = vunpack.c.h.b16 %v129
  %v709 = vunpack.c.l.b16 %v130
  %v710 = vunpack.c.h.b16 %v130
  %v711 = vunpack.c.l.b16 %v131
  %v712 = vunpack.c.h.b16 %v131
  %v713 = vunpack.c.l.b16 %v132
  %v714 = vunpack.c.h.b16 %v132
  %v715 = vunpack.c.l.b16 %v133
  %v716 = vunpack.c.h.b16 %v133
  %v717 = vunpack.c.l.b16 %v134
  %v718 = vunpack.c.h.b16 %v134
  %v719 = vunpack.c.l.b16 %v135
  %v720 = vunpack.c.h.b16 %v135
  %v721 = vunpack.c.l.b16 %v136
  %v722 = vunpack.c.h.b16 %v136
  %v723 = vunpack.c.l.b16 %v137
  %v724 = vunpack.c.h.b16 %v137
  %v725 = vunpack.c.l.b16 %v138
  %v726 = vunpack.c.h.b16 %v138
  %v727 = vunpack.c.l.b16 %v139
  %v728 = vunpack.c.h.b16 %v139
  %v729 = vunpack.c.l.b16 %v140
  %v730 = vunpack.c.h.b16 %v140
  %v731 = vunpack.c.l.b16 %v141
  %v732 = vunpack.c.h.b16 %v141
  %v733 = vunpack.c.l.b16 %v142
  %v734 = vunpack.c.h.b16 %v142
  %v735 = vunpack.c.l.b16 %v143
  %v736 = vunpack.c.h.b16 %v143
  %v737 = vunpack.c.l.b16 %v144
  %v738 = vunpack.c.h.b16 %v144
  %v739 = vunpack.c.l.b16 %v145
  %v740 = vunpack.c.h.b16 %v145
  %v741 = vunpack.c.l.b16 %v146
  %v742 = vunpack.c.h.b16 %v146
  %v743 = vunpack.c.l.b16 %v147
  %v744 = vunpack.c.h.b16 %v147
  %v745 = vunpack.c.l.b16 %v148
  %v746 = vunpack.c.h.b16 %v148
  %v747 = vunpack.c.l.b16 %v149
  %v748 = vunpack.c.h.b16 %v149
  %v749 = vunpack.c.l.b16 %v150
  %v750 = vunpack.c.h.b16 %v150
  %v751 = vunpack.c.l.b16 %v151
  %v752 = vunpack.c.h.b16 %v151
  %v753 = vunpack.c.l.b16 %v152
  %v754 = vunpack.c.h.b16 %v152
  %v755 = vunpack.c.l.b16 %v153
  %v756 = vunpack.c.h.b16 %v153
  %v757 = vunpack.c.l.b16 %v154
  %v758 = vunpack.c.h.b16 %v154
  %v759 = vunpack.c.l.b16 %v155
  %v760 = vunpack.c.h.b16 %v155
  %v761 = vunpack.c.l.b16 %v156
  %v762 = vunpack.c.h.b16 %v156
  %v763 = vunpack.c.l.b16 %v157
  %v764 = vunpack.c.h.b16 %v157
  %v765 = vunpack.c.l.b16 %v158
  %v766 = vunpack.c.h.b16 %v158
  %v767 = vunpack.c.l.b16 %v159
  %v768 = vunpack.c.h.b16 %v159
  %v769 = vunpack.c.l.b16 %v160
  %v770 = vunpack.c.h.b16 %v160
  %v771 = vunpack.c.l.b16 %v161
  %v772 = vunpack.c.h.b16 %v161
  %v773 = vunpack.c.l.b16 %v162
  %v774 = vunpack.c.h.b16 %v162
  %v775 = vunpack.c.l.b16 %v163
  %v776 = vunpack.c.h.b16 %v163
  %v777 = vunpack.c.l.b16 %v164
  %v778 = vunpack.c.h.b16 %v164
  %v779 = vunpack.c.l.b16 %v165
  %v780 = vunpack.c.h.b16 %v165
  %v781 = vunpack.c.l.b16 %v166
  %v782 = vunpack.c.h.b16 %v166
  %v783 = vunpack.c.l.b16 %v167
  %v784 = vunpack.c.h.b16 %v167
  %v785 = vunpack.c.l.b16 %v168
  %v786 = vunpack.c.h.b16 %v168
  %v787 = vunpack.c.l.b16 %v169
  %v788 = vunpack.c.h.b16 %v169
  %v789 = vunpack.c.l.b16 %v170
  %v790 = vunpack.c.h.b16 %v170
  %v791 = vunpack.c.l.b16 %v171
  %v792 = vunpack.c.h.b16 %v171
  %v793 = vunpack.c.l.b16 %v172
  %v794 = vunpack.c.h.b16 %v172
  %v795 = vunpack.c.l.b16 %v173
  %v796 = vunpack.c.h.b16 %v173
  %v797 = vunpack.c.l.b16 %v174
  %v798 = vunpack.c.h.b16 %v174
  %v799 = vunpack.c.l.b16 %v175
  %v800 = vunpack.c.h.b16 %v175
  %v801 = vunpack.c.l.b16 %v176
  %v802 = vunpack.c.h.b16 %v176
  %v803 = vunpack.c.l.b16 %v177
  %v804 = vunpack.c.h.b16 %v177
  %v805 = vunpack.c.l.b16 %v178
  %v806 = vunpack.c.h.b16 %v178
  %v807 = vunpack.c.l.b16 %v179
  %v808 = vunpack.c.h.b16 %v179
  %v809 = vunpack.c.l.b16 %v180
  %v810 = vunpack.c.h.b16 %v180
  %v811 = vunpack.c.l.b16 %v181
  %v812 = vunpack.c.h.b16 %v181
  %v813 = vunpack.c.l.b16 %v182
  %v814 = vunpack.c.h.b16 %v182
  %v815 = vunpack.c.l.b16 %v183
  %v816 = vunpack.c.h.b16 %v183
  %v817 = vunpack.c.l.b16 %v184
  %v818 = vunpack.c.h.b16 %v184
  %v819 = vunpack.c.l.b16 %v185
  %v820 = vunpack.c.h.b16 %v185
  %v821 = vunpack.c.l.b16 %v186
  %v822 = vunpack.c.h.b16 %v186
  %v823 = vunpack.c.l.b16 %v187
  %v824 = vunpack.c.h.b16 %v187
  %v825 = vunpack.c.l.b16 %v188
  %v826 = vunpack.c.h.b16 %v188
  %v827 = vunpack.c.l.b16 %v189
  %v828 = vunpack.c.h.b16 %v189
  %v829 = vunpack.c.l.b16 %v190
  %v830 = vunpack.c.h.b16 %v190
  %v831 = vunpack.c.l.b16 %v191
  %v832 = vunpack.c.h.b16 %v191
  %v833 = vunpack.c.l.b16 %v192
  %v834 = vunpack.c.h.b16 %v192
  %v835 = vunpack.c.l.b16 %v193
  %v836 = vunpack.c.h.b16 %v193
  %v837 = vunpack.c.l.b16 %v194
  %v838 = vunpack.c.h.b16 %v194
  %v839 = vunpack.c.l.b16 %v195
  %v840 = vunpack.c.h.b16 %v195
  %v841 = vunpack.c.l.b16 %v196
  %v842 = vunpack.c.h.b16 %v196
  %v843 = vunpack.c.l.b16 %v197
  %v844 = vunpack.c.h.b16 %v197
  %v845 = vunpack.c.l.b16 %v198
  %v846 = vunpack.c.h.b16 %v198
  %v847 = vunpack.c.l.b16 %v199
  %v848 = vunpack.c.h.b16 %v199
  %v849 = vunpack.c.l.b16 %v200
  %v850 = vunpack.c.h.b16 %v200
  %v851 = vunpack.c.l.b16 %v201
  %v852 = vunpack.c.h.b16 %v201
  %v853 = vunpack.c.l.b16 %v202
  %v854 = vunpack.c.h.b16 %v202
  %v855 = vunpack.c.l.b16 %v203
  %v856 = vunpack.c.h.b16 %v203
  %v857 = vunpack.c.l.b16 %v204
  %v858 = vunpack.c.h.b16 %v204
  %v859 = vunpack.c.l.b16 %v205
  %v860 = vunpack.c.h.b16 %v205
  %v861 = vunpack.c.l.b16 %v206
  %v862 = vunpack.c.h.b16 %v206
  %v863 = vunpack.c.l.b16 %v207
  %v864 = vunpack.c.h.b16 %v207
  %v865 = vunpack.c.l.b16 %v208
  %v866 = vunpack.c.h.b16 %v208
  %v867 = vunpack.c.l.b16 %v209
  %v868 = vunpack.c.h.b16 %v209
  %v869 = vunpack.c.l.b16 %v210
  %v870 = vunpack.c.h.b16 %v210
  %v871 = vunpack.c.l.b16 %v211
  %v872 = vunpack.c.h.b16 %v211
  %v873 = vunpack.c.l.b16 %v212
  %v874 = vunpack.c.h.b16 %v212
  %v875 = vunpack.c.l.b16 %v213
  %v876 = vunpack.c.h.b16 %v213
  %v877 = vunpack.c.l.b16 %v214
  %v878 = vunpack.c.h.b16 %v214
  %v879 = vunpack.c.l.b16 %v215
  %v880 = vunpack.c.h.b16 %v215
  %v881 = vunpack.c.l.b16 %v216
  %v882 = vunpack.c.h.b16 %v216
  %v883 = vunpack.c.l.b16 %v217
  %v884 = vunpack.c.h.b16 %v217
  %v885 = vunpack.c.l.b16 %v218
  %v886 = vunpack.c.h.b16 %v218
  %v887 = vunpack.c.l.b16 %v219
  %v888 = vunpack.c.h.b16 %v219
  %v889 = vunpack.c.l.b16 %v220
  %v890 = vunpack.c.h.b16 %v220
  %v891 = vunpack.c.l.b16 %v221
  %v892 = vunpack.c.h.b16 %v221
  %v893 = vunpack.c.l.b16 %v222
  %v894 = vunpack.c.h.b16 %v222
  %v895 = vunpack.c.l.b16 %v223
  %v896 = vunpack.c.h.b16 %v223
  %v897 = vunpack.c.l.b16 %v224
  %v898 = vunpack.c.h.b16 %v224
  %v899 = vunpack.c.l.b16 %v225
  %v900 = vunpack.c.h.b16 %v225
  %v901 = vunpack.c.l.b16 %v226
  %v902 = vunpack.c.h.b16 %v226
  %v903 = vunpack.c.l.b16 %v227
  %v904 = vunpack.c.h.b16 %v227
  %v905 = vunpack.c.l.b16 %v228
  %v906 = vunpack.c.h.b16 %v228
  %v907 = vunpack.c.l.b16 %v229
  %v908 = vunpack.c.h.b16 %v229
  %v909 = vunpack.c.l.b16 %v230
  %v910 = vunpack.c.h.b16 %v230
  %v911 = vunpack.c.l.b16 %v231
  %v912 = vunpack.c.h.b16 %v231
  %v913 = vunpack.c.l.b16 %v232
  %v914 = vunpack.c.h.b16 %v232
  %v915 = vunpack.c.l.b16 %v233
  %v916 = vunpack.c.h.b16 %v233
  %v917 = vunpack.c.l.b16 %v234
  %v918 = vunpack.c.h.b16 %v234
  %v919 = vunpack.c.l.b16 %v235
  %v920 = vunpack.c.h.b16 %v235
  %v921 = vunpack.c.l.b16 %v236
  %v922 = vunpack.c.h.b16 %v236
  %v923 = vunpack.c.l.b16 %v237
  %v924 = vunpack.c.h.b16 %v237
  %v925 = vunpack.c.l.b16 %v238
  %v926 = vunpack.c.h.b16 %v238
  %v927 = vunpack.c.l.b16 %v239
  %v928 = vunpack.c.h.b16 %v239
  %v929 = vunpack.c.l.b16 %v240
  %v930 = vunpack.c.h.b16 %v240
  %v931 = vunpack.c.l.b16 %v241
  %v932 = vunpack.c.h.b16 %v241
  %v933 = vunpack.c.l.b16 %v242
  %v934 = vunpack.c.h.b16 %v242
  %v935 = vunpack.c.l.b16 %v243
  %v936 = vunpack.c.h.b16 %v243
  %v937 = vunpack.c.l.b16 %v244
  %v938 = vunpack.c.h.b16 %v244
  %v939 = vunpack.c.l.b16 %v245
  %v940 = vunpack.c.h.b16 %v245
  %v941 = vunpack.c.l.b16 %v246
  %v942 = vunpack.c.h.b16 %v246
  %v943 = vunpack.c.l.b16 %v247
  %v944 = vunpack.c.h.b16 %v247
  %v945 = vunpack.c.l.b16 %v248
  %v946 = vunpack.c.h.b16 %v248
  %v947 = vunpack.c.l.b16 %v249
  %v948 = vunpack.c.h.b16 %v249
  %v949 = vunpack.c.l.b16 %v250
  %v950 = vunpack.c.h.b16 %v250
  %v951 = vunpack.c.l.b16 %v251
  %v952 = vunpack.c.h.b16 %v251
  %v953 = vunpack.c.l.b16 %v252
  %v954 = vunpack.c.h.b16 %v252
  %v955 = vunpack.c.l.b16 %v253
  %v956 = vunpack.c.h.b16 %v253
  %v957 = vunpack.c.l.b16 %v254
  %v958 = vunpack.c.h.b16 %v254
  %v959 = vunpack.c.l.b16 %v255
  %v960 = vunpack.c.h.b16 %v255
  %v961 = vunpack.c.l.b16 %v256
  %v962 = vunpack.c.h.b16 %v256
  %v963 = vunpack.c.l.b16 %v257
  %v964 = vunpack.c.h.b16 %v257
  %v965 = vunpack.c.l.b16 %v258
  %v966 = vunpack.c.h.b16 %v258
  %v967 = vunpack.c.l.b16 %v259
  %v968 = vunpack.c.h.b16 %v259
  %v969 = vunpack.c.l.b16 %v260
  %v970 = vunpack.c.h.b16 %v260
  %v971 = vunpack.c.l.b16 %v261
  %v972 = vunpack.c.h.b16 %v261
  %v973 = vunpack.c.l.b16 %v262
  %v974 = vunpack.c.h.b16 %v262
  %v975 = vunpack.c.l.b16 %v263
  %v976 = vunpack.c.h.b16 %v263
  %v977 = vunpack.c.l.b16 %v264
  %v978 = vunpack.c.h.b16 %v264
  %v979 = vunpack.c.l.b16 %v265
  %v980 = vunpack.c.h.b16 %v265
  %v981 = vunpack.c.l.b16 %v266
  %v982 = vunpack.c.h.b16 %v266
  %v983 = vunpack.c.l.b16 %v267
  %v984 = vunpack.c.h.b16 %v267
  %v985 = vunpack.c.l.b16 %v268
  %v986 = vunpack.c.h.b16 %v268
  %v987 = vunpack.c.l.b16 %v269
  %v988 = vunpack.c.h.b16 %v269
  %v989 = vunpack.c.l.b16 %v270
  %v990 = vunpack.c.h.b16 %v270
  %v991 = vunpack.c.l.b16 %v271
  %v992 = vunpack.c.h.b16 %v271
  %v993 = vunpack.c.l.b16 %v272
  %v994 = vunpack.c.h.b16 %v272
  %v995 = vunpack.c.l.b16 %v273
  %v996 = vunpack.c.h.b16 %v273
  %v997 = vunpack.c.l.b16 %v274
  %v998 = vunpack.c.h.b16 %v274
  %v999 = vunpack.c.l.b16 %v275
  %v1000 = vunpack.c.h.b16 %v275
  %v1001 = vunpack.c.l.b16 %v276
  %v1002 = vunpack.c.h.b16 %v276
  %v1003 = vunpack.c.l.b16 %v277
  %v1004 = vunpack.c.h.b16 %v277
  %v1005 = vunpack.c.l.b16 %v278
  %v1006 = vunpack.c.h.b16 %v278
  %v1007 = vunpack.c.l.b16 %v279
  %v1008 = vunpack.c.h.b16 %v279
  %v1009 = vunpack.c.l.b16 %v280
  %v1010 = vunpack.c.h.b16 %v280
  %v1011 = vunpack.c.l.b16 %v281
  %v1012 = vunpack.c.h.b16 %v281
  %v1013 = vunpack.c.l.b16 %v282
  %v1014 = vunpack.c.h.b16 %v282
  %v1015 = vunpack.c.l.b16 %v283
  %v1016 = vunpack.c.h.b16 %v283
  %v1017 = vunpack.c.l.b16 %v284
  %v1018 = vunpack.c.h.b16 %v284
  %v1019 = vunpack.c.l.b16 %v285
  %v1020 = vunpack.c.h.b16 %v285
  %v1021 = vunpack.c.l.b16 %v286
  %v1022 = vunpack.c.h.b16 %v286
  %v1023 = vunpack.c.l.b16 %v287
  %v1024 = vunpack.c.h.b16 %v287
  %v1025 = vunpack.c.l.b16 %v288
  %v1026 = vunpack.c.h.b16 %v288
  %v1027 = vunpack.c.l.b16 %v289
  %v1028 = vunpack.c.h.b16 %v289
  %v1029 = vunpack.c.l.b16 %v290
  %v1030 = vunpack.c.h.b16 %v290
  %v1031 = vunpack.c.l.b16 %v291
  %v1032 = vunpack.c.h.b16 %v291
  %v1033 = vunpack.c.l.b16 %v292
  %v1034 = vunpack.c.h.b16 %v292
  %v1035 = vunpack.c.l.b16 %v293
  %v1036 = vunpack.c.h.b16 %v293
  %v1037 = vunpack.c.l.b16 %v294
  %v1038 = vunpack.c.h.b16 %v294
  %v1039 = vunpack.c.l.b16 %v295
  %v1040 = vunpack.c.h.b16 %v295
  %v1041 = vunpack.c.l.b16 %v296
  %v1042 = vunpack.c.h.b16 %v296
  %v1043 = vunpack.c.l.b16 %v297
  %v1044 = vunpack.c.h.b16 %v297
  %v1045 = vunpack.c.l.b16 %v298
  %v1046 = vunpack.c.h.b16 %v298
  %v1047 = vunpack.c.l.b16 %v299
  %v1048 = vunpack.c.h.b16 %v299
  %v1049 = vunpack.c.l.b16 %v300
  %v1050 = vunpack.c.h.b16 %v300
  %v1051 = vunpack.c.l.b16 %v301
  %v1052 = vunpack.c.h.b16 %v301
  %v1053 = vunpack.c.l.b16 %v302
  %v1054 = vunpack.c.h.b16 %v302
  %v1055 = vunpack.c.l.b16 %v303
  %v1056 = vunpack.c.h.b16 %v303
  %v1057 = vunpack.c.l.b16 %v304
  %v1058 = vunpack.c.h.b16 %v304
  %v1059 = vunpack.c.l.b16 %v305
  %v1060 = vunpack.c.h.b16 %v305
  %v1061 = vunpack.c.l.b16 %v306
  %v1062 = vunpack.c.h.b16 %v306
  %v1063 = vunpack.c.l.b16 %v307
  %v1064 = vunpack.c.h.b16 %v307
  %v1065 = vunpack.c.l.b16 %v308
  %v1066 = vunpack.c.h.b16 %v308
  %v1067 = vunpack.c.l.b16 %v309
  %v1068 = vunpack.c.h.b16 %v309
  %v1069 = vunpack.c.l.b16 %v310
  %v1070 = vunpack.c.h.b16 %v310
  %v1071 = vunpack.c.l.b16 %v311
  %v1072 = vunpack.c.h.b16 %v311
  %v1073 = vunpack.c.l.b16 %v312
  %v1074 = vunpack.c.h.b16 %v312
  %v1075 = vunpack.c.l.b16 %v313
  %v1076 = vunpack.c.h.b16 %v313
  %v1077 = vunpack.c.l.b16 %v314
  %v1078 = vunpack.c.h.b16 %v314
  %v1079 = vunpack.c.l.b16 %v315
  %v1080 = vunpack.c.h.b16 %v315
  %v1081 = vunpack.c.l.b16 %v316
  %v1082 = vunpack.c.h.b16 %v316
  %v1083 = vunpack.c.l.b16 %v317
  %v1084 = vunpack.c.h.b16 %v317
  %v1085 = vunpack.c.l.b16 %v318
  %v1086 = vunpack.c.h.b16 %v318
  %v1087 = vpack.c.b16 %v579, %v575
  %v1088 = vpack.c.b16 %v580, %v576
  %v1089 = vpack.c.b16 %v581, %v577
  %v1090 = vpack.c.b16 %v582, %v578
  %v1091 = vpack.c.b16 %v587, %v583
  %v1092 = vpack.c.b16 %v588, %v584
  %v1093 = vpack.c.b16 %v589, %v585
  %v1094 = vpack.c.b16 %v590, %v586
  %v1095 = vpack.c.b16 %v595, %v591
  %v1096 = vpack.c.b16 %v596, %v592
  %v1097 = vpack.c.b16 %v597, %v593
  %v1098 = vpack.c.b16 %v598, %v594
  %v1099 = vpack.c.b16 %v603, %v599
  %v1100 = vpack.c.b16 %v604, %v600
  %v1101 = vpack.c.b16 %v605, %v601
  %v1102 = vpack.c.b16 %v606, %v602
  %v1103 = vpack.c.b16 %v611, %v607
  %v1104 = vpack.c.b16 %v612, %v608
  %v1105 = vpack.c.b16 %v613, %v609
  %v1106 = vpack.c.b16 %v614, %v610
  %v1107 = vpack.c.b16 %v619, %v615
  %v1108 = vpack.c.b16 %v620, %v616
  %v1109 = vpack.c.b16 %v621, %v617
  %v1110 = vpack.c.b16 %v622, %v618
  %v1111 = vpack.c.b16 %v627, %v623
  %v1112 = vpack.c.b16 %v628, %v624
  %v1113 = vpack.c.b16 %v629, %v625
  %v1114 = vpack.c.b16 %v630, %v626
  %v1115 = vpack.c.b16 %v635, %v631
  %v1116 = vpack.c.b16 %v636, %v632
  %v1117 = vpack.c.b16 %v637, %v633
  %v1118 = vpack.c.b16 %v638, %v634
  %v1119 = vpack.c.b16 %v643, %v639
  %v1120 = vpack.c.b16 %v644, %v640
  %v1121 = vpack.c.b16 %v645, %v641
  %v1122 = vpack.c.b16 %v646, %v642
  %v1123 = vpack.c.b16 %v651, %v647
  %v1124 = vpack.c.b16 %v652, %v648
  %v1125 = vpack.c.b16 %v653, %v649
  %v1126 = vpack.c.b16 %v654, %v650
  %v1127 = vpack.c.b16 %v659, %v655
  %v1128 = vpack.c.b16 %v660, %v656
  %v1129 = vpack.c.b16 %v661, %v657
  %v1130 = vpack.c.b16 %v662, %v658
  %v1131 = vpack.c.b16 %v667, %v663
  %v1132 = vpack.c.b16 %v668, %v664
  %v1133 = vpack.c.b16 %v669, %v665
  %v1134 = vpack.c.b16 %v670, %v666
  %v1135 = vpack.c.b16 %v675, %v671
  %v1136 = vpack.c.b16 %v676, %v672
  %v1137 = vpack.c.b16 %v677, %v673
  %v1138 = vpack.c.b16 %v678, %v674
  %v1139 = vpack.c.b16 %v683, %v679
  %v1140 = vpack.c.b16 %v684, %v680
  %v1141 = vpack.c.b16 %v685, %v681
  %v1142 = vpack.c.b16 %v686, %v682
  %v1143 = vpack.c.b16 %v691, %v687
  %v1144 = vpack.c.b16 %v692, %v688
  %v1145 = vpack.c.b16 %v693, %v689
  %v1146 = vpack.c.b16 %v694, %v690
  %v1147 = vpack.c.b16 %v699, %v695
  %v1148 = vpack.c.b16 %v700, %v696
  %v1149 = vpack.c.b16 %v701, %v697
  %v1150 = vpack.c.b16 %v702, %v698
  %v1151 = vpack.c.b16 %v707, %v703
  %v1152 = vpack.c.b16 %v708, %v704
  %v1153 = vpack.c.b16 %v709, %v705
  %v1154 = vpack.c.b16 %v710, %v706
  %v1155 = vpack.c.b16 %v715, %v711
  %v1156 = vpack.c.b16 %v716, %v712
  %v1157 = vpack.c.b16 %v717, %v713
  %v1158 = vpack.c.b16 %v718, %v714
  %v1159 = vpack.c.b16 %v723, %v719
  %v1160 = vpack.c.b16 %v724, %v720
  %v1161 = vpack.c.b16 %v725, %v721
  %v1162 = vpack.c.b16 %v726, %v722
  %v1163 = vpack.c.b16 %v731, %v727
  %v1164 = vpack.c.b16 %v732, %v728
  %v1165 = vpack.c.b16 %v733, %v729
  %v1166 = vpack.c.b16 %v734, %v730
  %v1167 = vpack.c.b16 %v739, %v735
  %v1168 = vpack.c.b16 %v740, %v736
  %v1169 = vpack.c.b16 %v741, %v737
  %v1170 = vpack.c.b16 %v742, %v738
  %v1171 = vpack.c.b16 %v747, %v743
  %v1172 = vpack.c.b16 %v748, %v744
  %v1173 = vpack.c.b16 %v749, %v745
  %v1174 = vpack.c.b16 %v750, %v746
  %v1175 = vpack.c.b16 %v755, %v751
  %v1176 = vpack.c.b16 %v756, %v752
  %v1177 = vpack.c.b16 %v757, %v753
  %v1178 = vpack.c.b16 %v758, %v754
  %v1179 = vpack.c.b16 %v763, %v759
  %v1180 = vpack.c.b16 %v764, %v760
  %v1181 = vpack.c.b16 %v765, %v761
  %v1182 = vpack.c.b16 %v766, %v762
  %v1183 = vpack.c.b16 %v771, %v767
  %v1184 = vpack.c.b16 %v772, %v768
  %v1185 = vpack.c.b16 %v773, %v769
  %v1186 = vpack.c.b16 %v774, %v770
  %v1187 = vpack.c.b16 %v779, %v775
  %v1188 = vpack.c.b16 %v780, %v776
  %v1189 = vpack.c.b16 %v781, %v777
  %v1190 = vpack.c.b16 %v782, %v778
  %v1191 = vpack.c.b16 %v787, %v783
  %v1192 = vpack.c.b16 %v788, %v784
  %v1193 = vpack.c.b16 %v789, %v785
  %v1194 = vpack.c.b16 %v790, %v786
  %v1195 = vpack.c.b16 %v795, %v791
  %v1196 = vpack.c.b16 %v796, %v792
  %v1197 = vpack.c.b16 %v797, %v793
  %v1198 = vpack.c.b16 %v798, %v794
  %v1199 = vpack.c.b16 %v803, %v799
  %v1200 = vpack.c.b16 %v804, %v800
  %v1201 = vpack.c.b16 %v805, %v801
  %v1202 = vpack.c.b16 %v806, %v802
  %v1203 = vpack.c.b16 %v811, %v807
  %v1204 = vpack.c.b16 %v812, %v808
  %v1205 = vpack.c.b16 %v813, %v809
  %v1206 = vpack.c.b16 %v814, %v810
  %v1207 = vpack.c.b16 %v819, %v815
  %v1208 = vpack.c.b16 %v820, %v816
  %v1209 = vpack.c.b16 %v821, %v817
  %v1210 = vpack.c.b16 %v822, %v818
  %v1211 = vpack.c.b16 %v827, %v823
  %v1212 = vpack.c.b16 %v828, %v824
  %v1213 = vpack.c.b16 %v829, %v825
  %v1214 = vpack.c.b16 %v830, %v826
  %v1215 = vpack.c.b16 %v835, %v831
  %v1216 = vpack.c.b16 %v836, %v832
  %v1217 = vpack.c.b16 %v837, %v833
  %v1218 = vpack.c.b16 %v838, %v834
  %v1219 = vpack.c.b16 %v843, %v839
  %v1220 = vpack.c.b16 %v844, %v840
  %v1221 = vpack.c.b16 %v845, %v841
  %v1222 = vpack.c.b16 %v846, %v842
  %v1223 = vpack.c.b16 %v851, %v847
  %v1224 = vpack.c.b16 %v852, %v848
  %v1225 = vpack.c.b16 %v853, %v849
  %v1226 = vpack.c.b16 %v854, %v850
  %v1227 = vpack.c.b16 %v859, %v855
  %v1228 = vpack.c.b16 %v860, %v856
  %v1229 = vpack.c.b16 %v861, %v857
  %v1230 = vpack.c.b16 %v862, %v858
  %v1231 = vpack.c.b16 %v867, %v863
  %v1232 = vpack.c.b16 %v868, %v864
  %v1233 = vpack.c.b16 %v869, %v865
  %v1234 = vpack.c.b16 %v870, %v866
  %v1235 = vpack.c.b16 %v875, %v871
  %v1236 = vpack.c.b16 %v876, %v872
  %v1237 = vpack.c.b16 %v877, %v873
  %v1238 = vpack.c.b16 %v878, %v874
  %v1239 = vpack.c.b16 %v883, %v879
  %v1240 = vpack.c.b16 %v884, %v880
  %v1241 = vpack.c.b16 %v885, %v881
  %v1242 = vpack.c.b16 %v886, %v882
  %v1243 = vpack.c.b16 %v891, %v887
  %v1244 = vpack.c.b16 %v892, %v888
  %v1245 = vpack.c.b16 %v893, %v889
  %v1246 = vpack.c.b16 %v894, %v890
  %v1247 = vpack.c.b16 %v899, %v895
  %v1248 = vpack.c.b16 %v900, %v896
  %v1249 = vpack.c.b16 %v901, %v897
  %v1250 = vpack.c.b16 %v902, %v898
  %v1251 = vpack.c.b16 %v907, %v903
  %v1252 = vpack.c.b16 %v908, %v904
  %v1253 = vpack.c.b16 %v909, %v905
  %v1254 = vpack.c.b16 %v910, %v906
  %v1255 = vpack.c.b16 %v915, %v911
  %v1256 = vpack.c.b16 %v916, %v912
  %v1257 = vpack.c.b16 %v917, %v913
  %v1258 = vpack.c.b16 %v918, %v914
  %v1259 = vpack.c.b16 %v923, %v919
  %v1260 = vpack.c.b16 %v924, %v920
  %v1261 = vpack.c.b16 %v925, %v921
  %v1262 = vpack.c.b16 %v926, %v922
  %v1263 = vpack.c.b16 %v931, %v927
  %v1264 = vpack.c.b16 %v932, %v928
  %v1265 = vpack.c.b16 %v933, %v929
  %v1266 = vpack.c.b16 %v934, %v930
  %v1267 = vpack.c.b16 %v939, %v935
  %v1268 = vpack.c.b16 %v940, %v936
  %v1269 = vpack.c.b16 %v941, %v937
  %v1270 = vpack.c.b16 %v942, %v938
  %v1271 = vpack.c.b16 %v947, %v943
  %v1272 = vpack.c.b16 %v948, %v944
  %v1273 = vpack.c.b16 %v949, %v945
  %v1274 = vpack.c.b16 %v950, %v946
  %v1275 = vpack.c.b16 %v955, %v951
  %v1276 = vpack.c.b16 %v956, %v952
  %v1277 = vpack.c.b16 %v957, %v953
  %v1278 = vpack.c.b16 %v958, %v954
  %v1279 = vpack.c.b16 %v963, %v959
  %v1280 = vpack.c.b16 %v964, %v960
  %v1281 = vpack.c.b16 %v965, %v961
  %v1282 = vpack.c.b16 %v966, %v962
  %v1283 = vpack.c.b16 %v971, %v967
  %v1284 = vpack.c.b16 %v972, %v968
  %v1285 = vpack.c.b16 %v973, %v969
  %v1286 = vpack.c.b16 %v974, %v970
  %v1287 = vpack.c.b16 %v979, %v975
  %v1288 = vpack.c.b16 %v980, %v976
  %v1289 = vpack.c.b16 %v981, %v977
  %v1290 = vpack.c.b16 %v982, %v978
  %v1291 = vpack.c.b16 %v987, %v983
  %v1292 = vpack.c.b16 %v988, %v984
  %v1293 = vpack.c.b16 %v989, %v985
  %v1294 = vpack.c.b16 %v990, %v986
  %v1295 = vpack.c.b16 %v995, %v991
  %v1296 = vpack.c.b16 %v996, %v992
  %v1297 = vpack.c.b16 %v997, %v993
  %v1298 = vpack.c.b16 %v998, %v994
  %v1299 = vpack.c.b16 %v1003, %v999
  %v1300 = vpack.c.b16 %v1004, %v1000
  %v1301 = vpack.c.b16 %v1005, %v1001
  %v1302 = vpack.c.b16 %v1006, %v1002
  %v1303 = vpack.c.b16 %v1011, %v1007
  %v1304 = vpack.c.b16 %v1012, %v1008
  %v1305 = vpack.c.b16 %v1013, %v1009
  %v1306 = vpack.c.b16 %v1014, %v1010
  %v1307 = vpack.c.b16 %v1019, %v1015
  %v1308 = vpack.c.b16 %v1020, %v1016
  %v1309 = vpack.c.b16 %v1021, %v1017
  %v1310 = vpack.c.b16 %v1022, %v1018
  %v1311 = vpack.c.b16 %v1027, %v1023
  %v1312 = vpack.c.b16 %v1028, %v1024
  %v1313 = vpack.c.b16 %v1029, %v1025
  %v1314 = vpack.c.b16 %v1030, %v1026
  %v1315 = vpack.c.b16 %v1035, %v1031
  %v1316 = vpack.c.b16 %v1036, %v1032
  %v1317 = vpack.c.b16 %v1037, %v1033
  %v1318 = vpack.c.b16 %v1038, %v1034
  %v1319 = vpack.c.b16 %v1043, %v1039
  %v1320 = vpack.c.b16 %v1044, %v1040
  %v1321 = vpack.c.b16 %v1045, %v1041
  %v1322 = vpack.c.b16 %v1046, %v1042
  %v1323 = vpack.c.b16 %v1051, %v1047
  %v1324 = vpack.c.b16 %v1052, %v1048
  %v1325 = vpack.c.b16 %v1053, %v1049
  %v1326 = vpack.c.b16 %v1054, %v1050
  %v1327 = vpack.c.b16 %v1059, %v1055
  %v1328 = vpack.c.b16 %v1060, %v1056
  %v1329 = vpack.c.b16 %v1061, %v1057
  %v1330 = vpack.c.b16 %v1062, %v1058
  %v1331 = vpack.c.b16 %v1067, %v1063
  %v1332 = vpack.c.b16 %v1068, %v1064
  %v1333 = vpack.c.b16 %v1069, %v1065
  %v1334 = vpack.c.b16 %v1070, %v1066
  %v1335 = vpack.c.b16 %v1075, %v1071
  %v1336 = vpack.c.b16 %v1076, %v1072
  %v1337 = vpack.c.b16 %v1077, %v1073
  %v1338 = vpack.c.b16 %v1078, %v1074
  %v1339 = vpack.c.b16 %v1083, %v1079
  %v1340 = vpack.c.b16 %v1084, %v1080
  %v1341 = vpack.c.b16 %v1085, %v1081
  %v1342 = vpack.c.b16 %v1086, %v1082
  %1599 = vmatpush.bf16.msra.mxu0 %v1115
  %1600 = vmatpush.bf16.msra.mxu0 %v1111
  %1601 = vmatpush.bf16.msra.mxu0 %v1107
  %1602 = vmatpush.bf16.msra.mxu0 %v1103
  %1603 = vmatpush.bf16.msra.mxu0 %v1099
  %1604 = vmatpush.bf16.msra.mxu0 %v1095
  %1605 = vmatpush.bf16.msra.mxu0 %v1091
  %1606 = vmatpush.bf16.msra.mxu0 %v1087
  %1607 = vmatmul.bf16.gmra.mxu0 %v55
  %v1608 = vpop.f32.mrf.mxu0
  %v1609 = vadd.f32 0.0, %v1608
  %v1610 = vpop.f32.mrf.mxu0
  %1611 = vdwg.mxu0
  %1612 = vmatpush.bf16.msra.mxu0 %v1147
  %1613 = vmatpush.bf16.msra.mxu0 %v1143
  %1614 = vmatpush.bf16.msra.mxu0 %v1139
  %1615 = vmatpush.bf16.msra.mxu0 %v1135
  %1616 = vmatpush.bf16.msra.mxu0 %v1131
  %1617 = vmatpush.bf16.msra.mxu0 %v1127
  %1618 = vmatpush.bf16.msra.mxu0 %v1123
  %1619 = vmatpush.bf16.msra.mxu0 %v1119
  %1620 = vmatmul.bf16.gmra.mxu0 %v56
  %v1621 = vpop.f32.mrf.mxu0
  %v1622 = vadd.f32 %v1609, %v1621
  %v1623 = vpop.f32.mrf.mxu0
  %1624 = vdwg.mxu0
  %1625 = vmatpush.bf16.msra.mxu0 %v1179
  %1626 = vmatpush.bf16.msra.mxu0 %v1175
  %1627 = vmatpush.bf16.msra.mxu0 %v1171
  %1628 = vmatpush.bf16.msra.mxu0 %v1167
  %1629 = vmatpush.bf16.msra.mxu0 %v1163
  %1630 = vmatpush.bf16.msra.mxu0 %v1159
  %1631 = vmatpush.bf16.msra.mxu0 %v1155
  %1632 = vmatpush.bf16.msra.mxu0 %v1151
  %1633 = vmatmul.bf16.gmra.mxu0 %v57
  %v1634 = vpop.f32.mrf.mxu0
  %v1635 = vadd.f32 %v1622, %v1634
  %v1636 = vpop.f32.mrf.mxu0
  %1637 = vdwg.mxu0
  %1638 = vmatpush.bf16.msra.mxu0 %v1211
  %1639 = vmatpush.bf16.msra.mxu0 %v1207
  %1640 = vmatpush.bf16.msra.mxu0 %v1203
  %1641 = vmatpush.bf16.msra.mxu0 %v1199
  %1642 = vmatpush.bf16.msra.mxu0 %v1195
  %1643 = vmatpush.bf16.msra.mxu0 %v1191
  %1644 = vmatpush.bf16.msra.mxu0 %v1187
  %1645 = vmatpush.bf16.msra.mxu0 %v1183
  %1646 = vmatmul.bf16.gmra.mxu0 %v58
  %v1647 = vpop.f32.mrf.mxu0
  %v1648 = vadd.f32 %v1635, %v1647
  %v1649 = vpop.f32.mrf.mxu0
  %1650 = vdwg.mxu0
  %1651 = vmatpush.bf16.msra.mxu0 %v1243
  %1652 = vmatpush.bf16.msra.mxu0 %v1239
  %1653 = vmatpush.bf16.msra.mxu0 %v1235
  %1654 = vmatpush.bf16.msra.mxu0 %v1231
  %1655 = vmatpush.bf16.msra.mxu0 %v1227
  %1656 = vmatpush.bf16.msra.mxu0 %v1223
  %1657 = vmatpush.bf16.msra.mxu0 %v1219
  %1658 = vmatpush.bf16.msra.mxu0 %v1215
  %1659 = vmatmul.bf16.gmra.mxu0 %v59
  %v1660 = vpop.f32.mrf.mxu0
  %v1661 = vadd.f32 %v1648, %v1660
  %v1662 = vpop.f32.mrf.mxu0
  %1663 = vdwg.mxu0
  %1664 = vmatpush.bf16.msra.mxu0 %v1275
  %1665 = vmatpush.bf16.msra.mxu0 %v1271
  %1666 = vmatpush.bf16.msra.mxu0 %v1267
  %1667 = vmatpush.bf16.msra.mxu0 %v1263
  %1668 = vmatpush.bf16.msra.mxu0 %v1259
  %1669 = vmatpush.bf16.msra.mxu0 %v1255
  %1670 = vmatpush.bf16.msra.mxu0 %v1251
  %1671 = vmatpush.bf16.msra.mxu0 %v1247
  %1672 = vmatmul.bf16.gmra.mxu0 %v60
  %v1673 = vpop.f32.mrf.mxu0
  %v1674 = vadd.f32 %v1661, %v1673
  %v1675 = vpop.f32.mrf.mxu0
  %1676 = vdwg.mxu0
  %1677 = vmatpush.bf16.msra.mxu0 %v1307
  %1678 = vmatpush.bf16.msra.mxu0 %v1303
  %1679 = vmatpush.bf16.msra.mxu0 %v1299
  %1680 = vmatpush.bf16.msra.mxu0 %v1295
  %1681 = vmatpush.bf16.msra.mxu0 %v1291
  %1682 = vmatpush.bf16.msra.mxu0 %v1287
  %1683 = vmatpush.bf16.msra.mxu0 %v1283
  %1684 = vmatpush.bf16.msra.mxu0 %v1279
  %1685 = vmatmul.bf16.gmra.mxu0 %v61
  %v1686 = vpop.f32.mrf.mxu0
  %v1687 = vadd.f32 %v1674, %v1686
  %v1688 = vpop.f32.mrf.mxu0
  %1689 = vdwg.mxu0
  %1690 = vmatpush.bf16.msra.mxu0 %v1339
  %1691 = vmatpush.bf16.msra.mxu0 %v1335
  %1692 = vmatpush.bf16.msra.mxu0 %v1331
  %1693 = vmatpush.bf16.msra.mxu0 %v1327
  %1694 = vmatpush.bf16.msra.mxu0 %v1323
  %1695 = vmatpush.bf16.msra.mxu0 %v1319
  %1696 = vmatpush.bf16.msra.mxu0 %v1315
  %1697 = vmatpush.bf16.msra.mxu0 %v1311
  %1698 = vmatmul.bf16.gmra.mxu0 %v62
  %v1699 = vpop.f32.mrf.mxu0
  %v1700 = vadd.f32 %v1687, %v1699
  %v1701 = vpop.f32.mrf.mxu0
  %1702 = vdwg.mxu0
  %1703 = vmatpush.bf16.msra.mxu0 %v1116
  %1704 = vmatpush.bf16.msra.mxu0 %v1112
  %1705 = vmatpush.bf16.msra.mxu0 %v1108
  %1706 = vmatpush.bf16.msra.mxu0 %v1104
  %1707 = vmatpush.bf16.msra.mxu0 %v1100
  %1708 = vmatpush.bf16.msra.mxu0 %v1096
  %1709 = vmatpush.bf16.msra.mxu0 %v1092
  %1710 = vmatpush.bf16.msra.mxu0 %v1088
  %1711 = vmatmul.bf16.gmra.mxu0 %v55
  %v1712 = vpop.f32.mrf.mxu0
  %v1713 = vadd.f32 0.0, %v1712
  %v1714 = vpop.f32.mrf.mxu0
  %1715 = vdwg.mxu0
  %1716 = vmatpush.bf16.msra.mxu0 %v1148
  %1717 = vmatpush.bf16.msra.mxu0 %v1144
  %1718 = vmatpush.bf16.msra.mxu0 %v1140
  %1719 = vmatpush.bf16.msra.mxu0 %v1136
  %1720 = vmatpush.bf16.msra.mxu0 %v1132
  %1721 = vmatpush.bf16.msra.mxu0 %v1128
  %1722 = vmatpush.bf16.msra.mxu0 %v1124
  %1723 = vmatpush.bf16.msra.mxu0 %v1120
  %1724 = vmatmul.bf16.gmra.mxu0 %v56
  %v1725 = vpop.f32.mrf.mxu0
  %v1726 = vadd.f32 %v1713, %v1725
  %v1727 = vpop.f32.mrf.mxu0
  %1728 = vdwg.mxu0
  %1729 = vmatpush.bf16.msra.mxu0 %v1180
  %1730 = vmatpush.bf16.msra.mxu0 %v1176
  %1731 = vmatpush.bf16.msra.mxu0 %v1172
  %1732 = vmatpush.bf16.msra.mxu0 %v1168
  %1733 = vmatpush.bf16.msra.mxu0 %v1164
  %1734 = vmatpush.bf16.msra.mxu0 %v1160
  %1735 = vmatpush.bf16.msra.mxu0 %v1156
  %1736 = vmatpush.bf16.msra.mxu0 %v1152
  %1737 = vmatmul.bf16.gmra.mxu0 %v57
  %v1738 = vpop.f32.mrf.mxu0
  %v1739 = vadd.f32 %v1726, %v1738
  %v1740 = vpop.f32.mrf.mxu0
  %1741 = vdwg.mxu0
  %1742 = vmatpush.bf16.msra.mxu0 %v1212
  %1743 = vmatpush.bf16.msra.mxu0 %v1208
  %1744 = vmatpush.bf16.msra.mxu0 %v1204
  %1745 = vmatpush.bf16.msra.mxu0 %v1200
  %1746 = vmatpush.bf16.msra.mxu0 %v1196
  %1747 = vmatpush.bf16.msra.mxu0 %v1192
  %1748 = vmatpush.bf16.msra.mxu0 %v1188
  %1749 = vmatpush.bf16.msra.mxu0 %v1184
  %1750 = vmatmul.bf16.gmra.mxu0 %v58
  %v1751 = vpop.f32.mrf.mxu0
  %v1752 = vadd.f32 %v1739, %v1751
  %v1753 = vpop.f32.mrf.mxu0
  %1754 = vdwg.mxu0
  %1755 = vmatpush.bf16.msra.mxu0 %v1244
  %1756 = vmatpush.bf16.msra.mxu0 %v1240
  %1757 = vmatpush.bf16.msra.mxu0 %v1236
  %1758 = vmatpush.bf16.msra.mxu0 %v1232
  %1759 = vmatpush.bf16.msra.mxu0 %v1228
  %1760 = vmatpush.bf16.msra.mxu0 %v1224
  %1761 = vmatpush.bf16.msra.mxu0 %v1220
  %1762 = vmatpush.bf16.msra.mxu0 %v1216
  %1763 = vmatmul.bf16.gmra.mxu0 %v59
  %v1764 = vpop.f32.mrf.mxu0
  %v1765 = vadd.f32 %v1752, %v1764
  %v1766 = vpop.f32.mrf.mxu0
  %1767 = vdwg.mxu0
  %1768 = vmatpush.bf16.msra.mxu0 %v1276
  %1769 = vmatpush.bf16.msra.mxu0 %v1272
  %1770 = vmatpush.bf16.msra.mxu0 %v1268
  %1771 = vmatpush.bf16.msra.mxu0 %v1264
  %1772 = vmatpush.bf16.msra.mxu0 %v1260
  %1773 = vmatpush.bf16.msra.mxu0 %v1256
  %1774 = vmatpush.bf16.msra.mxu0 %v1252
  %1775 = vmatpush.bf16.msra.mxu0 %v1248
  %1776 = vmatmul.bf16.gmra.mxu0 %v60
  %v1777 = vpop.f32.mrf.mxu0
  %v1778 = vadd.f32 %v1765, %v1777
  %v1779 = vpop.f32.mrf.mxu0
  %1780 = vdwg.mxu0
  %1781 = vmatpush.bf16.msra.mxu0 %v1308
  %1782 = vmatpush.bf16.msra.mxu0 %v1304
  %1783 = vmatpush.bf16.msra.mxu0 %v1300
  %1784 = vmatpush.bf16.msra.mxu0 %v1296
  %1785 = vmatpush.bf16.msra.mxu0 %v1292
  %1786 = vmatpush.bf16.msra.mxu0 %v1288
  %1787 = vmatpush.bf16.msra.mxu0 %v1284
  %1788 = vmatpush.bf16.msra.mxu0 %v1280
  %1789 = vmatmul.bf16.gmra.mxu0 %v61
  %v1790 = vpop.f32.mrf.mxu0
  %v1791 = vadd.f32 %v1778, %v1790
  %v1792 = vpop.f32.mrf.mxu0
  %1793 = vdwg.mxu0
  %1794 = vmatpush.bf16.msra.mxu0 %v1340
  %1795 = vmatpush.bf16.msra.mxu0 %v1336
  %1796 = vmatpush.bf16.msra.mxu0 %v1332
  %1797 = vmatpush.bf16.msra.mxu0 %v1328
  %1798 = vmatpush.bf16.msra.mxu0 %v1324
  %1799 = vmatpush.bf16.msra.mxu0 %v1320
  %1800 = vmatpush.bf16.msra.mxu0 %v1316
  %1801 = vmatpush.bf16.msra.mxu0 %v1312
  %1802 = vmatmul.bf16.gmra.mxu0 %v62
  %v1803 = vpop.f32.mrf.mxu0
  %v1804 = vadd.f32 %v1791, %v1803
  %v1805 = vpop.f32.mrf.mxu0
  %1806 = vdwg.mxu0
  %1807 = vmatpush.bf16.msra.mxu0 %v1117
  %1808 = vmatpush.bf16.msra.mxu0 %v1113
  %1809 = vmatpush.bf16.msra.mxu0 %v1109
  %1810 = vmatpush.bf16.msra.mxu0 %v1105
  %1811 = vmatpush.bf16.msra.mxu0 %v1101
  %1812 = vmatpush.bf16.msra.mxu0 %v1097
  %1813 = vmatpush.bf16.msra.mxu0 %v1093
  %1814 = vmatpush.bf16.msra.mxu0 %v1089
  %1815 = vmatmul.bf16.gmra.mxu0 %v55
  %v1816 = vpop.f32.mrf.mxu0
  %v1817 = vadd.f32 0.0, %v1816
  %v1818 = vpop.f32.mrf.mxu0
  %1819 = vdwg.mxu0
  %1820 = vmatpush.bf16.msra.mxu0 %v1149
  %1821 = vmatpush.bf16.msra.mxu0 %v1145
  %1822 = vmatpush.bf16.msra.mxu0 %v1141
  %1823 = vmatpush.bf16.msra.mxu0 %v1137
  %1824 = vmatpush.bf16.msra.mxu0 %v1133
  %1825 = vmatpush.bf16.msra.mxu0 %v1129
  %1826 = vmatpush.bf16.msra.mxu0 %v1125
  %1827 = vmatpush.bf16.msra.mxu0 %v1121
  %1828 = vmatmul.bf16.gmra.mxu0 %v56
  %v1829 = vpop.f32.mrf.mxu0
  %v1830 = vadd.f32 %v1817, %v1829
  %v1831 = vpop.f32.mrf.mxu0
  %1832 = vdwg.mxu0
  %1833 = vmatpush.bf16.msra.mxu0 %v1181
  %1834 = vmatpush.bf16.msra.mxu0 %v1177
  %1835 = vmatpush.bf16.msra.mxu0 %v1173
  %1836 = vmatpush.bf16.msra.mxu0 %v1169
  %1837 = vmatpush.bf16.msra.mxu0 %v1165
  %1838 = vmatpush.bf16.msra.mxu0 %v1161
  %1839 = vmatpush.bf16.msra.mxu0 %v1157
  %1840 = vmatpush.bf16.msra.mxu0 %v1153
  %1841 = vmatmul.bf16.gmra.mxu0 %v57
  %v1842 = vpop.f32.mrf.mxu0
  %v1843 = vadd.f32 %v1830, %v1842
  %v1844 = vpop.f32.mrf.mxu0
  %1845 = vdwg.mxu0
  %1846 = vmatpush.bf16.msra.mxu0 %v1213
  %1847 = vmatpush.bf16.msra.mxu0 %v1209
  %1848 = vmatpush.bf16.msra.mxu0 %v1205
  %1849 = vmatpush.bf16.msra.mxu0 %v1201
  %1850 = vmatpush.bf16.msra.mxu0 %v1197
  %1851 = vmatpush.bf16.msra.mxu0 %v1193
  %1852 = vmatpush.bf16.msra.mxu0 %v1189
  %1853 = vmatpush.bf16.msra.mxu0 %v1185
  %1854 = vmatmul.bf16.gmra.mxu0 %v58
  %v1855 = vpop.f32.mrf.mxu0
  %v1856 = vadd.f32 %v1843, %v1855
  %v1857 = vpop.f32.mrf.mxu0
  %1858 = vdwg.mxu0
  %1859 = vmatpush.bf16.msra.mxu0 %v1245
  %1860 = vmatpush.bf16.msra.mxu0 %v1241
  %1861 = vmatpush.bf16.msra.mxu0 %v1237
  %1862 = vmatpush.bf16.msra.mxu0 %v1233
  %1863 = vmatpush.bf16.msra.mxu0 %v1229
  %1864 = vmatpush.bf16.msra.mxu0 %v1225
  %1865 = vmatpush.bf16.msra.mxu0 %v1221
  %1866 = vmatpush.bf16.msra.mxu0 %v1217
  %1867 = vmatmul.bf16.gmra.mxu0 %v59
  %v1868 = vpop.f32.mrf.mxu0
  %v1869 = vadd.f32 %v1856, %v1868
  %v1870 = vpop.f32.mrf.mxu0
  %1871 = vdwg.mxu0
  %1872 = vmatpush.bf16.msra.mxu0 %v1277
  %1873 = vmatpush.bf16.msra.mxu0 %v1273
  %1874 = vmatpush.bf16.msra.mxu0 %v1269
  %1875 = vmatpush.bf16.msra.mxu0 %v1265
  %1876 = vmatpush.bf16.msra.mxu0 %v1261
  %1877 = vmatpush.bf16.msra.mxu0 %v1257
  %1878 = vmatpush.bf16.msra.mxu0 %v1253
  %1879 = vmatpush.bf16.msra.mxu0 %v1249
  %1880 = vmatmul.bf16.gmra.mxu0 %v60
  %v1881 = vpop.f32.mrf.mxu0
  %v1882 = vadd.f32 %v1869, %v1881
  %v1883 = vpop.f32.mrf.mxu0
  %1884 = vdwg.mxu0
  %1885 = vmatpush.bf16.msra.mxu0 %v1309
  %1886 = vmatpush.bf16.msra.mxu0 %v1305
  %1887 = vmatpush.bf16.msra.mxu0 %v1301
  %1888 = vmatpush.bf16.msra.mxu0 %v1297
  %1889 = vmatpush.bf16.msra.mxu0 %v1293
  %1890 = vmatpush.bf16.msra.mxu0 %v1289
  %1891 = vmatpush.bf16.msra.mxu0 %v1285
  %1892 = vmatpush.bf16.msra.mxu0 %v1281
  %1893 = vmatmul.bf16.gmra.mxu0 %v61
  %v1894 = vpop.f32.mrf.mxu0
  %v1895 = vadd.f32 %v1882, %v1894
  %v1896 = vpop.f32.mrf.mxu0
  %1897 = vdwg.mxu0
  %1898 = vmatpush.bf16.msra.mxu0 %v1341
  %1899 = vmatpush.bf16.msra.mxu0 %v1337
  %1900 = vmatpush.bf16.msra.mxu0 %v1333
  %1901 = vmatpush.bf16.msra.mxu0 %v1329
  %1902 = vmatpush.bf16.msra.mxu0 %v1325
  %1903 = vmatpush.bf16.msra.mxu0 %v1321
  %1904 = vmatpush.bf16.msra.mxu0 %v1317
  %1905 = vmatpush.bf16.msra.mxu0 %v1313
  %1906 = vmatmul.bf16.gmra.mxu0 %v62
  %v1907 = vpop.f32.mrf.mxu0
  %v1908 = vadd.f32 %v1895, %v1907
  %v1909 = vpop.f32.mrf.mxu0
  %1910 = vdwg.mxu0
  %1911 = vmatpush.bf16.msra.mxu0 %v1118
  %1912 = vmatpush.bf16.msra.mxu0 %v1114
  %1913 = vmatpush.bf16.msra.mxu0 %v1110
  %1914 = vmatpush.bf16.msra.mxu0 %v1106
  %1915 = vmatpush.bf16.msra.mxu0 %v1102
  %1916 = vmatpush.bf16.msra.mxu0 %v1098
  %1917 = vmatpush.bf16.msra.mxu0 %v1094
  %1918 = vmatpush.bf16.msra.mxu0 %v1090
  %1919 = vmatmul.bf16.gmra.mxu0 %v55
  %v1920 = vpop.f32.mrf.mxu0
  %v1921 = vadd.f32 0.0, %v1920
  %v1922 = vpop.f32.mrf.mxu0
  %1923 = vdwg.mxu0
  %1924 = vmatpush.bf16.msra.mxu0 %v1150
  %1925 = vmatpush.bf16.msra.mxu0 %v1146
  %1926 = vmatpush.bf16.msra.mxu0 %v1142
  %1927 = vmatpush.bf16.msra.mxu0 %v1138
  %1928 = vmatpush.bf16.msra.mxu0 %v1134
  %1929 = vmatpush.bf16.msra.mxu0 %v1130
  %1930 = vmatpush.bf16.msra.mxu0 %v1126
  %1931 = vmatpush.bf16.msra.mxu0 %v1122
  %1932 = vmatmul.bf16.gmra.mxu0 %v56
  %v1933 = vpop.f32.mrf.mxu0
  %v1934 = vadd.f32 %v1921, %v1933
  %v1935 = vpop.f32.mrf.mxu0
  %1936 = vdwg.mxu0
  %1937 = vmatpush.bf16.msra.mxu0 %v1182
  %1938 = vmatpush.bf16.msra.mxu0 %v1178
  %1939 = vmatpush.bf16.msra.mxu0 %v1174
  %1940 = vmatpush.bf16.msra.mxu0 %v1170
  %1941 = vmatpush.bf16.msra.mxu0 %v1166
  %1942 = vmatpush.bf16.msra.mxu0 %v1162
  %1943 = vmatpush.bf16.msra.mxu0 %v1158
  %1944 = vmatpush.bf16.msra.mxu0 %v1154
  %1945 = vmatmul.bf16.gmra.mxu0 %v57
  %v1946 = vpop.f32.mrf.mxu0
  %v1947 = vadd.f32 %v1934, %v1946
  %v1948 = vpop.f32.mrf.mxu0
  %1949 = vdwg.mxu0
  %1950 = vmatpush.bf16.msra.mxu0 %v1214
  %1951 = vmatpush.bf16.msra.mxu0 %v1210
  %1952 = vmatpush.bf16.msra.mxu0 %v1206
  %1953 = vmatpush.bf16.msra.mxu0 %v1202
  %1954 = vmatpush.bf16.msra.mxu0 %v1198
  %1955 = vmatpush.bf16.msra.mxu0 %v1194
  %1956 = vmatpush.bf16.msra.mxu0 %v1190
  %1957 = vmatpush.bf16.msra.mxu0 %v1186
  %1958 = vmatmul.bf16.gmra.mxu0 %v58
  %v1959 = vpop.f32.mrf.mxu0
  %v1960 = vadd.f32 %v1947, %v1959
  %v1961 = vpop.f32.mrf.mxu0
  %1962 = vdwg.mxu0
  %1963 = vmatpush.bf16.msra.mxu0 %v1246
  %1964 = vmatpush.bf16.msra.mxu0 %v1242
  %1965 = vmatpush.bf16.msra.mxu0 %v1238
  %1966 = vmatpush.bf16.msra.mxu0 %v1234
  %1967 = vmatpush.bf16.msra.mxu0 %v1230
  %1968 = vmatpush.bf16.msra.mxu0 %v1226
  %1969 = vmatpush.bf16.msra.mxu0 %v1222
  %1970 = vmatpush.bf16.msra.mxu0 %v1218
  %1971 = vmatmul.bf16.gmra.mxu0 %v59
  %v1972 = vpop.f32.mrf.mxu0
  %v1973 = vadd.f32 %v1960, %v1972
  %v1974 = vpop.f32.mrf.mxu0
  %1975 = vdwg.mxu0
  %1976 = vmatpush.bf16.msra.mxu0 %v1278
  %1977 = vmatpush.bf16.msra.mxu0 %v1274
  %1978 = vmatpush.bf16.msra.mxu0 %v1270
  %1979 = vmatpush.bf16.msra.mxu0 %v1266
  %1980 = vmatpush.bf16.msra.mxu0 %v1262
  %1981 = vmatpush.bf16.msra.mxu0 %v1258
  %1982 = vmatpush.bf16.msra.mxu0 %v1254
  %1983 = vmatpush.bf16.msra.mxu0 %v1250
  %1984 = vmatmul.bf16.gmra.mxu0 %v60
  %v1985 = vpop.f32.mrf.mxu0
  %v1986 = vadd.f32 %v1973, %v1985
  %v1987 = vpop.f32.mrf.mxu0
  %1988 = vdwg.mxu0
  %1989 = vmatpush.bf16.msra.mxu0 %v1310
  %1990 = vmatpush.bf16.msra.mxu0 %v1306
  %1991 = vmatpush.bf16.msra.mxu0 %v1302
  %1992 = vmatpush.bf16.msra.mxu0 %v1298
  %1993 = vmatpush.bf16.msra.mxu0 %v1294
  %1994 = vmatpush.bf16.msra.mxu0 %v1290
  %1995 = vmatpush.bf16.msra.mxu0 %v1286
  %1996 = vmatpush.bf16.msra.mxu0 %v1282
  %1997 = vmatmul.bf16.gmra.mxu0 %v61
  %v1998 = vpop.f32.mrf.mxu0
  %v1999 = vadd.f32 %v1986, %v1998
  %v2000 = vpop.f32.mrf.mxu0
  %2001 = vdwg.mxu0
  %2002 = vmatpush.bf16.msra.mxu0 %v1342
  %2003 = vmatpush.bf16.msra.mxu0 %v1338
  %2004 = vmatpush.bf16.msra.mxu0 %v1334
  %2005 = vmatpush.bf16.msra.mxu0 %v1330
  %2006 = vmatpush.bf16.msra.mxu0 %v1326
  %2007 = vmatpush.bf16.msra.mxu0 %v1322
  %2008 = vmatpush.bf16.msra.mxu0 %v1318
  %2009 = vmatpush.bf16.msra.mxu0 %v1314
  %2010 = vmatmul.bf16.gmra.mxu0 %v62
  %v2011 = vpop.f32.mrf.mxu0
  %v2012 = vadd.f32 %v1999, %v2011
  %v2013 = vpop.f32.mrf.mxu0
  %2014 = vdwg.mxu0
  %v2015 = vld [vmem:[%s2] sm:$0xf]
  %v2016 = vld [vmem:[%s3] sm:$0xf]
  %vm2017 = vcmask 1041408
  %v2018 = vsel %vm2017, %v1700, 0.0
  %v2019 = vrot.slane %v2018, 4
  %v2020 = vadd.f32 %v2018, %v2019
  %v2021 = vrot.slane %v2020, 2
  %v2022 = vadd.f32 %v2020, %v2021
  %v2023 = vrot.slane %v2022, 1
  %v2024 = vadd.f32 %v2022, %v2023
  %v2025 = vsel %vm2017, %v1804, 0.0
  %v2026 = vrot.slane %v2025, 4
  %v2027 = vadd.f32 %v2025, %v2026
  %v2028 = vrot.slane %v2027, 2
  %v2029 = vadd.f32 %v2027, %v2028
  %v2030 = vrot.slane %v2029, 1
  %v2031 = vadd.f32 %v2029, %v2030
  %v2032 = vsel %vm2017, %v1908, 0.0
  %v2033 = vrot.slane %v2032, 4
  %v2034 = vadd.f32 %v2032, %v2033
  %v2035 = vrot.slane %v2034, 2
  %v2036 = vadd.f32 %v2034, %v2035
  %v2037 = vrot.slane %v2036, 1
  %v2038 = vadd.f32 %v2036, %v2037
  %v2039 = vsel %vm2017, %v2012, 0.0
  %v2040 = vrot.slane %v2039, 4
  %v2041 = vadd.f32 %v2039, %v2040
  %v2042 = vrot.slane %v2041, 2
  %v2043 = vadd.f32 %v2041, %v2042
  %v2044 = vrot.slane %v2043, 1
  %v2045 = vadd.f32 %v2043, %v2044
  %v2046 = vrcp.pop 2.0
  %v2047 = vmul.f32 2.0, %v2046
  %v2048 = vsub.f32 1.0, %v2047
  %v2049 = vmul.f32 %v2046, %v2048
  %v2050 = vadd.f32 %v2046, %v2049
  %vm2051 = vweird.f32 %v2046
  %v2052 = vsel %vm2051, %v2046, %v2050
  %v2053 = vmul.f32 %v2024, %v2052
  %v2054 = vmul.f32 %v2031, %v2052
  %v2055 = vmul.f32 %v2038, %v2052
  %v2056 = vmul.f32 %v2045, %v2052
  %v2057 = vmul.f32 %v1700, %v1700
  %v2058 = vmul.f32 %v1804, %v1804
  %v2059 = vmul.f32 %v1908, %v1908
  %v2060 = vmul.f32 %v2012, %v2012
  %v2061 = vsel %vm2017, %v2057, 0.0
  %v2062 = vrot.slane %v2061, 4
  %v2063 = vadd.f32 %v2061, %v2062
  %v2064 = vrot.slane %v2063, 2
  %v2065 = vadd.f32 %v2063, %v2064
  %v2066 = vrot.slane %v2065, 1
  %v2067 = vadd.f32 %v2065, %v2066
  %v2068 = vsel %vm2017, %v2058, 0.0
  %v2069 = vrot.slane %v2068, 4
  %v2070 = vadd.f32 %v2068, %v2069
  %v2071 = vrot.slane %v2070, 2
  %v2072 = vadd.f32 %v2070, %v2071
  %v2073 = vrot.slane %v2072, 1
  %v2074 = vadd.f32 %v2072, %v2073
  %v2075 = vsel %vm2017, %v2059, 0.0
  %v2076 = vrot.slane %v2075, 4
  %v2077 = vadd.f32 %v2075, %v2076
  %v2078 = vrot.slane %v2077, 2
  %v2079 = vadd.f32 %v2077, %v2078
  %v2080 = vrot.slane %v2079, 1
  %v2081 = vadd.f32 %v2079, %v2080
  %v2082 = vsel %vm2017, %v2060, 0.0
  %v2083 = vrot.slane %v2082, 4
  %v2084 = vadd.f32 %v2082, %v2083
  %v2085 = vrot.slane %v2084, 2
  %v2086 = vadd.f32 %v2084, %v2085
  %v2087 = vrot.slane %v2086, 1
  %v2088 = vadd.f32 %v2086, %v2087
  %v2089 = vmul.f32 %v2067, %v2052
  %v2090 = vmul.f32 %v2074, %v2052
  %v2091 = vmul.f32 %v2081, %v2052
  %v2092 = vmul.f32 %v2088, %v2052
  %v2093 = vmul.f32 %v2053, %v2053
  %v2094 = vmul.f32 %v2054, %v2054
  %v2095 = vmul.f32 %v2055, %v2055
  %v2096 = vmul.f32 %v2056, %v2056
  %v2097 = vsub.f32 %v2089, %v2093
  %v2098 = vsub.f32 %v2090, %v2094
  %v2099 = vsub.f32 %v2091, %v2095
  %v2100 = vsub.f32 %v2092, %v2096
  %v2101 = vmax.f32 %v2097, 0.0
  %v2102 = vmax.f32 %v2098, 0.0
  %v2103 = vmax.f32 %v2099, 0.0
  %v2104 = vmax.f32 %v2100, 0.0
  %v2105 = vsub.f32 %v1700, %v2053
  %v2106 = vsub.f32 %v1804, %v2054
  %v2107 = vsub.f32 %v1908, %v2055
  %v2108 = vsub.f32 %v2012, %v2056
  %v2109 = vadd.f32 %v2101, 1e-05
  %v2110 = vadd.f32 %v2102, 1e-05
  %v2111 = vadd.f32 %v2103, 1e-05
  %v2112 = vadd.f32 %v2104, 1e-05
  %v2113 = vrsqrt.pop %v2109
  %v2114 = vmul.f32 %v2113, %v2109
  %v2115 = vmul.f32 %v2114, %v2113
  %v2116 = vmul.f32 0.5, %v2115
  %v2117 = vsub.f32 1.5, %v2116
  %v2118 = vmul.f32 %v2113, %v2117
  %vm2119 = vweird.f32 %v2109
  %vm2120 = vweird.f32 %v2113
  %vm2121 = vmor %vm2119, %vm2120
  %v2122 = vsel %vm2121, %v2113, %v2118
  %v2123 = vrsqrt.pop %v2110
  %v2124 = vmul.f32 %v2123, %v2110
  %v2125 = vmul.f32 %v2124, %v2123
  %v2126 = vmul.f32 0.5, %v2125
  %v2127 = vsub.f32 1.5, %v2126
  %v2128 = vmul.f32 %v2123, %v2127
  %vm2129 = vweird.f32 %v2110
  %vm2130 = vweird.f32 %v2123
  %vm2131 = vmor %vm2129, %vm2130
  %v2132 = vsel %vm2131, %v2123, %v2128
  %v2133 = vrsqrt.pop %v2111
  %v2134 = vmul.f32 %v2133, %v2111
  %v2135 = vmul.f32 %v2134, %v2133
  %v2136 = vmul.f32 0.5, %v2135
  %v2137 = vsub.f32 1.5, %v2136
  %v2138 = vmul.f32 %v2133, %v2137
  %vm2139 = vweird.f32 %v2111
  %vm2140 = vweird.f32 %v2133
  %vm2141 = vmor %vm2139, %vm2140
  %v2142 = vsel %vm2141, %v2133, %v2138
  %v2143 = vrsqrt.pop %v2112
  %v2144 = vmul.f32 %v2143, %v2112
  %v2145 = vmul.f32 %v2144, %v2143
  %v2146 = vmul.f32 0.5, %v2145
  %v2147 = vsub.f32 1.5, %v2146
  %v2148 = vmul.f32 %v2143, %v2147
  %vm2149 = vweird.f32 %v2112
  %vm2150 = vweird.f32 %v2143
  %vm2151 = vmor %vm2149, %vm2150
  %v2152 = vsel %vm2151, %v2143, %v2148
  %v2153 = vmul.f32 %v2105, %v2122
  %v2154 = vmul.f32 %v2106, %v2132
  %v2155 = vmul.f32 %v2107, %v2142
  %v2156 = vmul.f32 %v2108, %v2152
  %v2158 = vperm.slane %v2015, 0
  %v2159 = vperm.slane %v2015, 1
  %v2160 = vperm.slane %v2015, 2
  %v2161 = vperm.slane %v2015, 3
  %v2166 = vmul.f32 %v2153, %v2158
  %v2167 = vmul.f32 %v2154, %v2159
  %v2168 = vmul.f32 %v2155, %v2160
  %v2169 = vmul.f32 %v2156, %v2161
  %v2171 = vperm.slane %v2016, 0
  %v2172 = vperm.slane %v2016, 1
  %v2173 = vperm.slane %v2016, 2
  %v2174 = vperm.slane %v2016, 3
  %v2179 = vadd.f32 %v2166, %v2171
  %v2180 = vadd.f32 %v2167, %v2172
  %v2181 = vadd.f32 %v2168, %v2173
  %v2182 = vadd.f32 %v2169, %v2174
  %v2183 = vmax.f32 %v2179, 0.0
  %v2184 = vmax.f32 %v2180, 0.0
  %v2185 = vmax.f32 %v2181, 0.0
  %v2186 = vmax.f32 %v2182, 0.0
  %v2187 = vpack.c.bf16 %v2183, %v2183
  %v2188 = vpack.c.bf16 %v2184, %v2184
  %v2189 = vpack.c.bf16 %v2185, %v2185
  %v2190 = vpack.c.bf16 %v2186, %v2186
  %v2191 = vld [vmem:[%s4] sm:$0xff]
  %v2192 = vld [vmem:[%s4 + $0x8] sm:$0xff]
  %v2193 = vld [vmem:[%s4 + $0x10] sm:$0xff]
  %v2194 = vld [vmem:[%s4 + $0x18] sm:$0xff]
  %v2195 = vld [vmem:[%s4 + $0x20] sm:$0xff]
  %v2196 = vld [vmem:[%s4 + $0x28] sm:$0xff]
  %v2197 = vld [vmem:[%s4 + $0x30] sm:$0xff]
  %v2198 = vld [vmem:[%s4 + $0x38] sm:$0xff]
  %v2199 = vld [vmem:[%s4 + $0x40] sm:$0xff]
  %v2200 = vld [vmem:[%s4 + $0x48] sm:$0xff]
  %v2201 = vld [vmem:[%s4 + $0x50] sm:$0xff]
  %v2202 = vld [vmem:[%s4 + $0x58] sm:$0xff]
  %v2203 = vld [vmem:[%s4 + $0x60] sm:$0xff]
  %v2204 = vld [vmem:[%s4 + $0x68] sm:$0xff]
  %v2205 = vld [vmem:[%s4 + $0x70] sm:$0xff]
  %v2206 = vld [vmem:[%s4 + $0x78] sm:$0xff]
  %v2207 = vld [vmem:[%s4 + $0x80] sm:$0xff]
  %v2208 = vld [vmem:[%s4 + $0x88] sm:$0xff]
  %v2209 = vld [vmem:[%s4 + $0x90] sm:$0xff]
  %v2210 = vld [vmem:[%s4 + $0x98] sm:$0xff]
  %v2211 = vld [vmem:[%s4 + $0xa0] sm:$0xff]
  %v2212 = vld [vmem:[%s4 + $0xa8] sm:$0xff]
  %v2213 = vld [vmem:[%s4 + $0xb0] sm:$0xff]
  %v2214 = vld [vmem:[%s4 + $0xb8] sm:$0xff]
  %v2215 = vld [vmem:[%s4 + $0xc0] sm:$0xff]
  %v2216 = vld [vmem:[%s4 + $0xc8] sm:$0xff]
  %v2217 = vld [vmem:[%s4 + $0xd0] sm:$0xff]
  %v2218 = vld [vmem:[%s4 + $0xd8] sm:$0xff]
  %v2219 = vld [vmem:[%s4 + $0xe0] sm:$0xff]
  %v2220 = vld [vmem:[%s4 + $0xe8] sm:$0xff]
  %v2221 = vld [vmem:[%s4 + $0xf0] sm:$0xff]
  %v2222 = vld [vmem:[%s4 + $0xf8] sm:$0xff]
  %v2223 = vld [vmem:[%s4 + $0x100] sm:$0xff]
  %v2224 = vld [vmem:[%s4 + $0x108] sm:$0xff]
  %v2225 = vld [vmem:[%s4 + $0x110] sm:$0xff]
  %v2226 = vld [vmem:[%s4 + $0x118] sm:$0xff]
  %v2227 = vld [vmem:[%s4 + $0x120] sm:$0xff]
  %v2228 = vld [vmem:[%s4 + $0x128] sm:$0xff]
  %v2229 = vld [vmem:[%s4 + $0x130] sm:$0xff]
  %v2230 = vld [vmem:[%s4 + $0x138] sm:$0xff]
  %v2231 = vld [vmem:[%s4 + $0x140] sm:$0xff]
  %v2232 = vld [vmem:[%s4 + $0x148] sm:$0xff]
  %v2233 = vld [vmem:[%s4 + $0x150] sm:$0xff]
  %v2234 = vld [vmem:[%s4 + $0x158] sm:$0xff]
  %v2235 = vld [vmem:[%s4 + $0x160] sm:$0xff]
  %v2236 = vld [vmem:[%s4 + $0x168] sm:$0xff]
  %v2237 = vld [vmem:[%s4 + $0x170] sm:$0xff]
  %v2238 = vld [vmem:[%s4 + $0x178] sm:$0xff]
  %v2239 = vld [vmem:[%s4 + $0x180] sm:$0xff]
  %v2240 = vld [vmem:[%s4 + $0x188] sm:$0xff]
  %v2241 = vld [vmem:[%s4 + $0x190] sm:$0xff]
  %v2242 = vld [vmem:[%s4 + $0x198] sm:$0xff]
  %v2243 = vld [vmem:[%s4 + $0x1a0] sm:$0xff]
  %v2244 = vld [vmem:[%s4 + $0x1a8] sm:$0xff]
  %v2245 = vld [vmem:[%s4 + $0x1b0] sm:$0xff]
  %v2246 = vld [vmem:[%s4 + $0x1b8] sm:$0xff]
  %v2247 = vld [vmem:[%s4 + $0x1c0] sm:$0xff]
  %v2248 = vld [vmem:[%s4 + $0x1c8] sm:$0xff]
  %v2249 = vld [vmem:[%s4 + $0x1d0] sm:$0xff]
  %v2250 = vld [vmem:[%s4 + $0x1d8] sm:$0xff]
  %v2251 = vld [vmem:[%s4 + $0x1e0] sm:$0xff]
  %v2252 = vld [vmem:[%s4 + $0x1e8] sm:$0xff]
  %v2253 = vld [vmem:[%s4 + $0x1f0] sm:$0xff]
  %v2254 = vld [vmem:[%s4 + $0x1f8] sm:$0xff]
  %v2319 = vunpack.c.l.b16 %v2191
  %v2320 = vunpack.c.h.b16 %v2191
  %v2321 = vunpack.c.l.b16 %v2192
  %v2322 = vunpack.c.h.b16 %v2192
  %v2323 = vunpack.c.l.b16 %v2193
  %v2324 = vunpack.c.h.b16 %v2193
  %v2325 = vunpack.c.l.b16 %v2194
  %v2326 = vunpack.c.h.b16 %v2194
  %v2327 = vunpack.c.l.b16 %v2195
  %v2328 = vunpack.c.h.b16 %v2195
  %v2329 = vunpack.c.l.b16 %v2196
  %v2330 = vunpack.c.h.b16 %v2196
  %v2331 = vunpack.c.l.b16 %v2197
  %v2332 = vunpack.c.h.b16 %v2197
  %v2333 = vunpack.c.l.b16 %v2198
  %v2334 = vunpack.c.h.b16 %v2198
  %v2335 = vunpack.c.l.b16 %v2199
  %v2336 = vunpack.c.h.b16 %v2199
  %v2337 = vunpack.c.l.b16 %v2200
  %v2338 = vunpack.c.h.b16 %v2200
  %v2339 = vunpack.c.l.b16 %v2201
  %v2340 = vunpack.c.h.b16 %v2201
  %v2341 = vunpack.c.l.b16 %v2202
  %v2342 = vunpack.c.h.b16 %v2202
  %v2343 = vunpack.c.l.b16 %v2203
  %v2344 = vunpack.c.h.b16 %v2203
  %v2345 = vunpack.c.l.b16 %v2204
  %v2346 = vunpack.c.h.b16 %v2204
  %v2347 = vunpack.c.l.b16 %v2205
  %v2348 = vunpack.c.h.b16 %v2205
  %v2349 = vunpack.c.l.b16 %v2206
  %v2350 = vunpack.c.h.b16 %v2206
  %v2351 = vunpack.c.l.b16 %v2207
  %v2352 = vunpack.c.h.b16 %v2207
  %v2353 = vunpack.c.l.b16 %v2208
  %v2354 = vunpack.c.h.b16 %v2208
  %v2355 = vunpack.c.l.b16 %v2209
  %v2356 = vunpack.c.h.b16 %v2209
  %v2357 = vunpack.c.l.b16 %v2210
  %v2358 = vunpack.c.h.b16 %v2210
  %v2359 = vunpack.c.l.b16 %v2211
  %v2360 = vunpack.c.h.b16 %v2211
  %v2361 = vunpack.c.l.b16 %v2212
  %v2362 = vunpack.c.h.b16 %v2212
  %v2363 = vunpack.c.l.b16 %v2213
  %v2364 = vunpack.c.h.b16 %v2213
  %v2365 = vunpack.c.l.b16 %v2214
  %v2366 = vunpack.c.h.b16 %v2214
  %v2367 = vunpack.c.l.b16 %v2215
  %v2368 = vunpack.c.h.b16 %v2215
  %v2369 = vunpack.c.l.b16 %v2216
  %v2370 = vunpack.c.h.b16 %v2216
  %v2371 = vunpack.c.l.b16 %v2217
  %v2372 = vunpack.c.h.b16 %v2217
  %v2373 = vunpack.c.l.b16 %v2218
  %v2374 = vunpack.c.h.b16 %v2218
  %v2375 = vunpack.c.l.b16 %v2219
  %v2376 = vunpack.c.h.b16 %v2219
  %v2377 = vunpack.c.l.b16 %v2220
  %v2378 = vunpack.c.h.b16 %v2220
  %v2379 = vunpack.c.l.b16 %v2221
  %v2380 = vunpack.c.h.b16 %v2221
  %v2381 = vunpack.c.l.b16 %v2222
  %v2382 = vunpack.c.h.b16 %v2222
  %v2383 = vunpack.c.l.b16 %v2223
  %v2384 = vunpack.c.h.b16 %v2223
  %v2385 = vunpack.c.l.b16 %v2224
  %v2386 = vunpack.c.h.b16 %v2224
  %v2387 = vunpack.c.l.b16 %v2225
  %v2388 = vunpack.c.h.b16 %v2225
  %v2389 = vunpack.c.l.b16 %v2226
  %v2390 = vunpack.c.h.b16 %v2226
  %v2391 = vunpack.c.l.b16 %v2227
  %v2392 = vunpack.c.h.b16 %v2227
  %v2393 = vunpack.c.l.b16 %v2228
  %v2394 = vunpack.c.h.b16 %v2228
  %v2395 = vunpack.c.l.b16 %v2229
  %v2396 = vunpack.c.h.b16 %v2229
  %v2397 = vunpack.c.l.b16 %v2230
  %v2398 = vunpack.c.h.b16 %v2230
  %v2399 = vunpack.c.l.b16 %v2231
  %v2400 = vunpack.c.h.b16 %v2231
  %v2401 = vunpack.c.l.b16 %v2232
  %v2402 = vunpack.c.h.b16 %v2232
  %v2403 = vunpack.c.l.b16 %v2233
  %v2404 = vunpack.c.h.b16 %v2233
  %v2405 = vunpack.c.l.b16 %v2234
  %v2406 = vunpack.c.h.b16 %v2234
  %v2407 = vunpack.c.l.b16 %v2235
  %v2408 = vunpack.c.h.b16 %v2235
  %v2409 = vunpack.c.l.b16 %v2236
  %v2410 = vunpack.c.h.b16 %v2236
  %v2411 = vunpack.c.l.b16 %v2237
  %v2412 = vunpack.c.h.b16 %v2237
  %v2413 = vunpack.c.l.b16 %v2238
  %v2414 = vunpack.c.h.b16 %v2238
  %v2415 = vunpack.c.l.b16 %v2239
  %v2416 = vunpack.c.h.b16 %v2239
  %v2417 = vunpack.c.l.b16 %v2240
  %v2418 = vunpack.c.h.b16 %v2240
  %v2419 = vunpack.c.l.b16 %v2241
  %v2420 = vunpack.c.h.b16 %v2241
  %v2421 = vunpack.c.l.b16 %v2242
  %v2422 = vunpack.c.h.b16 %v2242
  %v2423 = vunpack.c.l.b16 %v2243
  %v2424 = vunpack.c.h.b16 %v2243
  %v2425 = vunpack.c.l.b16 %v2244
  %v2426 = vunpack.c.h.b16 %v2244
  %v2427 = vunpack.c.l.b16 %v2245
  %v2428 = vunpack.c.h.b16 %v2245
  %v2429 = vunpack.c.l.b16 %v2246
  %v2430 = vunpack.c.h.b16 %v2246
  %v2431 = vunpack.c.l.b16 %v2247
  %v2432 = vunpack.c.h.b16 %v2247
  %v2433 = vunpack.c.l.b16 %v2248
  %v2434 = vunpack.c.h.b16 %v2248
  %v2435 = vunpack.c.l.b16 %v2249
  %v2436 = vunpack.c.h.b16 %v2249
  %v2437 = vunpack.c.l.b16 %v2250
  %v2438 = vunpack.c.h.b16 %v2250
  %v2439 = vunpack.c.l.b16 %v2251
  %v2440 = vunpack.c.h.b16 %v2251
  %v2441 = vunpack.c.l.b16 %v2252
  %v2442 = vunpack.c.h.b16 %v2252
  %v2443 = vunpack.c.l.b16 %v2253
  %v2444 = vunpack.c.h.b16 %v2253
  %v2445 = vunpack.c.l.b16 %v2254
  %v2446 = vunpack.c.h.b16 %v2254
  %v2447 = vpack.c.b16 %v2321, %v2319
  %v2448 = vpack.c.b16 %v2322, %v2320
  %v2449 = vpack.c.b16 %v2325, %v2323
  %v2450 = vpack.c.b16 %v2326, %v2324
  %v2451 = vpack.c.b16 %v2329, %v2327
  %v2452 = vpack.c.b16 %v2330, %v2328
  %v2453 = vpack.c.b16 %v2333, %v2331
  %v2454 = vpack.c.b16 %v2334, %v2332
  %v2455 = vpack.c.b16 %v2337, %v2335
  %v2456 = vpack.c.b16 %v2338, %v2336
  %v2457 = vpack.c.b16 %v2341, %v2339
  %v2458 = vpack.c.b16 %v2342, %v2340
  %v2459 = vpack.c.b16 %v2345, %v2343
  %v2460 = vpack.c.b16 %v2346, %v2344
  %v2461 = vpack.c.b16 %v2349, %v2347
  %v2462 = vpack.c.b16 %v2350, %v2348
  %v2463 = vpack.c.b16 %v2353, %v2351
  %v2464 = vpack.c.b16 %v2354, %v2352
  %v2465 = vpack.c.b16 %v2357, %v2355
  %v2466 = vpack.c.b16 %v2358, %v2356
  %v2467 = vpack.c.b16 %v2361, %v2359
  %v2468 = vpack.c.b16 %v2362, %v2360
  %v2469 = vpack.c.b16 %v2365, %v2363
  %v2470 = vpack.c.b16 %v2366, %v2364
  %v2471 = vpack.c.b16 %v2369, %v2367
  %v2472 = vpack.c.b16 %v2370, %v2368
  %v2473 = vpack.c.b16 %v2373, %v2371
  %v2474 = vpack.c.b16 %v2374, %v2372
  %v2475 = vpack.c.b16 %v2377, %v2375
  %v2476 = vpack.c.b16 %v2378, %v2376
  %v2477 = vpack.c.b16 %v2381, %v2379
  %v2478 = vpack.c.b16 %v2382, %v2380
  %v2479 = vpack.c.b16 %v2385, %v2383
  %v2480 = vpack.c.b16 %v2386, %v2384
  %v2481 = vpack.c.b16 %v2389, %v2387
  %v2482 = vpack.c.b16 %v2390, %v2388
  %v2483 = vpack.c.b16 %v2393, %v2391
  %v2484 = vpack.c.b16 %v2394, %v2392
  %v2485 = vpack.c.b16 %v2397, %v2395
  %v2486 = vpack.c.b16 %v2398, %v2396
  %v2487 = vpack.c.b16 %v2401, %v2399
  %v2488 = vpack.c.b16 %v2402, %v2400
  %v2489 = vpack.c.b16 %v2405, %v2403
  %v2490 = vpack.c.b16 %v2406, %v2404
  %v2491 = vpack.c.b16 %v2409, %v2407
  %v2492 = vpack.c.b16 %v2410, %v2408
  %v2493 = vpack.c.b16 %v2413, %v2411
  %v2494 = vpack.c.b16 %v2414, %v2412
  %v2495 = vpack.c.b16 %v2417, %v2415
  %v2496 = vpack.c.b16 %v2418, %v2416
  %v2497 = vpack.c.b16 %v2421, %v2419
  %v2498 = vpack.c.b16 %v2422, %v2420
  %v2499 = vpack.c.b16 %v2425, %v2423
  %v2500 = vpack.c.b16 %v2426, %v2424
  %v2501 = vpack.c.b16 %v2429, %v2427
  %v2502 = vpack.c.b16 %v2430, %v2428
  %v2503 = vpack.c.b16 %v2433, %v2431
  %v2504 = vpack.c.b16 %v2434, %v2432
  %v2505 = vpack.c.b16 %v2437, %v2435
  %v2506 = vpack.c.b16 %v2438, %v2436
  %v2507 = vpack.c.b16 %v2441, %v2439
  %v2508 = vpack.c.b16 %v2442, %v2440
  %v2509 = vpack.c.b16 %v2445, %v2443
  %v2510 = vpack.c.b16 %v2446, %v2444
  %2575 = vmatpush.bf16.msra.mxu0 %v2461
  %2576 = vmatpush.bf16.msra.mxu0 %v2459
  %2577 = vmatpush.bf16.msra.mxu0 %v2457
  %2578 = vmatpush.bf16.msra.mxu0 %v2455
  %2579 = vmatpush.bf16.msra.mxu0 %v2453
  %2580 = vmatpush.bf16.msra.mxu0 %v2451
  %2581 = vmatpush.bf16.msra.mxu0 %v2449
  %2582 = vmatpush.bf16.msra.mxu0 %v2447
  %2583 = vmatmul.bf16.gmra.mxu0 %v2187
  %v2584 = vpop.f32.mrf.mxu0
  %v2585 = vadd.f32 0.0, %v2584
  %v2586 = vpop.f32.mrf.mxu0
  %2587 = vdwg.mxu0
  %2588 = vmatpush.bf16.msra.mxu0 %v2477
  %2589 = vmatpush.bf16.msra.mxu0 %v2475
  %2590 = vmatpush.bf16.msra.mxu0 %v2473
  %2591 = vmatpush.bf16.msra.mxu0 %v2471
  %2592 = vmatpush.bf16.msra.mxu0 %v2469
  %2593 = vmatpush.bf16.msra.mxu0 %v2467
  %2594 = vmatpush.bf16.msra.mxu0 %v2465
  %2595 = vmatpush.bf16.msra.mxu0 %v2463
  %2596 = vmatmul.bf16.gmra.mxu0 %v2188
  %v2597 = vpop.f32.mrf.mxu0
  %v2598 = vadd.f32 %v2585, %v2597
  %v2599 = vpop.f32.mrf.mxu0
  %2600 = vdwg.mxu0
  %2601 = vmatpush.bf16.msra.mxu0 %v2493
  %2602 = vmatpush.bf16.msra.mxu0 %v2491
  %2603 = vmatpush.bf16.msra.mxu0 %v2489
  %2604 = vmatpush.bf16.msra.mxu0 %v2487
  %2605 = vmatpush.bf16.msra.mxu0 %v2485
  %2606 = vmatpush.bf16.msra.mxu0 %v2483
  %2607 = vmatpush.bf16.msra.mxu0 %v2481
  %2608 = vmatpush.bf16.msra.mxu0 %v2479
  %2609 = vmatmul.bf16.gmra.mxu0 %v2189
  %v2610 = vpop.f32.mrf.mxu0
  %v2611 = vadd.f32 %v2598, %v2610
  %v2612 = vpop.f32.mrf.mxu0
  %2613 = vdwg.mxu0
  %2614 = vmatpush.bf16.msra.mxu0 %v2509
  %2615 = vmatpush.bf16.msra.mxu0 %v2507
  %2616 = vmatpush.bf16.msra.mxu0 %v2505
  %2617 = vmatpush.bf16.msra.mxu0 %v2503
  %2618 = vmatpush.bf16.msra.mxu0 %v2501
  %2619 = vmatpush.bf16.msra.mxu0 %v2499
  %2620 = vmatpush.bf16.msra.mxu0 %v2497
  %2621 = vmatpush.bf16.msra.mxu0 %v2495
  %2622 = vmatmul.bf16.gmra.mxu0 %v2190
  %v2623 = vpop.f32.mrf.mxu0
  %v2624 = vadd.f32 %v2611, %v2623
  %v2625 = vpop.f32.mrf.mxu0
  %2626 = vdwg.mxu0
  %2627 = vmatpush.bf16.msra.mxu0 %v2462
  %2628 = vmatpush.bf16.msra.mxu0 %v2460
  %2629 = vmatpush.bf16.msra.mxu0 %v2458
  %2630 = vmatpush.bf16.msra.mxu0 %v2456
  %2631 = vmatpush.bf16.msra.mxu0 %v2454
  %2632 = vmatpush.bf16.msra.mxu0 %v2452
  %2633 = vmatpush.bf16.msra.mxu0 %v2450
  %2634 = vmatpush.bf16.msra.mxu0 %v2448
  %2635 = vmatmul.bf16.gmra.mxu0 %v2187
  %v2636 = vpop.f32.mrf.mxu0
  %v2637 = vadd.f32 0.0, %v2636
  %v2638 = vpop.f32.mrf.mxu0
  %2639 = vdwg.mxu0
  %2640 = vmatpush.bf16.msra.mxu0 %v2478
  %2641 = vmatpush.bf16.msra.mxu0 %v2476
  %2642 = vmatpush.bf16.msra.mxu0 %v2474
  %2643 = vmatpush.bf16.msra.mxu0 %v2472
  %2644 = vmatpush.bf16.msra.mxu0 %v2470
  %2645 = vmatpush.bf16.msra.mxu0 %v2468
  %2646 = vmatpush.bf16.msra.mxu0 %v2466
  %2647 = vmatpush.bf16.msra.mxu0 %v2464
  %2648 = vmatmul.bf16.gmra.mxu0 %v2188
  %v2649 = vpop.f32.mrf.mxu0
  %v2650 = vadd.f32 %v2637, %v2649
  %v2651 = vpop.f32.mrf.mxu0
  %2652 = vdwg.mxu0
  %2653 = vmatpush.bf16.msra.mxu0 %v2494
  %2654 = vmatpush.bf16.msra.mxu0 %v2492
  %2655 = vmatpush.bf16.msra.mxu0 %v2490
  %2656 = vmatpush.bf16.msra.mxu0 %v2488
  %2657 = vmatpush.bf16.msra.mxu0 %v2486
  %2658 = vmatpush.bf16.msra.mxu0 %v2484
  %2659 = vmatpush.bf16.msra.mxu0 %v2482
  %2660 = vmatpush.bf16.msra.mxu0 %v2480
  %2661 = vmatmul.bf16.gmra.mxu0 %v2189
  %v2662 = vpop.f32.mrf.mxu0
  %v2663 = vadd.f32 %v2650, %v2662
  %v2664 = vpop.f32.mrf.mxu0
  %2665 = vdwg.mxu0
  %2666 = vmatpush.bf16.msra.mxu0 %v2510
  %2667 = vmatpush.bf16.msra.mxu0 %v2508
  %2668 = vmatpush.bf16.msra.mxu0 %v2506
  %2669 = vmatpush.bf16.msra.mxu0 %v2504
  %2670 = vmatpush.bf16.msra.mxu0 %v2502
  %2671 = vmatpush.bf16.msra.mxu0 %v2500
  %2672 = vmatpush.bf16.msra.mxu0 %v2498
  %2673 = vmatpush.bf16.msra.mxu0 %v2496
  %2674 = vmatmul.bf16.gmra.mxu0 %v2190
  %v2675 = vpop.f32.mrf.mxu0
  %v2676 = vadd.f32 %v2663, %v2675
  %v2677 = vpop.f32.mrf.mxu0
  %2678 = vdwg.mxu0
  %v2679 = vld [vmem:[%s5] sm:$0x3]
  %v2680 = vld [vmem:[%s6] sm:$0x3]
  %v2681 = vsel %vm2017, %v2624, 0.0
  %v2682 = vrot.slane %v2681, 4
  %v2683 = vadd.f32 %v2681, %v2682
  %v2684 = vrot.slane %v2683, 2
  %v2685 = vadd.f32 %v2683, %v2684
  %v2686 = vrot.slane %v2685, 1
  %v2687 = vadd.f32 %v2685, %v2686
  %v2688 = vsel %vm2017, %v2676, 0.0
  %v2689 = vrot.slane %v2688, 4
  %v2690 = vadd.f32 %v2688, %v2689
  %v2691 = vrot.slane %v2690, 2
  %v2692 = vadd.f32 %v2690, %v2691
  %v2693 = vrot.slane %v2692, 1
  %v2694 = vadd.f32 %v2692, %v2693
  %v2695 = vmul.f32 %v2687, %v2052
  %v2696 = vmul.f32 %v2694, %v2052
  %v2697 = vmul.f32 %v2624, %v2624
  %v2698 = vmul.f32 %v2676, %v2676
  %v2699 = vsel %vm2017, %v2697, 0.0
  %v2700 = vrot.slane %v2699, 4
  %v2701 = vadd.f32 %v2699, %v2700
  %v2702 = vrot.slane %v2701, 2
  %v2703 = vadd.f32 %v2701, %v2702
  %v2704 = vrot.slane %v2703, 1
  %v2705 = vadd.f32 %v2703, %v2704
  %v2706 = vsel %vm2017, %v2698, 0.0
  %v2707 = vrot.slane %v2706, 4
  %v2708 = vadd.f32 %v2706, %v2707
  %v2709 = vrot.slane %v2708, 2
  %v2710 = vadd.f32 %v2708, %v2709
  %v2711 = vrot.slane %v2710, 1
  %v2712 = vadd.f32 %v2710, %v2711
  %v2713 = vmul.f32 %v2705, %v2052
  %v2714 = vmul.f32 %v2712, %v2052
  %v2715 = vmul.f32 %v2695, %v2695
  %v2716 = vmul.f32 %v2696, %v2696
  %v2717 = vsub.f32 %v2713, %v2715
  %v2718 = vsub.f32 %v2714, %v2716
  %v2719 = vmax.f32 %v2717, 0.0
  %v2720 = vmax.f32 %v2718, 0.0
  %v2721 = vsub.f32 %v2624, %v2695
  %v2722 = vsub.f32 %v2676, %v2696
  %v2723 = vadd.f32 %v2719, 1e-05
  %v2724 = vadd.f32 %v2720, 1e-05
  %v2725 = vrsqrt.pop %v2723
  %v2726 = vmul.f32 %v2725, %v2723
  %v2727 = vmul.f32 %v2726, %v2725
  %v2728 = vmul.f32 0.5, %v2727
  %v2729 = vsub.f32 1.5, %v2728
  %v2730 = vmul.f32 %v2725, %v2729
  %vm2731 = vweird.f32 %v2723
  %vm2732 = vweird.f32 %v2725
  %vm2733 = vmor %vm2731, %vm2732
  %v2734 = vsel %vm2733, %v2725, %v2730
  %v2735 = vrsqrt.pop %v2724
  %v2736 = vmul.f32 %v2735, %v2724
  %v2737 = vmul.f32 %v2736, %v2735
  %v2738 = vmul.f32 0.5, %v2737
  %v2739 = vsub.f32 1.5, %v2738
  %v2740 = vmul.f32 %v2735, %v2739
  %vm2741 = vweird.f32 %v2724
  %vm2742 = vweird.f32 %v2735
  %vm2743 = vmor %vm2741, %vm2742
  %v2744 = vsel %vm2743, %v2735, %v2740
  %v2745 = vmul.f32 %v2721, %v2734
  %v2746 = vmul.f32 %v2722, %v2744
  %v2748 = vperm.slane %v2679, 0
  %v2749 = vperm.slane %v2679, 1
  %v2752 = vmul.f32 %v2745, %v2748
  %v2753 = vmul.f32 %v2746, %v2749
  %v2755 = vperm.slane %v2680, 0
  %v2756 = vperm.slane %v2680, 1
  %v2759 = vadd.f32 %v2752, %v2755
  %v2760 = vadd.f32 %v2753, %v2756
  %v2761 = vmax.f32 %v2759, 0.0
  %v2762 = vmax.f32 %v2760, 0.0
  %v2763 = vpack.c.bf16 %v2761, %v2761
  %v2764 = vpack.c.bf16 %v2762, %v2762
  %v2765 = vld [vmem:[%s7] sm:$0xf]
  %v2766 = vld [vmem:[%s7 + $0x4] sm:$0xf]
  %v2767 = vld [vmem:[%s7 + $0x8] sm:$0xf]
  %v2768 = vld [vmem:[%s7 + $0xc] sm:$0xf]
  %v2769 = vld [vmem:[%s7 + $0x10] sm:$0xf]
  %v2770 = vld [vmem:[%s7 + $0x14] sm:$0xf]
  %v2771 = vld [vmem:[%s7 + $0x18] sm:$0xf]
  %v2772 = vld [vmem:[%s7 + $0x1c] sm:$0xf]
  %v2773 = vld [vmem:[%s7 + $0x20] sm:$0xf]
  %v2774 = vld [vmem:[%s7 + $0x24] sm:$0xf]
  %v2775 = vld [vmem:[%s7 + $0x28] sm:$0xf]
  %v2776 = vld [vmem:[%s7 + $0x2c] sm:$0xf]
  %v2777 = vld [vmem:[%s7 + $0x30] sm:$0xf]
  %v2778 = vld [vmem:[%s7 + $0x34] sm:$0xf]
  %v2779 = vld [vmem:[%s7 + $0x38] sm:$0xf]
  %v2780 = vld [vmem:[%s7 + $0x3c] sm:$0xf]
  %v2781 = vld [vmem:[%s7 + $0x40] sm:$0xf]
  %v2782 = vld [vmem:[%s7 + $0x44] sm:$0xf]
  %v2783 = vld [vmem:[%s7 + $0x48] sm:$0xf]
  %v2784 = vld [vmem:[%s7 + $0x4c] sm:$0xf]
  %v2785 = vld [vmem:[%s7 + $0x50] sm:$0xf]
  %v2786 = vld [vmem:[%s7 + $0x54] sm:$0xf]
  %v2787 = vld [vmem:[%s7 + $0x58] sm:$0xf]
  %v2788 = vld [vmem:[%s7 + $0x5c] sm:$0xf]
  %v2789 = vld [vmem:[%s7 + $0x60] sm:$0xf]
  %v2790 = vld [vmem:[%s7 + $0x64] sm:$0xf]
  %v2791 = vld [vmem:[%s7 + $0x68] sm:$0xf]
  %v2792 = vld [vmem:[%s7 + $0x6c] sm:$0xf]
  %v2793 = vld [vmem:[%s7 + $0x70] sm:$0xf]
  %v2794 = vld [vmem:[%s7 + $0x74] sm:$0xf]
  %v2795 = vld [vmem:[%s7 + $0x78] sm:$0xf]
  %v2796 = vld [vmem:[%s7 + $0x7c] sm:$0xf]
  %v2797 = vld [vmem:[%s8] sm:$0x1]
  %v2799 = vperm.slane %v2797, 0
  %v2833 = vunpack.c.l.b16 %v2765
  %v2834 = vunpack.c.l.b16 %v2766
  %v2835 = vunpack.c.l.b16 %v2767
  %v2836 = vunpack.c.l.b16 %v2768
  %v2837 = vunpack.c.l.b16 %v2769
  %v2838 = vunpack.c.l.b16 %v2770
  %v2839 = vunpack.c.l.b16 %v2771
  %v2840 = vunpack.c.l.b16 %v2772
  %v2841 = vunpack.c.l.b16 %v2773
  %v2842 = vunpack.c.l.b16 %v2774
  %v2843 = vunpack.c.l.b16 %v2775
  %v2844 = vunpack.c.l.b16 %v2776
  %v2845 = vunpack.c.l.b16 %v2777
  %v2846 = vunpack.c.l.b16 %v2778
  %v2847 = vunpack.c.l.b16 %v2779
  %v2848 = vunpack.c.l.b16 %v2780
  %v2849 = vunpack.c.l.b16 %v2781
  %v2850 = vunpack.c.l.b16 %v2782
  %v2851 = vunpack.c.l.b16 %v2783
  %v2852 = vunpack.c.l.b16 %v2784
  %v2853 = vunpack.c.l.b16 %v2785
  %v2854 = vunpack.c.l.b16 %v2786
  %v2855 = vunpack.c.l.b16 %v2787
  %v2856 = vunpack.c.l.b16 %v2788
  %v2857 = vunpack.c.l.b16 %v2789
  %v2858 = vunpack.c.l.b16 %v2790
  %v2859 = vunpack.c.l.b16 %v2791
  %v2860 = vunpack.c.l.b16 %v2792
  %v2861 = vunpack.c.l.b16 %v2793
  %v2862 = vunpack.c.l.b16 %v2794
  %v2863 = vunpack.c.l.b16 %v2795
  %v2864 = vunpack.c.l.b16 %v2796
  %v2865 = vpack.c.b16 %v2834, %v2833
  %v2866 = vpack.c.b16 %v2836, %v2835
  %v2867 = vpack.c.b16 %v2838, %v2837
  %v2868 = vpack.c.b16 %v2840, %v2839
  %v2869 = vpack.c.b16 %v2842, %v2841
  %v2870 = vpack.c.b16 %v2844, %v2843
  %v2871 = vpack.c.b16 %v2846, %v2845
  %v2872 = vpack.c.b16 %v2848, %v2847
  %v2873 = vpack.c.b16 %v2850, %v2849
  %v2874 = vpack.c.b16 %v2852, %v2851
  %v2875 = vpack.c.b16 %v2854, %v2853
  %v2876 = vpack.c.b16 %v2856, %v2855
  %v2877 = vpack.c.b16 %v2858, %v2857
  %v2878 = vpack.c.b16 %v2860, %v2859
  %v2879 = vpack.c.b16 %v2862, %v2861
  %v2880 = vpack.c.b16 %v2864, %v2863
  %2897 = vmatpush.bf16.msra.mxu0 %v2872
  %2898 = vmatpush.bf16.msra.mxu0 %v2871
  %2899 = vmatpush.bf16.msra.mxu0 %v2870
  %2900 = vmatpush.bf16.msra.mxu0 %v2869
  %2901 = vmatpush.bf16.msra.mxu0 %v2868
  %2902 = vmatpush.bf16.msra.mxu0 %v2867
  %2903 = vmatpush.bf16.msra.mxu0 %v2866
  %2904 = vmatpush.bf16.msra.mxu0 %v2865
  %2905 = vmatmul.bf16.gmra.mxu0 %v2763
  %v2906 = vpop.f32.mrf.mxu0
  %v2907 = vadd.f32 %v2799, %v2906
  %v2908 = vpop.f32.mrf.mxu0
  %2909 = vdwg.mxu0
  %2910 = vmatpush.bf16.msra.mxu0 %v2880
  %2911 = vmatpush.bf16.msra.mxu0 %v2879
  %2912 = vmatpush.bf16.msra.mxu0 %v2878
  %2913 = vmatpush.bf16.msra.mxu0 %v2877
  %2914 = vmatpush.bf16.msra.mxu0 %v2876
  %2915 = vmatpush.bf16.msra.mxu0 %v2875
  %2916 = vmatpush.bf16.msra.mxu0 %v2874
  %2917 = vmatpush.bf16.msra.mxu0 %v2873
  %2918 = vmatmul.bf16.gmra.mxu0 %v2764
  %v2919 = vpop.f32.mrf.mxu0
  %v2920 = vadd.f32 %v2907, %v2919
  %v2921 = vpop.f32.mrf.mxu0
  %2922 = vdwg.mxu0
  %2923 = vst [vmem:[%s9] sm:$0x3] %v2920
  // Predicated region
  $region38: #{feature_transform_net.7} parent=0 // pred_check
    _
  $region39: #{feature_transform_net.7} parent=0 // pred_check_branch
    %2925 = sbr.rel (0) target = $region41
  $region40: #{feature_transform_net.7} parent=0 // pred_region
    _
  $region41: #{feature_transform_net.7} parent=0 // pred_fallthru
    _
  // Predicated region
  $region42: #{feature_transform_net.7} parent=0 // pred_check
    _
  $region43: #{feature_transform_net.7} parent=0 // pred_check_branch
    %2927 = sbr.rel (0) target = $region45
  $region44: #{feature_transform_net.7} parent=0 // pred_region
    _
  $region45: #{feature_transform_net.7} parent=0 // pred_fallthru
    _

</llo_original>
